<compile_context>
chip_gen: v6e
topology: v6e:2x2x1
jax: 0.10.0
libtpu: 0.0.40
codegen_flags: <defaults>
</compile_context>

<pallas_src>
import functools

import jax
import jax.numpy as jnp
from jax.experimental import pallas as pl
from jax.experimental.pallas import tpu as pltpu


# ---------------------------------------------------------------------------
# Kernels
# ---------------------------------------------------------------------------
def _dog_wavelet_kernel(x_ref, a_ref, b_ref, inv_s_ref, trans_ref, ww_ref,
                        out_ref, *, in_features: int):
    """Fused (previous-BN affine) + dog wavelet transform.

    x_ref:     (I, tb)   transposed activation tile (batch on lanes)
    a_ref:     (I, 1)    per-input-feature affine scale (previous layer's BN)
    b_ref:     (I, 1)    per-input-feature affine bias
    inv_s_ref: (O, I)    1 / scale
    trans_ref: (O, I)    translation
    ww_ref:    (O, I)    wavelet_weights
    out_ref:   (O, tb)   pre-BN wavelet output tile
    """
    # Apply the previous layer's BatchNorm affine on load (identity for layer 0).
    x = x_ref[...] * a_ref[...] + b_ref[...]            # (I, tb)

    inv_s = inv_s_ref[...]                               # (O, I)
    trans = trans_ref[...]
    ww = ww_ref[...]

    acc = jnp.zeros(out_ref.shape, jnp.float32)          # (O, tb)
    # in_features is a small static int -> unrolled loop (VPU/EUP work,
    # lane-dense (O, tb) operands).
    for i in range(in_features):
        xi = x[i:i + 1, :]                               # (1, tb), sublane-bcast
        z = (xi - trans[:, i:i + 1]) * inv_s[:, i:i + 1]  # (O, tb)
        acc = acc + ww[:, i:i + 1] * (-z) * jnp.exp(-0.5 * (z * z))

    out_ref[...] = acc


def _affine_kernel(x_ref, a_ref, b_ref, out_ref):
    """y = a * x + b with per-feature (per-sublane-row) a, b. Used for the
    final layer's BatchNorm application."""
    out_ref[...] = x_ref[...] * a_ref[...] + b_ref[...]


# ---------------------------------------------------------------------------
# pallas_call wrappers
# ---------------------------------------------------------------------------
def _round_up(n: int, m: int) -> int:
    return ((n + m - 1) // m) * m


def _choose_batch_tiling(batch: int, tile_b: int = 1024):
    """Pick a lane-tile size (multiple of 128) and padded batch size."""
    b_pad = _round_up(max(batch, 8), 128)
    tb = min(_round_up(tile_b, 128), b_pad)
    # Keep >= 2 grid steps when the batch allows it (v7x has 2 TensorCores).
    if tb == b_pad and b_pad >= 256:
        tb = max(128, (tb // 2) // 128 * 128)
    b_pad = _round_up(b_pad, tb)
    return b_pad, tb


def _wavelet_pallas(x_t, a_in, b_in, inv_scale, translation, wavelet_weights,
                    *, tb: int):
    in_f, b_pad = x_t.shape
    out_f = inv_scale.shape[0]
    grid = (b_pad // tb,)
    kernel = functools.partial(_dog_wavelet_kernel, in_features=in_f)
    return pl.pallas_call(
        kernel,
        out_shape=jax.ShapeDtypeStruct((out_f, b_pad), jnp.float32),
        grid_spec=pltpu.PrefetchScalarGridSpec(
            num_scalar_prefetch=0,
            grid=grid,
            in_specs=[
                pl.BlockSpec((in_f, tb), lambda j: (0, j)),        # x (I, tb)
                pl.BlockSpec((in_f, 1), lambda j: (0, 0)),         # a
                pl.BlockSpec((in_f, 1), lambda j: (0, 0)),         # b
                pl.BlockSpec((out_f, in_f), lambda j: (0, 0)),     # 1/scale
                pl.BlockSpec((out_f, in_f), lambda j: (0, 0)),     # translation
                pl.BlockSpec((out_f, in_f), lambda j: (0, 0)),     # wavelet_w
            ],
            out_specs=pl.BlockSpec((out_f, tb), lambda j: (0, j)),
        ),
        compiler_params=pltpu.CompilerParams(
            dimension_semantics=("parallel",)),
    )(x_t, a_in, b_in, inv_scale, translation, wavelet_weights)


def _affine_pallas(x_t, a, b, *, tb: int):
    feat, b_pad = x_t.shape
    grid = (b_pad // tb,)
    return pl.pallas_call(
        _affine_kernel,
        out_shape=jax.ShapeDtypeStruct((feat, b_pad), jnp.float32),
        grid_spec=pltpu.PrefetchScalarGridSpec(
            num_scalar_prefetch=0,
            grid=grid,
            in_specs=[
                pl.BlockSpec((feat, tb), lambda j: (0, j)),
                pl.BlockSpec((feat, 1), lambda j: (0, 0)),
                pl.BlockSpec((feat, 1), lambda j: (0, 0)),
            ],
            out_specs=pl.BlockSpec((feat, tb), lambda j: (0, j)),
        ),
        compiler_params=pltpu.CompilerParams(
            dimension_semantics=("parallel",)),
    )(x_t, a, b)


# ---------------------------------------------------------------------------
# Full Dog_KAN forward
# ---------------------------------------------------------------------------
def dog_kan_forward(x, layer_params, *, eps: float = 1e-5, tile_b: int = 1024):
    """Forward pass of Dog_KAN.

    Args:
      x:            (batch, layers_hidden[0]) activations.
      layer_params: list of dicts with keys
                    'scale', 'translation', 'wavelet_weights'  -> (out, in)
                    'gamma', 'beta'                            -> (out,)
    Returns:
      (batch, layers_hidden[-1]) float32 output.
    """
    x = jnp.asarray(x, jnp.float32)
    batch, in_dim = x.shape
    b_pad, tb = _choose_batch_tiling(batch, tile_b)

    # Transposed layout: (features, batch) so batch maps to lanes.
    x_t = x.T
    if b_pad != batch:
        x_t = jnp.pad(x_t, ((0, 0), (0, b_pad - batch)))

    # Identity affine for the first layer's (fused) input transform.
    a = jnp.ones((in_dim, 1), jnp.float32)
    b = jnp.zeros((in_dim, 1), jnp.float32)

    for p in layer_params:
        inv_scale = (1.0 / p["scale"]).astype(jnp.float32)
        w_t = _wavelet_pallas(
            x_t, a, b, inv_scale,
            p["translation"].astype(jnp.float32),
            p["wavelet_weights"].astype(jnp.float32),
            tb=tb)                                       # (out, b_pad), pre-BN

        # BatchNorm1d (training-mode forward): batch statistics over the
        # *unpadded* batch, biased variance.  Folded into a per-feature affine
        # that is applied by the NEXT wavelet kernel (or the final affine
        # kernel for the last layer).
        w_valid = w_t[:, :batch]
        mean = jnp.mean(w_valid, axis=1)
        var = jnp.var(w_valid, axis=1)
        inv_std = jax.lax.rsqrt(var + eps)
        gamma = p["gamma"].astype(jnp.float32)
        beta = p["beta"].astype(jnp.float32)
        a = (gamma * inv_std)[:, None]
        b = (beta - mean * gamma * inv_std)[:, None]
        x_t = w_t

    # Apply the last layer's BatchNorm affine.
    y_t = _affine_pallas(x_t, a, b, tb=tb)
    return y_t[:, :batch].T


# ---------------------------------------------------------------------------
# Pure-JAX reference (mirrors the PyTorch forward exactly)
# ---------------------------------------------------------------------------
def dog_kan_reference(x, layer_params, *, eps: float = 1e-5):
    h = jnp.asarray(x, jnp.float32)
    for p in layer_params:
        xs = (h[:, None, :] - p["translation"][None]) / p["scale"][None]
        dog = -xs * jnp.exp(-0.5 * xs * xs)
        w = jnp.sum(dog * p["wavelet_weights"][None], axis=2)   # (B, out)
        mean = jnp.mean(w, axis=0)
        var = jnp.var(w, axis=0)                                 # biased
        h = (w - mean) / jnp.sqrt(var + eps) * p["gamma"] + p["beta"]
    return h


if __name__ == "__main__":
    layers_hidden = [32, 64, 32]
    batch = 256

    key = jax.random.PRNGKey(0)
    n_layers = len(layers_hidden) - 1
    keys = jax.random.split(key, 1 + 5 * n_layers)

    x = jax.random.normal(keys[0], (batch, layers_hidden[0]), dtype=jnp.float32)

    # Deterministic layer parameters (perturbed around the PyTorch init values
    # so every code path is numerically exercised).
    params = []
    k = 1
    for in_dim, out_dim in zip(layers_hidden[:-1], layers_hidden[1:]):
        scale = 1.0 + 0.1 * jax.random.normal(keys[k], (out_dim, in_dim)); k += 1
        trans = 0.1 * jax.random.normal(keys[k], (out_dim, in_dim)); k += 1
        ww = jax.random.uniform(keys[k], (out_dim, in_dim),
                                minval=-1.0, maxval=1.0) / jnp.sqrt(in_dim); k += 1
        gamma = 1.0 + 0.1 * jax.random.normal(keys[k], (out_dim,)); k += 1
        beta = 0.1 * jax.random.normal(keys[k], (out_dim,)); k += 1
        params.append(dict(scale=scale, translation=trans, wavelet_weights=ww,
                           gamma=gamma, beta=beta))

    y = dog_kan_forward(x, params)
    y = jax.block_until_ready(y)

    y_ref = dog_kan_reference(x, params)
    assert y.shape == (batch, layers_hidden[-1])
    max_err = float(jnp.max(jnp.abs(y - y_ref)))
    assert jnp.allclose(y, y_ref, atol=1e-4, rtol=1e-4), max_err

    print("KERNEL_OK")
</pallas_src>

<mosaic_0001>
module attributes {stable_mosaic.version = 11 : i64} {
  func.func @_dog_wavelet_kernel(%arg0: i32, %arg1: memref<32x128xf32, #tpu.memory_space<vmem>>, %arg2: memref<32x1xf32, #tpu.memory_space<vmem>>, %arg3: memref<32x1xf32, #tpu.memory_space<vmem>>, %arg4: memref<64x32xf32, #tpu.memory_space<vmem>>, %arg5: memref<64x32xf32, #tpu.memory_space<vmem>>, %arg6: memref<64x32xf32, #tpu.memory_space<vmem>>, %arg7: memref<64x128xf32, #tpu.memory_space<vmem>>) attributes {dimension_semantics = [#tpu.dimension_semantics<parallel>], iteration_bounds = array<i64: 2>, scalar_prefetch = 0 : i64, scratch_operands = 0 : i64, tpu.core_type = #tpu.core_type<tc>, window_params = [{transform_indices = @transform_0, window_bounds = array<i64: 32, 128>}, {pipeline_mode = #tpu.pipeline_mode<synchronous>, transform_indices = @transform_1, window_bounds = array<i64: 32, 1>}, {pipeline_mode = #tpu.pipeline_mode<synchronous>, transform_indices = @transform_2, window_bounds = array<i64: 32, 1>}, {pipeline_mode = #tpu.pipeline_mode<synchronous>, transform_indices = @transform_3, window_bounds = array<i64: 64, 32>}, {pipeline_mode = #tpu.pipeline_mode<synchronous>, transform_indices = @transform_4, window_bounds = array<i64: 64, 32>}, {pipeline_mode = #tpu.pipeline_mode<synchronous>, transform_indices = @transform_5, window_bounds = array<i64: 64, 32>}, {transform_indices = @transform_6, window_bounds = array<i64: 64, 128>}]} {
    %c0 = arith.constant 0 : index
    %c0_0 = arith.constant 0 : index
    %0 = vector.load %arg1[%c0, %c0_0] : memref<32x128xf32, #tpu.memory_space<vmem>>, vector<32x128xf32>
    %c0_1 = arith.constant 0 : index
    %c0_2 = arith.constant 0 : index
    %1 = vector.load %arg2[%c0_1, %c0_2] : memref<32x1xf32, #tpu.memory_space<vmem>>, vector<32x1xf32>
    %2 = vector.broadcast %1 : vector<32x1xf32> to vector<32x128xf32>
    %3 = arith.mulf %0, %2 : vector<32x128xf32>
    %c0_3 = arith.constant 0 : index
    %c0_4 = arith.constant 0 : index
    %4 = vector.load %arg3[%c0_3, %c0_4] : memref<32x1xf32, #tpu.memory_space<vmem>>, vector<32x1xf32>
    %5 = vector.broadcast %4 : vector<32x1xf32> to vector<32x128xf32>
    %6 = arith.addf %3, %5 : vector<32x128xf32>
    %c0_5 = arith.constant 0 : index
    %c0_6 = arith.constant 0 : index
    %7 = vector.load %arg4[%c0_5, %c0_6] : memref<64x32xf32, #tpu.memory_space<vmem>>, vector<64x32xf32>
    %c0_7 = arith.constant 0 : index
    %c0_8 = arith.constant 0 : index
    %8 = vector.load %arg5[%c0_7, %c0_8] : memref<64x32xf32, #tpu.memory_space<vmem>>, vector<64x32xf32>
    %c0_9 = arith.constant 0 : index
    %c0_10 = arith.constant 0 : index
    %9 = vector.load %arg6[%c0_9, %c0_10] : memref<64x32xf32, #tpu.memory_space<vmem>>, vector<64x32xf32>
    %cst = arith.constant 0.000000e+00 : f32
    %10 = vector.broadcast %cst : f32 to vector<64x128xf32>
    %11 = vector.extract_strided_slice %6 {offsets = [0, 0], sizes = [1, 128], strides = [1, 1]} : vector<32x128xf32> to vector<1x128xf32>
    %12 = vector.extract_strided_slice %8 {offsets = [0, 0], sizes = [64, 1], strides = [1, 1]} : vector<64x32xf32> to vector<64x1xf32>
    %13 = vector.broadcast %11 : vector<1x128xf32> to vector<64x128xf32>
    %14 = vector.broadcast %12 : vector<64x1xf32> to vector<64x128xf32>
    %15 = arith.subf %13, %14 : vector<64x128xf32>
    %16 = vector.extract_strided_slice %7 {offsets = [0, 0], sizes = [64, 1], strides = [1, 1]} : vector<64x32xf32> to vector<64x1xf32>
    %17 = vector.broadcast %16 : vector<64x1xf32> to vector<64x128xf32>
    %18 = arith.mulf %15, %17 : vector<64x128xf32>
    %19 = vector.extract_strided_slice %9 {offsets = [0, 0], sizes = [64, 1], strides = [1, 1]} : vector<64x32xf32> to vector<64x1xf32>
    %cst_11 = arith.constant 0.000000e+00 : f32
    %20 = vector.broadcast %cst_11 : f32 to vector<64x128xf32>
    %21 = arith.subf %20, %18 : vector<64x128xf32>
    %22 = vector.broadcast %19 : vector<64x1xf32> to vector<64x128xf32>
    %23 = arith.mulf %22, %21 : vector<64x128xf32>
    %24 = arith.mulf %18, %18 : vector<64x128xf32>
    %cst_12 = arith.constant -5.000000e-01 : f32
    %25 = vector.broadcast %cst_12 : f32 to vector<64x128xf32>
    %26 = arith.mulf %25, %24 : vector<64x128xf32>
    %27 = math.exp %26 : vector<64x128xf32>
    %28 = arith.mulf %23, %27 : vector<64x128xf32>
    %29 = arith.addf %10, %28 : vector<64x128xf32>
    %30 = vector.extract_strided_slice %6 {offsets = [1, 0], sizes = [1, 128], strides = [1, 1]} : vector<32x128xf32> to vector<1x128xf32>
    %31 = vector.extract_strided_slice %8 {offsets = [0, 1], sizes = [64, 1], strides = [1, 1]} : vector<64x32xf32> to vector<64x1xf32>
    %32 = vector.broadcast %30 : vector<1x128xf32> to vector<64x128xf32>
    %33 = vector.broadcast %31 : vector<64x1xf32> to vector<64x128xf32>
    %34 = arith.subf %32, %33 : vector<64x128xf32>
    %35 = vector.extract_strided_slice %7 {offsets = [0, 1], sizes = [64, 1], strides = [1, 1]} : vector<64x32xf32> to vector<64x1xf32>
    %36 = vector.broadcast %35 : vector<64x1xf32> to vector<64x128xf32>
    %37 = arith.mulf %34, %36 : vector<64x128xf32>
    %38 = vector.extract_strided_slice %9 {offsets = [0, 1], sizes = [64, 1], strides = [1, 1]} : vector<64x32xf32> to vector<64x1xf32>
    %cst_13 = arith.constant 0.000000e+00 : f32
    %39 = vector.broadcast %cst_13 : f32 to vector<64x128xf32>
    %40 = arith.subf %39, %37 : vector<64x128xf32>
    %41 = vector.broadcast %38 : vector<64x1xf32> to vector<64x128xf32>
    %42 = arith.mulf %41, %40 : vector<64x128xf32>
    %43 = arith.mulf %37, %37 : vector<64x128xf32>
    %cst_14 = arith.constant -5.000000e-01 : f32
    %44 = vector.broadcast %cst_14 : f32 to vector<64x128xf32>
    %45 = arith.mulf %44, %43 : vector<64x128xf32>
    %46 = math.exp %45 : vector<64x128xf32>
    %47 = arith.mulf %42, %46 : vector<64x128xf32>
    %48 = arith.addf %29, %47 : vector<64x128xf32>
    %49 = vector.extract_strided_slice %6 {offsets = [2, 0], sizes = [1, 128], strides = [1, 1]} : vector<32x128xf32> to vector<1x128xf32>
    %50 = vector.extract_strided_slice %8 {offsets = [0, 2], sizes = [64, 1], strides = [1, 1]} : vector<64x32xf32> to vector<64x1xf32>
    %51 = vector.broadcast %49 : vector<1x128xf32> to vector<64x128xf32>
    %52 = vector.broadcast %50 : vector<64x1xf32> to vector<64x128xf32>
    %53 = arith.subf %51, %52 : vector<64x128xf32>
    %54 = vector.extract_strided_slice %7 {offsets = [0, 2], sizes = [64, 1], strides = [1, 1]} : vector<64x32xf32> to vector<64x1xf32>
    %55 = vector.broadcast %54 : vector<64x1xf32> to vector<64x128xf32>
    %56 = arith.mulf %53, %55 : vector<64x128xf32>
    %57 = vector.extract_strided_slice %9 {offsets = [0, 2], sizes = [64, 1], strides = [1, 1]} : vector<64x32xf32> to vector<64x1xf32>
    %cst_15 = arith.constant 0.000000e+00 : f32
    %58 = vector.broadcast %cst_15 : f32 to vector<64x128xf32>
    %59 = arith.subf %58, %56 : vector<64x128xf32>
    %60 = vector.broadcast %57 : vector<64x1xf32> to vector<64x128xf32>
    %61 = arith.mulf %60, %59 : vector<64x128xf32>
    %62 = arith.mulf %56, %56 : vector<64x128xf32>
    %cst_16 = arith.constant -5.000000e-01 : f32
    %63 = vector.broadcast %cst_16 : f32 to vector<64x128xf32>
    %64 = arith.mulf %63, %62 : vector<64x128xf32>
    %65 = math.exp %64 : vector<64x128xf32>
    %66 = arith.mulf %61, %65 : vector<64x128xf32>
    %67 = arith.addf %48, %66 : vector<64x128xf32>
    %68 = vector.extract_strided_slice %6 {offsets = [3, 0], sizes = [1, 128], strides = [1, 1]} : vector<32x128xf32> to vector<1x128xf32>
    %69 = vector.extract_strided_slice %8 {offsets = [0, 3], sizes = [64, 1], strides = [1, 1]} : vector<64x32xf32> to vector<64x1xf32>
    %70 = vector.broadcast %68 : vector<1x128xf32> to vector<64x128xf32>
    %71 = vector.broadcast %69 : vector<64x1xf32> to vector<64x128xf32>
    %72 = arith.subf %70, %71 : vector<64x128xf32>
    %73 = vector.extract_strided_slice %7 {offsets = [0, 3], sizes = [64, 1], strides = [1, 1]} : vector<64x32xf32> to vector<64x1xf32>
    %74 = vector.broadcast %73 : vector<64x1xf32> to vector<64x128xf32>
    %75 = arith.mulf %72, %74 : vector<64x128xf32>
    %76 = vector.extract_strided_slice %9 {offsets = [0, 3], sizes = [64, 1], strides = [1, 1]} : vector<64x32xf32> to vector<64x1xf32>
    %cst_17 = arith.constant 0.000000e+00 : f32
    %77 = vector.broadcast %cst_17 : f32 to vector<64x128xf32>
    %78 = arith.subf %77, %75 : vector<64x128xf32>
    %79 = vector.broadcast %76 : vector<64x1xf32> to vector<64x128xf32>
    %80 = arith.mulf %79, %78 : vector<64x128xf32>
    %81 = arith.mulf %75, %75 : vector<64x128xf32>
    %cst_18 = arith.constant -5.000000e-01 : f32
    %82 = vector.broadcast %cst_18 : f32 to vector<64x128xf32>
    %83 = arith.mulf %82, %81 : vector<64x128xf32>
    %84 = math.exp %83 : vector<64x128xf32>
    %85 = arith.mulf %80, %84 : vector<64x128xf32>
    %86 = arith.addf %67, %85 : vector<64x128xf32>
    %87 = vector.extract_strided_slice %6 {offsets = [4, 0], sizes = [1, 128], strides = [1, 1]} : vector<32x128xf32> to vector<1x128xf32>
    %88 = vector.extract_strided_slice %8 {offsets = [0, 4], sizes = [64, 1], strides = [1, 1]} : vector<64x32xf32> to vector<64x1xf32>
    %89 = vector.broadcast %87 : vector<1x128xf32> to vector<64x128xf32>
    %90 = vector.broadcast %88 : vector<64x1xf32> to vector<64x128xf32>
    %91 = arith.subf %89, %90 : vector<64x128xf32>
    %92 = vector.extract_strided_slice %7 {offsets = [0, 4], sizes = [64, 1], strides = [1, 1]} : vector<64x32xf32> to vector<64x1xf32>
    %93 = vector.broadcast %92 : vector<64x1xf32> to vector<64x128xf32>
    %94 = arith.mulf %91, %93 : vector<64x128xf32>
    %95 = vector.extract_strided_slice %9 {offsets = [0, 4], sizes = [64, 1], strides = [1, 1]} : vector<64x32xf32> to vector<64x1xf32>
    %cst_19 = arith.constant 0.000000e+00 : f32
    %96 = vector.broadcast %cst_19 : f32 to vector<64x128xf32>
    %97 = arith.subf %96, %94 : vector<64x128xf32>
    %98 = vector.broadcast %95 : vector<64x1xf32> to vector<64x128xf32>
    %99 = arith.mulf %98, %97 : vector<64x128xf32>
    %100 = arith.mulf %94, %94 : vector<64x128xf32>
    %cst_20 = arith.constant -5.000000e-01 : f32
    %101 = vector.broadcast %cst_20 : f32 to vector<64x128xf32>
    %102 = arith.mulf %101, %100 : vector<64x128xf32>
    %103 = math.exp %102 : vector<64x128xf32>
    %104 = arith.mulf %99, %103 : vector<64x128xf32>
    %105 = arith.addf %86, %104 : vector<64x128xf32>
    %106 = vector.extract_strided_slice %6 {offsets = [5, 0], sizes = [1, 128], strides = [1, 1]} : vector<32x128xf32> to vector<1x128xf32>
    %107 = vector.extract_strided_slice %8 {offsets = [0, 5], sizes = [64, 1], strides = [1, 1]} : vector<64x32xf32> to vector<64x1xf32>
    %108 = vector.broadcast %106 : vector<1x128xf32> to vector<64x128xf32>
    %109 = vector.broadcast %107 : vector<64x1xf32> to vector<64x128xf32>
    %110 = arith.subf %108, %109 : vector<64x128xf32>
    %111 = vector.extract_strided_slice %7 {offsets = [0, 5], sizes = [64, 1], strides = [1, 1]} : vector<64x32xf32> to vector<64x1xf32>
    %112 = vector.broadcast %111 : vector<64x1xf32> to vector<64x128xf32>
    %113 = arith.mulf %110, %112 : vector<64x128xf32>
    %114 = vector.extract_strided_slice %9 {offsets = [0, 5], sizes = [64, 1], strides = [1, 1]} : vector<64x32xf32> to vector<64x1xf32>
    %cst_21 = arith.constant 0.000000e+00 : f32
    %115 = vector.broadcast %cst_21 : f32 to vector<64x128xf32>
    %116 = arith.subf %115, %113 : vector<64x128xf32>
    %117 = vector.broadcast %114 : vector<64x1xf32> to vector<64x128xf32>
    %118 = arith.mulf %117, %116 : vector<64x128xf32>
    %119 = arith.mulf %113, %113 : vector<64x128xf32>
    %cst_22 = arith.constant -5.000000e-01 : f32
    %120 = vector.broadcast %cst_22 : f32 to vector<64x128xf32>
    %121 = arith.mulf %120, %119 : vector<64x128xf32>
    %122 = math.exp %121 : vector<64x128xf32>
    %123 = arith.mulf %118, %122 : vector<64x128xf32>
    %124 = arith.addf %105, %123 : vector<64x128xf32>
    %125 = vector.extract_strided_slice %6 {offsets = [6, 0], sizes = [1, 128], strides = [1, 1]} : vector<32x128xf32> to vector<1x128xf32>
    %126 = vector.extract_strided_slice %8 {offsets = [0, 6], sizes = [64, 1], strides = [1, 1]} : vector<64x32xf32> to vector<64x1xf32>
    %127 = vector.broadcast %125 : vector<1x128xf32> to vector<64x128xf32>
    %128 = vector.broadcast %126 : vector<64x1xf32> to vector<64x128xf32>
    %129 = arith.subf %127, %128 : vector<64x128xf32>
    %130 = vector.extract_strided_slice %7 {offsets = [0, 6], sizes = [64, 1], strides = [1, 1]} : vector<64x32xf32> to vector<64x1xf32>
    %131 = vector.broadcast %130 : vector<64x1xf32> to vector<64x128xf32>
    %132 = arith.mulf %129, %131 : vector<64x128xf32>
    %133 = vector.extract_strided_slice %9 {offsets = [0, 6], sizes = [64, 1], strides = [1, 1]} : vector<64x32xf32> to vector<64x1xf32>
    %cst_23 = arith.constant 0.000000e+00 : f32
    %134 = vector.broadcast %cst_23 : f32 to vector<64x128xf32>
    %135 = arith.subf %134, %132 : vector<64x128xf32>
    %136 = vector.broadcast %133 : vector<64x1xf32> to vector<64x128xf32>
    %137 = arith.mulf %136, %135 : vector<64x128xf32>
    %138 = arith.mulf %132, %132 : vector<64x128xf32>
    %cst_24 = arith.constant -5.000000e-01 : f32
    %139 = vector.broadcast %cst_24 : f32 to vector<64x128xf32>
    %140 = arith.mulf %139, %138 : vector<64x128xf32>
    %141 = math.exp %140 : vector<64x128xf32>
    %142 = arith.mulf %137, %141 : vector<64x128xf32>
    %143 = arith.addf %124, %142 : vector<64x128xf32>
    %144 = vector.extract_strided_slice %6 {offsets = [7, 0], sizes = [1, 128], strides = [1, 1]} : vector<32x128xf32> to vector<1x128xf32>
    %145 = vector.extract_strided_slice %8 {offsets = [0, 7], sizes = [64, 1], strides = [1, 1]} : vector<64x32xf32> to vector<64x1xf32>
    %146 = vector.broadcast %144 : vector<1x128xf32> to vector<64x128xf32>
    %147 = vector.broadcast %145 : vector<64x1xf32> to vector<64x128xf32>
    %148 = arith.subf %146, %147 : vector<64x128xf32>
    %149 = vector.extract_strided_slice %7 {offsets = [0, 7], sizes = [64, 1], strides = [1, 1]} : vector<64x32xf32> to vector<64x1xf32>
    %150 = vector.broadcast %149 : vector<64x1xf32> to vector<64x128xf32>
    %151 = arith.mulf %148, %150 : vector<64x128xf32>
    %152 = vector.extract_strided_slice %9 {offsets = [0, 7], sizes = [64, 1], strides = [1, 1]} : vector<64x32xf32> to vector<64x1xf32>
    %cst_25 = arith.constant 0.000000e+00 : f32
    %153 = vector.broadcast %cst_25 : f32 to vector<64x128xf32>
    %154 = arith.subf %153, %151 : vector<64x128xf32>
    %155 = vector.broadcast %152 : vector<64x1xf32> to vector<64x128xf32>
    %156 = arith.mulf %155, %154 : vector<64x128xf32>
    %157 = arith.mulf %151, %151 : vector<64x128xf32>
    %cst_26 = arith.constant -5.000000e-01 : f32
    %158 = vector.broadcast %cst_26 : f32 to vector<64x128xf32>
    %159 = arith.mulf %158, %157 : vector<64x128xf32>
    %160 = math.exp %159 : vector<64x128xf32>
    %161 = arith.mulf %156, %160 : vector<64x128xf32>
    %162 = arith.addf %143, %161 : vector<64x128xf32>
    %163 = vector.extract_strided_slice %6 {offsets = [8, 0], sizes = [1, 128], strides = [1, 1]} : vector<32x128xf32> to vector<1x128xf32>
    %164 = vector.extract_strided_slice %8 {offsets = [0, 8], sizes = [64, 1], strides = [1, 1]} : vector<64x32xf32> to vector<64x1xf32>
    %165 = vector.broadcast %163 : vector<1x128xf32> to vector<64x128xf32>
    %166 = vector.broadcast %164 : vector<64x1xf32> to vector<64x128xf32>
    %167 = arith.subf %165, %166 : vector<64x128xf32>
    %168 = vector.extract_strided_slice %7 {offsets = [0, 8], sizes = [64, 1], strides = [1, 1]} : vector<64x32xf32> to vector<64x1xf32>
    %169 = vector.broadcast %168 : vector<64x1xf32> to vector<64x128xf32>
    %170 = arith.mulf %167, %169 : vector<64x128xf32>
    %171 = vector.extract_strided_slice %9 {offsets = [0, 8], sizes = [64, 1], strides = [1, 1]} : vector<64x32xf32> to vector<64x1xf32>
    %cst_27 = arith.constant 0.000000e+00 : f32
    %172 = vector.broadcast %cst_27 : f32 to vector<64x128xf32>
    %173 = arith.subf %172, %170 : vector<64x128xf32>
    %174 = vector.broadcast %171 : vector<64x1xf32> to vector<64x128xf32>
    %175 = arith.mulf %174, %173 : vector<64x128xf32>
    %176 = arith.mulf %170, %170 : vector<64x128xf32>
    %cst_28 = arith.constant -5.000000e-01 : f32
    %177 = vector.broadcast %cst_28 : f32 to vector<64x128xf32>
    %178 = arith.mulf %177, %176 : vector<64x128xf32>
    %179 = math.exp %178 : vector<64x128xf32>
    %180 = arith.mulf %175, %179 : vector<64x128xf32>
    %181 = arith.addf %162, %180 : vector<64x128xf32>
    %182 = vector.extract_strided_slice %6 {offsets = [9, 0], sizes = [1, 128], strides = [1, 1]} : vector<32x128xf32> to vector<1x128xf32>
    %183 = vector.extract_strided_slice %8 {offsets = [0, 9], sizes = [64, 1], strides = [1, 1]} : vector<64x32xf32> to vector<64x1xf32>
    %184 = vector.broadcast %182 : vector<1x128xf32> to vector<64x128xf32>
    %185 = vector.broadcast %183 : vector<64x1xf32> to vector<64x128xf32>
    %186 = arith.subf %184, %185 : vector<64x128xf32>
    %187 = vector.extract_strided_slice %7 {offsets = [0, 9], sizes = [64, 1], strides = [1, 1]} : vector<64x32xf32> to vector<64x1xf32>
    %188 = vector.broadcast %187 : vector<64x1xf32> to vector<64x128xf32>
    %189 = arith.mulf %186, %188 : vector<64x128xf32>
    %190 = vector.extract_strided_slice %9 {offsets = [0, 9], sizes = [64, 1], strides = [1, 1]} : vector<64x32xf32> to vector<64x1xf32>
    %cst_29 = arith.constant 0.000000e+00 : f32
    %191 = vector.broadcast %cst_29 : f32 to vector<64x128xf32>
    %192 = arith.subf %191, %189 : vector<64x128xf32>
    %193 = vector.broadcast %190 : vector<64x1xf32> to vector<64x128xf32>
    %194 = arith.mulf %193, %192 : vector<64x128xf32>
    %195 = arith.mulf %189, %189 : vector<64x128xf32>
    %cst_30 = arith.constant -5.000000e-01 : f32
    %196 = vector.broadcast %cst_30 : f32 to vector<64x128xf32>
    %197 = arith.mulf %196, %195 : vector<64x128xf32>
    %198 = math.exp %197 : vector<64x128xf32>
    %199 = arith.mulf %194, %198 : vector<64x128xf32>
    %200 = arith.addf %181, %199 : vector<64x128xf32>
    %201 = vector.extract_strided_slice %6 {offsets = [10, 0], sizes = [1, 128], strides = [1, 1]} : vector<32x128xf32> to vector<1x128xf32>
    %202 = vector.extract_strided_slice %8 {offsets = [0, 10], sizes = [64, 1], strides = [1, 1]} : vector<64x32xf32> to vector<64x1xf32>
    %203 = vector.broadcast %201 : vector<1x128xf32> to vector<64x128xf32>
    %204 = vector.broadcast %202 : vector<64x1xf32> to vector<64x128xf32>
    %205 = arith.subf %203, %204 : vector<64x128xf32>
    %206 = vector.extract_strided_slice %7 {offsets = [0, 10], sizes = [64, 1], strides = [1, 1]} : vector<64x32xf32> to vector<64x1xf32>
    %207 = vector.broadcast %206 : vector<64x1xf32> to vector<64x128xf32>
    %208 = arith.mulf %205, %207 : vector<64x128xf32>
    %209 = vector.extract_strided_slice %9 {offsets = [0, 10], sizes = [64, 1], strides = [1, 1]} : vector<64x32xf32> to vector<64x1xf32>
    %cst_31 = arith.constant 0.000000e+00 : f32
    %210 = vector.broadcast %cst_31 : f32 to vector<64x128xf32>
    %211 = arith.subf %210, %208 : vector<64x128xf32>
    %212 = vector.broadcast %209 : vector<64x1xf32> to vector<64x128xf32>
    %213 = arith.mulf %212, %211 : vector<64x128xf32>
    %214 = arith.mulf %208, %208 : vector<64x128xf32>
    %cst_32 = arith.constant -5.000000e-01 : f32
    %215 = vector.broadcast %cst_32 : f32 to vector<64x128xf32>
    %216 = arith.mulf %215, %214 : vector<64x128xf32>
    %217 = math.exp %216 : vector<64x128xf32>
    %218 = arith.mulf %213, %217 : vector<64x128xf32>
    %219 = arith.addf %200, %218 : vector<64x128xf32>
    %220 = vector.extract_strided_slice %6 {offsets = [11, 0], sizes = [1, 128], strides = [1, 1]} : vector<32x128xf32> to vector<1x128xf32>
    %221 = vector.extract_strided_slice %8 {offsets = [0, 11], sizes = [64, 1], strides = [1, 1]} : vector<64x32xf32> to vector<64x1xf32>
    %222 = vector.broadcast %220 : vector<1x128xf32> to vector<64x128xf32>
    %223 = vector.broadcast %221 : vector<64x1xf32> to vector<64x128xf32>
    %224 = arith.subf %222, %223 : vector<64x128xf32>
    %225 = vector.extract_strided_slice %7 {offsets = [0, 11], sizes = [64, 1], strides = [1, 1]} : vector<64x32xf32> to vector<64x1xf32>
    %226 = vector.broadcast %225 : vector<64x1xf32> to vector<64x128xf32>
    %227 = arith.mulf %224, %226 : vector<64x128xf32>
    %228 = vector.extract_strided_slice %9 {offsets = [0, 11], sizes = [64, 1], strides = [1, 1]} : vector<64x32xf32> to vector<64x1xf32>
    %cst_33 = arith.constant 0.000000e+00 : f32
    %229 = vector.broadcast %cst_33 : f32 to vector<64x128xf32>
    %230 = arith.subf %229, %227 : vector<64x128xf32>
    %231 = vector.broadcast %228 : vector<64x1xf32> to vector<64x128xf32>
    %232 = arith.mulf %231, %230 : vector<64x128xf32>
    %233 = arith.mulf %227, %227 : vector<64x128xf32>
    %cst_34 = arith.constant -5.000000e-01 : f32
    %234 = vector.broadcast %cst_34 : f32 to vector<64x128xf32>
    %235 = arith.mulf %234, %233 : vector<64x128xf32>
    %236 = math.exp %235 : vector<64x128xf32>
    %237 = arith.mulf %232, %236 : vector<64x128xf32>
    %238 = arith.addf %219, %237 : vector<64x128xf32>
    %239 = vector.extract_strided_slice %6 {offsets = [12, 0], sizes = [1, 128], strides = [1, 1]} : vector<32x128xf32> to vector<1x128xf32>
    %240 = vector.extract_strided_slice %8 {offsets = [0, 12], sizes = [64, 1], strides = [1, 1]} : vector<64x32xf32> to vector<64x1xf32>
    %241 = vector.broadcast %239 : vector<1x128xf32> to vector<64x128xf32>
    %242 = vector.broadcast %240 : vector<64x1xf32> to vector<64x128xf32>
    %243 = arith.subf %241, %242 : vector<64x128xf32>
    %244 = vector.extract_strided_slice %7 {offsets = [0, 12], sizes = [64, 1], strides = [1, 1]} : vector<64x32xf32> to vector<64x1xf32>
    %245 = vector.broadcast %244 : vector<64x1xf32> to vector<64x128xf32>
    %246 = arith.mulf %243, %245 : vector<64x128xf32>
    %247 = vector.extract_strided_slice %9 {offsets = [0, 12], sizes = [64, 1], strides = [1, 1]} : vector<64x32xf32> to vector<64x1xf32>
    %cst_35 = arith.constant 0.000000e+00 : f32
    %248 = vector.broadcast %cst_35 : f32 to vector<64x128xf32>
    %249 = arith.subf %248, %246 : vector<64x128xf32>
    %250 = vector.broadcast %247 : vector<64x1xf32> to vector<64x128xf32>
    %251 = arith.mulf %250, %249 : vector<64x128xf32>
    %252 = arith.mulf %246, %246 : vector<64x128xf32>
    %cst_36 = arith.constant -5.000000e-01 : f32
    %253 = vector.broadcast %cst_36 : f32 to vector<64x128xf32>
    %254 = arith.mulf %253, %252 : vector<64x128xf32>
    %255 = math.exp %254 : vector<64x128xf32>
    %256 = arith.mulf %251, %255 : vector<64x128xf32>
    %257 = arith.addf %238, %256 : vector<64x128xf32>
    %258 = vector.extract_strided_slice %6 {offsets = [13, 0], sizes = [1, 128], strides = [1, 1]} : vector<32x128xf32> to vector<1x128xf32>
    %259 = vector.extract_strided_slice %8 {offsets = [0, 13], sizes = [64, 1], strides = [1, 1]} : vector<64x32xf32> to vector<64x1xf32>
    %260 = vector.broadcast %258 : vector<1x128xf32> to vector<64x128xf32>
    %261 = vector.broadcast %259 : vector<64x1xf32> to vector<64x128xf32>
    %262 = arith.subf %260, %261 : vector<64x128xf32>
    %263 = vector.extract_strided_slice %7 {offsets = [0, 13], sizes = [64, 1], strides = [1, 1]} : vector<64x32xf32> to vector<64x1xf32>
    %264 = vector.broadcast %263 : vector<64x1xf32> to vector<64x128xf32>
    %265 = arith.mulf %262, %264 : vector<64x128xf32>
    %266 = vector.extract_strided_slice %9 {offsets = [0, 13], sizes = [64, 1], strides = [1, 1]} : vector<64x32xf32> to vector<64x1xf32>
    %cst_37 = arith.constant 0.000000e+00 : f32
    %267 = vector.broadcast %cst_37 : f32 to vector<64x128xf32>
    %268 = arith.subf %267, %265 : vector<64x128xf32>
    %269 = vector.broadcast %266 : vector<64x1xf32> to vector<64x128xf32>
    %270 = arith.mulf %269, %268 : vector<64x128xf32>
    %271 = arith.mulf %265, %265 : vector<64x128xf32>
    %cst_38 = arith.constant -5.000000e-01 : f32
    %272 = vector.broadcast %cst_38 : f32 to vector<64x128xf32>
    %273 = arith.mulf %272, %271 : vector<64x128xf32>
    %274 = math.exp %273 : vector<64x128xf32>
    %275 = arith.mulf %270, %274 : vector<64x128xf32>
    %276 = arith.addf %257, %275 : vector<64x128xf32>
    %277 = vector.extract_strided_slice %6 {offsets = [14, 0], sizes = [1, 128], strides = [1, 1]} : vector<32x128xf32> to vector<1x128xf32>
    %278 = vector.extract_strided_slice %8 {offsets = [0, 14], sizes = [64, 1], strides = [1, 1]} : vector<64x32xf32> to vector<64x1xf32>
    %279 = vector.broadcast %277 : vector<1x128xf32> to vector<64x128xf32>
    %280 = vector.broadcast %278 : vector<64x1xf32> to vector<64x128xf32>
    %281 = arith.subf %279, %280 : vector<64x128xf32>
    %282 = vector.extract_strided_slice %7 {offsets = [0, 14], sizes = [64, 1], strides = [1, 1]} : vector<64x32xf32> to vector<64x1xf32>
    %283 = vector.broadcast %282 : vector<64x1xf32> to vector<64x128xf32>
    %284 = arith.mulf %281, %283 : vector<64x128xf32>
    %285 = vector.extract_strided_slice %9 {offsets = [0, 14], sizes = [64, 1], strides = [1, 1]} : vector<64x32xf32> to vector<64x1xf32>
    %cst_39 = arith.constant 0.000000e+00 : f32
    %286 = vector.broadcast %cst_39 : f32 to vector<64x128xf32>
    %287 = arith.subf %286, %284 : vector<64x128xf32>
    %288 = vector.broadcast %285 : vector<64x1xf32> to vector<64x128xf32>
    %289 = arith.mulf %288, %287 : vector<64x128xf32>
    %290 = arith.mulf %284, %284 : vector<64x128xf32>
    %cst_40 = arith.constant -5.000000e-01 : f32
    %291 = vector.broadcast %cst_40 : f32 to vector<64x128xf32>
    %292 = arith.mulf %291, %290 : vector<64x128xf32>
    %293 = math.exp %292 : vector<64x128xf32>
    %294 = arith.mulf %289, %293 : vector<64x128xf32>
    %295 = arith.addf %276, %294 : vector<64x128xf32>
    %296 = vector.extract_strided_slice %6 {offsets = [15, 0], sizes = [1, 128], strides = [1, 1]} : vector<32x128xf32> to vector<1x128xf32>
    %297 = vector.extract_strided_slice %8 {offsets = [0, 15], sizes = [64, 1], strides = [1, 1]} : vector<64x32xf32> to vector<64x1xf32>
    %298 = vector.broadcast %296 : vector<1x128xf32> to vector<64x128xf32>
    %299 = vector.broadcast %297 : vector<64x1xf32> to vector<64x128xf32>
    %300 = arith.subf %298, %299 : vector<64x128xf32>
    %301 = vector.extract_strided_slice %7 {offsets = [0, 15], sizes = [64, 1], strides = [1, 1]} : vector<64x32xf32> to vector<64x1xf32>
    %302 = vector.broadcast %301 : vector<64x1xf32> to vector<64x128xf32>
    %303 = arith.mulf %300, %302 : vector<64x128xf32>
    %304 = vector.extract_strided_slice %9 {offsets = [0, 15], sizes = [64, 1], strides = [1, 1]} : vector<64x32xf32> to vector<64x1xf32>
    %cst_41 = arith.constant 0.000000e+00 : f32
    %305 = vector.broadcast %cst_41 : f32 to vector<64x128xf32>
    %306 = arith.subf %305, %303 : vector<64x128xf32>
    %307 = vector.broadcast %304 : vector<64x1xf32> to vector<64x128xf32>
    %308 = arith.mulf %307, %306 : vector<64x128xf32>
    %309 = arith.mulf %303, %303 : vector<64x128xf32>
    %cst_42 = arith.constant -5.000000e-01 : f32
    %310 = vector.broadcast %cst_42 : f32 to vector<64x128xf32>
    %311 = arith.mulf %310, %309 : vector<64x128xf32>
    %312 = math.exp %311 : vector<64x128xf32>
    %313 = arith.mulf %308, %312 : vector<64x128xf32>
    %314 = arith.addf %295, %313 : vector<64x128xf32>
    %315 = vector.extract_strided_slice %6 {offsets = [16, 0], sizes = [1, 128], strides = [1, 1]} : vector<32x128xf32> to vector<1x128xf32>
    %316 = vector.extract_strided_slice %8 {offsets = [0, 16], sizes = [64, 1], strides = [1, 1]} : vector<64x32xf32> to vector<64x1xf32>
    %317 = vector.broadcast %315 : vector<1x128xf32> to vector<64x128xf32>
    %318 = vector.broadcast %316 : vector<64x1xf32> to vector<64x128xf32>
    %319 = arith.subf %317, %318 : vector<64x128xf32>
    %320 = vector.extract_strided_slice %7 {offsets = [0, 16], sizes = [64, 1], strides = [1, 1]} : vector<64x32xf32> to vector<64x1xf32>
    %321 = vector.broadcast %320 : vector<64x1xf32> to vector<64x128xf32>
    %322 = arith.mulf %319, %321 : vector<64x128xf32>
    %323 = vector.extract_strided_slice %9 {offsets = [0, 16], sizes = [64, 1], strides = [1, 1]} : vector<64x32xf32> to vector<64x1xf32>
    %cst_43 = arith.constant 0.000000e+00 : f32
    %324 = vector.broadcast %cst_43 : f32 to vector<64x128xf32>
    %325 = arith.subf %324, %322 : vector<64x128xf32>
    %326 = vector.broadcast %323 : vector<64x1xf32> to vector<64x128xf32>
    %327 = arith.mulf %326, %325 : vector<64x128xf32>
    %328 = arith.mulf %322, %322 : vector<64x128xf32>
    %cst_44 = arith.constant -5.000000e-01 : f32
    %329 = vector.broadcast %cst_44 : f32 to vector<64x128xf32>
    %330 = arith.mulf %329, %328 : vector<64x128xf32>
    %331 = math.exp %330 : vector<64x128xf32>
    %332 = arith.mulf %327, %331 : vector<64x128xf32>
    %333 = arith.addf %314, %332 : vector<64x128xf32>
    %334 = vector.extract_strided_slice %6 {offsets = [17, 0], sizes = [1, 128], strides = [1, 1]} : vector<32x128xf32> to vector<1x128xf32>
    %335 = vector.extract_strided_slice %8 {offsets = [0, 17], sizes = [64, 1], strides = [1, 1]} : vector<64x32xf32> to vector<64x1xf32>
    %336 = vector.broadcast %334 : vector<1x128xf32> to vector<64x128xf32>
    %337 = vector.broadcast %335 : vector<64x1xf32> to vector<64x128xf32>
    %338 = arith.subf %336, %337 : vector<64x128xf32>
    %339 = vector.extract_strided_slice %7 {offsets = [0, 17], sizes = [64, 1], strides = [1, 1]} : vector<64x32xf32> to vector<64x1xf32>
    %340 = vector.broadcast %339 : vector<64x1xf32> to vector<64x128xf32>
    %341 = arith.mulf %338, %340 : vector<64x128xf32>
    %342 = vector.extract_strided_slice %9 {offsets = [0, 17], sizes = [64, 1], strides = [1, 1]} : vector<64x32xf32> to vector<64x1xf32>
    %cst_45 = arith.constant 0.000000e+00 : f32
    %343 = vector.broadcast %cst_45 : f32 to vector<64x128xf32>
    %344 = arith.subf %343, %341 : vector<64x128xf32>
    %345 = vector.broadcast %342 : vector<64x1xf32> to vector<64x128xf32>
    %346 = arith.mulf %345, %344 : vector<64x128xf32>
    %347 = arith.mulf %341, %341 : vector<64x128xf32>
    %cst_46 = arith.constant -5.000000e-01 : f32
    %348 = vector.broadcast %cst_46 : f32 to vector<64x128xf32>
    %349 = arith.mulf %348, %347 : vector<64x128xf32>
    %350 = math.exp %349 : vector<64x128xf32>
    %351 = arith.mulf %346, %350 : vector<64x128xf32>
    %352 = arith.addf %333, %351 : vector<64x128xf32>
    %353 = vector.extract_strided_slice %6 {offsets = [18, 0], sizes = [1, 128], strides = [1, 1]} : vector<32x128xf32> to vector<1x128xf32>
    %354 = vector.extract_strided_slice %8 {offsets = [0, 18], sizes = [64, 1], strides = [1, 1]} : vector<64x32xf32> to vector<64x1xf32>
    %355 = vector.broadcast %353 : vector<1x128xf32> to vector<64x128xf32>
    %356 = vector.broadcast %354 : vector<64x1xf32> to vector<64x128xf32>
    %357 = arith.subf %355, %356 : vector<64x128xf32>
    %358 = vector.extract_strided_slice %7 {offsets = [0, 18], sizes = [64, 1], strides = [1, 1]} : vector<64x32xf32> to vector<64x1xf32>
    %359 = vector.broadcast %358 : vector<64x1xf32> to vector<64x128xf32>
    %360 = arith.mulf %357, %359 : vector<64x128xf32>
    %361 = vector.extract_strided_slice %9 {offsets = [0, 18], sizes = [64, 1], strides = [1, 1]} : vector<64x32xf32> to vector<64x1xf32>
    %cst_47 = arith.constant 0.000000e+00 : f32
    %362 = vector.broadcast %cst_47 : f32 to vector<64x128xf32>
    %363 = arith.subf %362, %360 : vector<64x128xf32>
    %364 = vector.broadcast %361 : vector<64x1xf32> to vector<64x128xf32>
    %365 = arith.mulf %364, %363 : vector<64x128xf32>
    %366 = arith.mulf %360, %360 : vector<64x128xf32>
    %cst_48 = arith.constant -5.000000e-01 : f32
    %367 = vector.broadcast %cst_48 : f32 to vector<64x128xf32>
    %368 = arith.mulf %367, %366 : vector<64x128xf32>
    %369 = math.exp %368 : vector<64x128xf32>
    %370 = arith.mulf %365, %369 : vector<64x128xf32>
    %371 = arith.addf %352, %370 : vector<64x128xf32>
    %372 = vector.extract_strided_slice %6 {offsets = [19, 0], sizes = [1, 128], strides = [1, 1]} : vector<32x128xf32> to vector<1x128xf32>
    %373 = vector.extract_strided_slice %8 {offsets = [0, 19], sizes = [64, 1], strides = [1, 1]} : vector<64x32xf32> to vector<64x1xf32>
    %374 = vector.broadcast %372 : vector<1x128xf32> to vector<64x128xf32>
    %375 = vector.broadcast %373 : vector<64x1xf32> to vector<64x128xf32>
    %376 = arith.subf %374, %375 : vector<64x128xf32>
    %377 = vector.extract_strided_slice %7 {offsets = [0, 19], sizes = [64, 1], strides = [1, 1]} : vector<64x32xf32> to vector<64x1xf32>
    %378 = vector.broadcast %377 : vector<64x1xf32> to vector<64x128xf32>
    %379 = arith.mulf %376, %378 : vector<64x128xf32>
    %380 = vector.extract_strided_slice %9 {offsets = [0, 19], sizes = [64, 1], strides = [1, 1]} : vector<64x32xf32> to vector<64x1xf32>
    %cst_49 = arith.constant 0.000000e+00 : f32
    %381 = vector.broadcast %cst_49 : f32 to vector<64x128xf32>
    %382 = arith.subf %381, %379 : vector<64x128xf32>
    %383 = vector.broadcast %380 : vector<64x1xf32> to vector<64x128xf32>
    %384 = arith.mulf %383, %382 : vector<64x128xf32>
    %385 = arith.mulf %379, %379 : vector<64x128xf32>
    %cst_50 = arith.constant -5.000000e-01 : f32
    %386 = vector.broadcast %cst_50 : f32 to vector<64x128xf32>
    %387 = arith.mulf %386, %385 : vector<64x128xf32>
    %388 = math.exp %387 : vector<64x128xf32>
    %389 = arith.mulf %384, %388 : vector<64x128xf32>
    %390 = arith.addf %371, %389 : vector<64x128xf32>
    %391 = vector.extract_strided_slice %6 {offsets = [20, 0], sizes = [1, 128], strides = [1, 1]} : vector<32x128xf32> to vector<1x128xf32>
    %392 = vector.extract_strided_slice %8 {offsets = [0, 20], sizes = [64, 1], strides = [1, 1]} : vector<64x32xf32> to vector<64x1xf32>
    %393 = vector.broadcast %391 : vector<1x128xf32> to vector<64x128xf32>
    %394 = vector.broadcast %392 : vector<64x1xf32> to vector<64x128xf32>
    %395 = arith.subf %393, %394 : vector<64x128xf32>
    %396 = vector.extract_strided_slice %7 {offsets = [0, 20], sizes = [64, 1], strides = [1, 1]} : vector<64x32xf32> to vector<64x1xf32>
    %397 = vector.broadcast %396 : vector<64x1xf32> to vector<64x128xf32>
    %398 = arith.mulf %395, %397 : vector<64x128xf32>
    %399 = vector.extract_strided_slice %9 {offsets = [0, 20], sizes = [64, 1], strides = [1, 1]} : vector<64x32xf32> to vector<64x1xf32>
    %cst_51 = arith.constant 0.000000e+00 : f32
    %400 = vector.broadcast %cst_51 : f32 to vector<64x128xf32>
    %401 = arith.subf %400, %398 : vector<64x128xf32>
    %402 = vector.broadcast %399 : vector<64x1xf32> to vector<64x128xf32>
    %403 = arith.mulf %402, %401 : vector<64x128xf32>
    %404 = arith.mulf %398, %398 : vector<64x128xf32>
    %cst_52 = arith.constant -5.000000e-01 : f32
    %405 = vector.broadcast %cst_52 : f32 to vector<64x128xf32>
    %406 = arith.mulf %405, %404 : vector<64x128xf32>
    %407 = math.exp %406 : vector<64x128xf32>
    %408 = arith.mulf %403, %407 : vector<64x128xf32>
    %409 = arith.addf %390, %408 : vector<64x128xf32>
    %410 = vector.extract_strided_slice %6 {offsets = [21, 0], sizes = [1, 128], strides = [1, 1]} : vector<32x128xf32> to vector<1x128xf32>
    %411 = vector.extract_strided_slice %8 {offsets = [0, 21], sizes = [64, 1], strides = [1, 1]} : vector<64x32xf32> to vector<64x1xf32>
    %412 = vector.broadcast %410 : vector<1x128xf32> to vector<64x128xf32>
    %413 = vector.broadcast %411 : vector<64x1xf32> to vector<64x128xf32>
    %414 = arith.subf %412, %413 : vector<64x128xf32>
    %415 = vector.extract_strided_slice %7 {offsets = [0, 21], sizes = [64, 1], strides = [1, 1]} : vector<64x32xf32> to vector<64x1xf32>
    %416 = vector.broadcast %415 : vector<64x1xf32> to vector<64x128xf32>
    %417 = arith.mulf %414, %416 : vector<64x128xf32>
    %418 = vector.extract_strided_slice %9 {offsets = [0, 21], sizes = [64, 1], strides = [1, 1]} : vector<64x32xf32> to vector<64x1xf32>
    %cst_53 = arith.constant 0.000000e+00 : f32
    %419 = vector.broadcast %cst_53 : f32 to vector<64x128xf32>
    %420 = arith.subf %419, %417 : vector<64x128xf32>
    %421 = vector.broadcast %418 : vector<64x1xf32> to vector<64x128xf32>
    %422 = arith.mulf %421, %420 : vector<64x128xf32>
    %423 = arith.mulf %417, %417 : vector<64x128xf32>
    %cst_54 = arith.constant -5.000000e-01 : f32
    %424 = vector.broadcast %cst_54 : f32 to vector<64x128xf32>
    %425 = arith.mulf %424, %423 : vector<64x128xf32>
    %426 = math.exp %425 : vector<64x128xf32>
    %427 = arith.mulf %422, %426 : vector<64x128xf32>
    %428 = arith.addf %409, %427 : vector<64x128xf32>
    %429 = vector.extract_strided_slice %6 {offsets = [22, 0], sizes = [1, 128], strides = [1, 1]} : vector<32x128xf32> to vector<1x128xf32>
    %430 = vector.extract_strided_slice %8 {offsets = [0, 22], sizes = [64, 1], strides = [1, 1]} : vector<64x32xf32> to vector<64x1xf32>
    %431 = vector.broadcast %429 : vector<1x128xf32> to vector<64x128xf32>
    %432 = vector.broadcast %430 : vector<64x1xf32> to vector<64x128xf32>
    %433 = arith.subf %431, %432 : vector<64x128xf32>
    %434 = vector.extract_strided_slice %7 {offsets = [0, 22], sizes = [64, 1], strides = [1, 1]} : vector<64x32xf32> to vector<64x1xf32>
    %435 = vector.broadcast %434 : vector<64x1xf32> to vector<64x128xf32>
    %436 = arith.mulf %433, %435 : vector<64x128xf32>
    %437 = vector.extract_strided_slice %9 {offsets = [0, 22], sizes = [64, 1], strides = [1, 1]} : vector<64x32xf32> to vector<64x1xf32>
    %cst_55 = arith.constant 0.000000e+00 : f32
    %438 = vector.broadcast %cst_55 : f32 to vector<64x128xf32>
    %439 = arith.subf %438, %436 : vector<64x128xf32>
    %440 = vector.broadcast %437 : vector<64x1xf32> to vector<64x128xf32>
    %441 = arith.mulf %440, %439 : vector<64x128xf32>
    %442 = arith.mulf %436, %436 : vector<64x128xf32>
    %cst_56 = arith.constant -5.000000e-01 : f32
    %443 = vector.broadcast %cst_56 : f32 to vector<64x128xf32>
    %444 = arith.mulf %443, %442 : vector<64x128xf32>
    %445 = math.exp %444 : vector<64x128xf32>
    %446 = arith.mulf %441, %445 : vector<64x128xf32>
    %447 = arith.addf %428, %446 : vector<64x128xf32>
    %448 = vector.extract_strided_slice %6 {offsets = [23, 0], sizes = [1, 128], strides = [1, 1]} : vector<32x128xf32> to vector<1x128xf32>
    %449 = vector.extract_strided_slice %8 {offsets = [0, 23], sizes = [64, 1], strides = [1, 1]} : vector<64x32xf32> to vector<64x1xf32>
    %450 = vector.broadcast %448 : vector<1x128xf32> to vector<64x128xf32>
    %451 = vector.broadcast %449 : vector<64x1xf32> to vector<64x128xf32>
    %452 = arith.subf %450, %451 : vector<64x128xf32>
    %453 = vector.extract_strided_slice %7 {offsets = [0, 23], sizes = [64, 1], strides = [1, 1]} : vector<64x32xf32> to vector<64x1xf32>
    %454 = vector.broadcast %453 : vector<64x1xf32> to vector<64x128xf32>
    %455 = arith.mulf %452, %454 : vector<64x128xf32>
    %456 = vector.extract_strided_slice %9 {offsets = [0, 23], sizes = [64, 1], strides = [1, 1]} : vector<64x32xf32> to vector<64x1xf32>
    %cst_57 = arith.constant 0.000000e+00 : f32
    %457 = vector.broadcast %cst_57 : f32 to vector<64x128xf32>
    %458 = arith.subf %457, %455 : vector<64x128xf32>
    %459 = vector.broadcast %456 : vector<64x1xf32> to vector<64x128xf32>
    %460 = arith.mulf %459, %458 : vector<64x128xf32>
    %461 = arith.mulf %455, %455 : vector<64x128xf32>
    %cst_58 = arith.constant -5.000000e-01 : f32
    %462 = vector.broadcast %cst_58 : f32 to vector<64x128xf32>
    %463 = arith.mulf %462, %461 : vector<64x128xf32>
    %464 = math.exp %463 : vector<64x128xf32>
    %465 = arith.mulf %460, %464 : vector<64x128xf32>
    %466 = arith.addf %447, %465 : vector<64x128xf32>
    %467 = vector.extract_strided_slice %6 {offsets = [24, 0], sizes = [1, 128], strides = [1, 1]} : vector<32x128xf32> to vector<1x128xf32>
    %468 = vector.extract_strided_slice %8 {offsets = [0, 24], sizes = [64, 1], strides = [1, 1]} : vector<64x32xf32> to vector<64x1xf32>
    %469 = vector.broadcast %467 : vector<1x128xf32> to vector<64x128xf32>
    %470 = vector.broadcast %468 : vector<64x1xf32> to vector<64x128xf32>
    %471 = arith.subf %469, %470 : vector<64x128xf32>
    %472 = vector.extract_strided_slice %7 {offsets = [0, 24], sizes = [64, 1], strides = [1, 1]} : vector<64x32xf32> to vector<64x1xf32>
    %473 = vector.broadcast %472 : vector<64x1xf32> to vector<64x128xf32>
    %474 = arith.mulf %471, %473 : vector<64x128xf32>
    %475 = vector.extract_strided_slice %9 {offsets = [0, 24], sizes = [64, 1], strides = [1, 1]} : vector<64x32xf32> to vector<64x1xf32>
    %cst_59 = arith.constant 0.000000e+00 : f32
    %476 = vector.broadcast %cst_59 : f32 to vector<64x128xf32>
    %477 = arith.subf %476, %474 : vector<64x128xf32>
    %478 = vector.broadcast %475 : vector<64x1xf32> to vector<64x128xf32>
    %479 = arith.mulf %478, %477 : vector<64x128xf32>
    %480 = arith.mulf %474, %474 : vector<64x128xf32>
    %cst_60 = arith.constant -5.000000e-01 : f32
    %481 = vector.broadcast %cst_60 : f32 to vector<64x128xf32>
    %482 = arith.mulf %481, %480 : vector<64x128xf32>
    %483 = math.exp %482 : vector<64x128xf32>
    %484 = arith.mulf %479, %483 : vector<64x128xf32>
    %485 = arith.addf %466, %484 : vector<64x128xf32>
    %486 = vector.extract_strided_slice %6 {offsets = [25, 0], sizes = [1, 128], strides = [1, 1]} : vector<32x128xf32> to vector<1x128xf32>
    %487 = vector.extract_strided_slice %8 {offsets = [0, 25], sizes = [64, 1], strides = [1, 1]} : vector<64x32xf32> to vector<64x1xf32>
    %488 = vector.broadcast %486 : vector<1x128xf32> to vector<64x128xf32>
    %489 = vector.broadcast %487 : vector<64x1xf32> to vector<64x128xf32>
    %490 = arith.subf %488, %489 : vector<64x128xf32>
    %491 = vector.extract_strided_slice %7 {offsets = [0, 25], sizes = [64, 1], strides = [1, 1]} : vector<64x32xf32> to vector<64x1xf32>
    %492 = vector.broadcast %491 : vector<64x1xf32> to vector<64x128xf32>
    %493 = arith.mulf %490, %492 : vector<64x128xf32>
    %494 = vector.extract_strided_slice %9 {offsets = [0, 25], sizes = [64, 1], strides = [1, 1]} : vector<64x32xf32> to vector<64x1xf32>
    %cst_61 = arith.constant 0.000000e+00 : f32
    %495 = vector.broadcast %cst_61 : f32 to vector<64x128xf32>
    %496 = arith.subf %495, %493 : vector<64x128xf32>
    %497 = vector.broadcast %494 : vector<64x1xf32> to vector<64x128xf32>
    %498 = arith.mulf %497, %496 : vector<64x128xf32>
    %499 = arith.mulf %493, %493 : vector<64x128xf32>
    %cst_62 = arith.constant -5.000000e-01 : f32
    %500 = vector.broadcast %cst_62 : f32 to vector<64x128xf32>
    %501 = arith.mulf %500, %499 : vector<64x128xf32>
    %502 = math.exp %501 : vector<64x128xf32>
    %503 = arith.mulf %498, %502 : vector<64x128xf32>
    %504 = arith.addf %485, %503 : vector<64x128xf32>
    %505 = vector.extract_strided_slice %6 {offsets = [26, 0], sizes = [1, 128], strides = [1, 1]} : vector<32x128xf32> to vector<1x128xf32>
    %506 = vector.extract_strided_slice %8 {offsets = [0, 26], sizes = [64, 1], strides = [1, 1]} : vector<64x32xf32> to vector<64x1xf32>
    %507 = vector.broadcast %505 : vector<1x128xf32> to vector<64x128xf32>
    %508 = vector.broadcast %506 : vector<64x1xf32> to vector<64x128xf32>
    %509 = arith.subf %507, %508 : vector<64x128xf32>
    %510 = vector.extract_strided_slice %7 {offsets = [0, 26], sizes = [64, 1], strides = [1, 1]} : vector<64x32xf32> to vector<64x1xf32>
    %511 = vector.broadcast %510 : vector<64x1xf32> to vector<64x128xf32>
    %512 = arith.mulf %509, %511 : vector<64x128xf32>
    %513 = vector.extract_strided_slice %9 {offsets = [0, 26], sizes = [64, 1], strides = [1, 1]} : vector<64x32xf32> to vector<64x1xf32>
    %cst_63 = arith.constant 0.000000e+00 : f32
    %514 = vector.broadcast %cst_63 : f32 to vector<64x128xf32>
    %515 = arith.subf %514, %512 : vector<64x128xf32>
    %516 = vector.broadcast %513 : vector<64x1xf32> to vector<64x128xf32>
    %517 = arith.mulf %516, %515 : vector<64x128xf32>
    %518 = arith.mulf %512, %512 : vector<64x128xf32>
    %cst_64 = arith.constant -5.000000e-01 : f32
    %519 = vector.broadcast %cst_64 : f32 to vector<64x128xf32>
    %520 = arith.mulf %519, %518 : vector<64x128xf32>
    %521 = math.exp %520 : vector<64x128xf32>
    %522 = arith.mulf %517, %521 : vector<64x128xf32>
    %523 = arith.addf %504, %522 : vector<64x128xf32>
    %524 = vector.extract_strided_slice %6 {offsets = [27, 0], sizes = [1, 128], strides = [1, 1]} : vector<32x128xf32> to vector<1x128xf32>
    %525 = vector.extract_strided_slice %8 {offsets = [0, 27], sizes = [64, 1], strides = [1, 1]} : vector<64x32xf32> to vector<64x1xf32>
    %526 = vector.broadcast %524 : vector<1x128xf32> to vector<64x128xf32>
    %527 = vector.broadcast %525 : vector<64x1xf32> to vector<64x128xf32>
    %528 = arith.subf %526, %527 : vector<64x128xf32>
    %529 = vector.extract_strided_slice %7 {offsets = [0, 27], sizes = [64, 1], strides = [1, 1]} : vector<64x32xf32> to vector<64x1xf32>
    %530 = vector.broadcast %529 : vector<64x1xf32> to vector<64x128xf32>
    %531 = arith.mulf %528, %530 : vector<64x128xf32>
    %532 = vector.extract_strided_slice %9 {offsets = [0, 27], sizes = [64, 1], strides = [1, 1]} : vector<64x32xf32> to vector<64x1xf32>
    %cst_65 = arith.constant 0.000000e+00 : f32
    %533 = vector.broadcast %cst_65 : f32 to vector<64x128xf32>
    %534 = arith.subf %533, %531 : vector<64x128xf32>
    %535 = vector.broadcast %532 : vector<64x1xf32> to vector<64x128xf32>
    %536 = arith.mulf %535, %534 : vector<64x128xf32>
    %537 = arith.mulf %531, %531 : vector<64x128xf32>
    %cst_66 = arith.constant -5.000000e-01 : f32
    %538 = vector.broadcast %cst_66 : f32 to vector<64x128xf32>
    %539 = arith.mulf %538, %537 : vector<64x128xf32>
    %540 = math.exp %539 : vector<64x128xf32>
    %541 = arith.mulf %536, %540 : vector<64x128xf32>
    %542 = arith.addf %523, %541 : vector<64x128xf32>
    %543 = vector.extract_strided_slice %6 {offsets = [28, 0], sizes = [1, 128], strides = [1, 1]} : vector<32x128xf32> to vector<1x128xf32>
    %544 = vector.extract_strided_slice %8 {offsets = [0, 28], sizes = [64, 1], strides = [1, 1]} : vector<64x32xf32> to vector<64x1xf32>
    %545 = vector.broadcast %543 : vector<1x128xf32> to vector<64x128xf32>
    %546 = vector.broadcast %544 : vector<64x1xf32> to vector<64x128xf32>
    %547 = arith.subf %545, %546 : vector<64x128xf32>
    %548 = vector.extract_strided_slice %7 {offsets = [0, 28], sizes = [64, 1], strides = [1, 1]} : vector<64x32xf32> to vector<64x1xf32>
    %549 = vector.broadcast %548 : vector<64x1xf32> to vector<64x128xf32>
    %550 = arith.mulf %547, %549 : vector<64x128xf32>
    %551 = vector.extract_strided_slice %9 {offsets = [0, 28], sizes = [64, 1], strides = [1, 1]} : vector<64x32xf32> to vector<64x1xf32>
    %cst_67 = arith.constant 0.000000e+00 : f32
    %552 = vector.broadcast %cst_67 : f32 to vector<64x128xf32>
    %553 = arith.subf %552, %550 : vector<64x128xf32>
    %554 = vector.broadcast %551 : vector<64x1xf32> to vector<64x128xf32>
    %555 = arith.mulf %554, %553 : vector<64x128xf32>
    %556 = arith.mulf %550, %550 : vector<64x128xf32>
    %cst_68 = arith.constant -5.000000e-01 : f32
    %557 = vector.broadcast %cst_68 : f32 to vector<64x128xf32>
    %558 = arith.mulf %557, %556 : vector<64x128xf32>
    %559 = math.exp %558 : vector<64x128xf32>
    %560 = arith.mulf %555, %559 : vector<64x128xf32>
    %561 = arith.addf %542, %560 : vector<64x128xf32>
    %562 = vector.extract_strided_slice %6 {offsets = [29, 0], sizes = [1, 128], strides = [1, 1]} : vector<32x128xf32> to vector<1x128xf32>
    %563 = vector.extract_strided_slice %8 {offsets = [0, 29], sizes = [64, 1], strides = [1, 1]} : vector<64x32xf32> to vector<64x1xf32>
    %564 = vector.broadcast %562 : vector<1x128xf32> to vector<64x128xf32>
    %565 = vector.broadcast %563 : vector<64x1xf32> to vector<64x128xf32>
    %566 = arith.subf %564, %565 : vector<64x128xf32>
    %567 = vector.extract_strided_slice %7 {offsets = [0, 29], sizes = [64, 1], strides = [1, 1]} : vector<64x32xf32> to vector<64x1xf32>
    %568 = vector.broadcast %567 : vector<64x1xf32> to vector<64x128xf32>
    %569 = arith.mulf %566, %568 : vector<64x128xf32>
    %570 = vector.extract_strided_slice %9 {offsets = [0, 29], sizes = [64, 1], strides = [1, 1]} : vector<64x32xf32> to vector<64x1xf32>
    %cst_69 = arith.constant 0.000000e+00 : f32
    %571 = vector.broadcast %cst_69 : f32 to vector<64x128xf32>
    %572 = arith.subf %571, %569 : vector<64x128xf32>
    %573 = vector.broadcast %570 : vector<64x1xf32> to vector<64x128xf32>
    %574 = arith.mulf %573, %572 : vector<64x128xf32>
    %575 = arith.mulf %569, %569 : vector<64x128xf32>
    %cst_70 = arith.constant -5.000000e-01 : f32
    %576 = vector.broadcast %cst_70 : f32 to vector<64x128xf32>
    %577 = arith.mulf %576, %575 : vector<64x128xf32>
    %578 = math.exp %577 : vector<64x128xf32>
    %579 = arith.mulf %574, %578 : vector<64x128xf32>
    %580 = arith.addf %561, %579 : vector<64x128xf32>
    %581 = vector.extract_strided_slice %6 {offsets = [30, 0], sizes = [1, 128], strides = [1, 1]} : vector<32x128xf32> to vector<1x128xf32>
    %582 = vector.extract_strided_slice %8 {offsets = [0, 30], sizes = [64, 1], strides = [1, 1]} : vector<64x32xf32> to vector<64x1xf32>
    %583 = vector.broadcast %581 : vector<1x128xf32> to vector<64x128xf32>
    %584 = vector.broadcast %582 : vector<64x1xf32> to vector<64x128xf32>
    %585 = arith.subf %583, %584 : vector<64x128xf32>
    %586 = vector.extract_strided_slice %7 {offsets = [0, 30], sizes = [64, 1], strides = [1, 1]} : vector<64x32xf32> to vector<64x1xf32>
    %587 = vector.broadcast %586 : vector<64x1xf32> to vector<64x128xf32>
    %588 = arith.mulf %585, %587 : vector<64x128xf32>
    %589 = vector.extract_strided_slice %9 {offsets = [0, 30], sizes = [64, 1], strides = [1, 1]} : vector<64x32xf32> to vector<64x1xf32>
    %cst_71 = arith.constant 0.000000e+00 : f32
    %590 = vector.broadcast %cst_71 : f32 to vector<64x128xf32>
    %591 = arith.subf %590, %588 : vector<64x128xf32>
    %592 = vector.broadcast %589 : vector<64x1xf32> to vector<64x128xf32>
    %593 = arith.mulf %592, %591 : vector<64x128xf32>
    %594 = arith.mulf %588, %588 : vector<64x128xf32>
    %cst_72 = arith.constant -5.000000e-01 : f32
    %595 = vector.broadcast %cst_72 : f32 to vector<64x128xf32>
    %596 = arith.mulf %595, %594 : vector<64x128xf32>
    %597 = math.exp %596 : vector<64x128xf32>
    %598 = arith.mulf %593, %597 : vector<64x128xf32>
    %599 = arith.addf %580, %598 : vector<64x128xf32>
    %600 = vector.extract_strided_slice %6 {offsets = [31, 0], sizes = [1, 128], strides = [1, 1]} : vector<32x128xf32> to vector<1x128xf32>
    %601 = vector.extract_strided_slice %8 {offsets = [0, 31], sizes = [64, 1], strides = [1, 1]} : vector<64x32xf32> to vector<64x1xf32>
    %602 = vector.broadcast %600 : vector<1x128xf32> to vector<64x128xf32>
    %603 = vector.broadcast %601 : vector<64x1xf32> to vector<64x128xf32>
    %604 = arith.subf %602, %603 : vector<64x128xf32>
    %605 = vector.extract_strided_slice %7 {offsets = [0, 31], sizes = [64, 1], strides = [1, 1]} : vector<64x32xf32> to vector<64x1xf32>
    %606 = vector.broadcast %605 : vector<64x1xf32> to vector<64x128xf32>
    %607 = arith.mulf %604, %606 : vector<64x128xf32>
    %608 = vector.extract_strided_slice %9 {offsets = [0, 31], sizes = [64, 1], strides = [1, 1]} : vector<64x32xf32> to vector<64x1xf32>
    %cst_73 = arith.constant 0.000000e+00 : f32
    %609 = vector.broadcast %cst_73 : f32 to vector<64x128xf32>
    %610 = arith.subf %609, %607 : vector<64x128xf32>
    %611 = vector.broadcast %608 : vector<64x1xf32> to vector<64x128xf32>
    %612 = arith.mulf %611, %610 : vector<64x128xf32>
    %613 = arith.mulf %607, %607 : vector<64x128xf32>
    %cst_74 = arith.constant -5.000000e-01 : f32
    %614 = vector.broadcast %cst_74 : f32 to vector<64x128xf32>
    %615 = arith.mulf %614, %613 : vector<64x128xf32>
    %616 = math.exp %615 : vector<64x128xf32>
    %617 = arith.mulf %612, %616 : vector<64x128xf32>
    %618 = arith.addf %599, %617 : vector<64x128xf32>
    %c0_75 = arith.constant 0 : index
    %c0_76 = arith.constant 0 : index
    %619 = vector.load %arg7[%c0_75, %c0_76] : memref<64x128xf32, #tpu.memory_space<vmem>>, vector<64x128xf32>
    tpu.vector_store %arg7[%c0_75, %c0_76], %618 {strides = array<i32>} : memref<64x128xf32, #tpu.memory_space<vmem>>, vector<64x128xf32>,
    return
  }
  func.func @transform_0(%arg0: i32) -> (i32, i32) {
    %c0_i32 = arith.constant 0 : i32
    %c0_i32_0 = arith.constant 0 : i32
    return %c0_i32, %arg0 : i32, i32
  }
  func.func @transform_1(%arg0: i32) -> (i32, i32) {
    %c0_i32 = arith.constant 0 : i32
    %c0_i32_0 = arith.constant 0 : i32
    %c0_i32_1 = arith.constant 0 : i32
    return %c0_i32, %c0_i32_0 : i32, i32
  }
  func.func @transform_2(%arg0: i32) -> (i32, i32) {
    %c0_i32 = arith.constant 0 : i32
    %c0_i32_0 = arith.constant 0 : i32
    %c0_i32_1 = arith.constant 0 : i32
    return %c0_i32, %c0_i32_0 : i32, i32
  }
  func.func @transform_3(%arg0: i32) -> (i32, i32) {
    %c0_i32 = arith.constant 0 : i32
    %c0_i32_0 = arith.constant 0 : i32
    %c0_i32_1 = arith.constant 0 : i32
    return %c0_i32, %c0_i32_0 : i32, i32
  }
  func.func @transform_4(%arg0: i32) -> (i32, i32) {
    %c0_i32 = arith.constant 0 : i32
    %c0_i32_0 = arith.constant 0 : i32
    %c0_i32_1 = arith.constant 0 : i32
    return %c0_i32, %c0_i32_0 : i32, i32
  }
  func.func @transform_5(%arg0: i32) -> (i32, i32) {
    %c0_i32 = arith.constant 0 : i32
    %c0_i32_0 = arith.constant 0 : i32
    %c0_i32_1 = arith.constant 0 : i32
    return %c0_i32, %c0_i32_0 : i32, i32
  }
  func.func @transform_6(%arg0: i32) -> (i32, i32) {
    %c0_i32 = arith.constant 0 : i32
    %c0_i32_0 = arith.constant 0 : i32
    return %c0_i32, %arg0 : i32, i32
  }
}

</mosaic_0001>

<llo_original>
// kernel: tpu_custom_call.1
$region0: #{tpu_custom_call.1}
  #allocation0 [shape = 'u32[]', space=smem, size = 0x4, offset = 0x4, fixed_abs, tag = 'smem constant byte address 0x4 - core index']
  #allocation1 [shape = 'u32[144,128]{1,0:T(1,128)}', space=vmem, size = 0x12000, scoped, tag = 'internal scratch']
  %s0 = inlined_call_operand.vmem [shape: f32[32,256], index: 0, kind: input, shape index: {}]
  %s1 = inlined_call_operand.vmem [shape: f32[32,1], index: 1, kind: input, shape index: {}]
  %s2 = inlined_call_operand.vmem [shape: f32[32,1], index: 2, kind: input, shape index: {}]
  %s3 = inlined_call_operand.vmem [shape: f32[64,32], index: 3, kind: input, shape index: {}]
  %s4 = inlined_call_operand.vmem [shape: f32[64,32], index: 4, kind: input, shape index: {}]
  %s5 = inlined_call_operand.vmem [shape: f32[64,32], index: 5, kind: input, shape index: {}]
  %s6 = inlined_call_operand.hbm [shape: f32[64,256], index: 6, kind: output, shape index: {}]
  %s7 = sld [smem:[#allocation0]]
  $region95: #{tpu_custom_call.1} parent=0
    _
  %s9 = ssub.s32 1, %s7
  %s10 = scalar_select 0, %s9, %s7
  $region1: #{tpu_custom_call.1} parent=0
    #allocation2 [shape = 'u8[32768]{0}', space=vmem, size = 0x8000, scoped, tag = 'input window, operand 0']
    #allocation3 [shape = 'u8[65536]{0}', space=vmem, size = 0x10000, scoped, tag = 'output window, operand 0']
    #allocation4 [shape = 's32[2]{0}', space=sflag, size = 0x8, scoped, tag = 'scoped memory for tpu_custom_call.1']
    %11 = vsyncpa [#allocation4], 0
    %s12 = scalar_lea.sflag [#allocation4], 1
    %13 = vsyncpa %s12, 0
    loop: start=0, step=1, limit=4
    $region2: #{tpu_custom_call.1} parent=1 // loop_pre_header
      _
    $region3: #{tpu_custom_call.1} parent=1 // loop_header
      %s15 = sphi 0, %s19
      %p16 = scmp.ge.s32.totalorder %s15, 4
      %s25 = sphi 0, %s27
      %s28 = sphi 0, %s25
      %s29 = sphi 0, %s28
      %s45 = sphi 0, %s29
      %s49 = sphi 0, %s49
      %s51 = sphi 0, %s49
      %s52 = sphi 0, %s51
      %s66 = sphi 0, %s52
      %s70 = sphi 0, %s70
      %s72 = sphi 0, %s70
      %s73 = sphi 0, %s72
      %s87 = sphi 0, %s73
      %s91 = sphi 0, %s91
      %s93 = sphi 0, %s91
      %s94 = sphi 0, %s93
      %s108 = sphi 0, %s94
      %s112 = sphi 0, %s112
      %s114 = sphi 0, %s112
      %s115 = sphi 0, %s114
      %s129 = sphi 0, %s115
      %s133 = sphi 0, %s133
      %s135 = sphi 0, %s133
      %s136 = sphi 0, %s135
      %s150 = sphi 0, %s136
      %s156 = sphi 0, %s158
      %s159 = sphi 0, %s156
      %s160 = sphi 0, %s159
      %s176 = sphi 0, %s160
    $region4: #{tpu_custom_call.1} parent=1 // loop_header_branch
      %18 = sbr.rel (%p16) target = $region8
    $region5: #{tpu_custom_call.1} parent=1 // loop_body
      %s20 = ssub.s32 %s15, 1
      %s21 = ssub.s32 %s15, 2
      %s22 = sadd.s32 %s15, 1
      %s23 = ssub.s32 %s15, %s22
      %p24 = scmp.eq.s32.totalorder %s23, 0
      %s26 = sadd.s32 %s25, 1
      %s27 = scalar_select %p24, %s25, %s26
      %p30 = pneg %p24
      %p31 = scmp.eq.s32.totalorder %s15, 1
      %p32 = por %p30, %p31
      %p33 = scmp.ne.s32.totalorder %s25, %s28
      %p34 = scmp.eq.s32.totalorder %s15, 0
      %p35 = por %p33, %p34
      %p36 = scmp.ne.s32.totalorder %s25, %s28
      %p37 = scmp.eq.s32.totalorder %s20, 1
      %p38 = por %p36, %p37
      %p39 = scmp.ne.s32.totalorder %s28, %s29
      %p40 = scmp.eq.s32.totalorder %s20, 0
      %p41 = por %p39, %p40
      %p42 = scmp.ne.s32.totalorder %s28, %s29
      %p43 = scmp.eq.s32.totalorder %s21, 1
      %p44 = por %p42, %p43
      %p46 = scmp.ne.s32.totalorder %s29, %s45
      %p47 = scmp.eq.s32.totalorder %s21, 0
      %p48 = por %p46, %p47
      %s50 = sadd.s32 %s49, 1
      %p53 = scmp.eq.s32.totalorder %s15, 1
      %p54 = scmp.ne.s32.totalorder %s49, %s51
      %p55 = scmp.eq.s32.totalorder %s15, 0
      %p56 = por %p54, %p55
      %p57 = scmp.ne.s32.totalorder %s49, %s51
      %p58 = scmp.eq.s32.totalorder %s20, 1
      %p59 = por %p57, %p58
      %p60 = scmp.ne.s32.totalorder %s51, %s52
      %p61 = scmp.eq.s32.totalorder %s20, 0
      %p62 = por %p60, %p61
      %p63 = scmp.ne.s32.totalorder %s51, %s52
      %p64 = scmp.eq.s32.totalorder %s21, 1
      %p65 = por %p63, %p64
      %p67 = scmp.ne.s32.totalorder %s52, %s66
      %p68 = scmp.eq.s32.totalorder %s21, 0
      %p69 = por %p67, %p68
      %s71 = sadd.s32 %s70, 1
      %p74 = scmp.eq.s32.totalorder %s15, 1
      %p75 = scmp.ne.s32.totalorder %s70, %s72
      %p76 = scmp.eq.s32.totalorder %s15, 0
      %p77 = por %p75, %p76
      %p78 = scmp.ne.s32.totalorder %s70, %s72
      %p79 = scmp.eq.s32.totalorder %s20, 1
      %p80 = por %p78, %p79
      %p81 = scmp.ne.s32.totalorder %s72, %s73
      %p82 = scmp.eq.s32.totalorder %s20, 0
      %p83 = por %p81, %p82
      %p84 = scmp.ne.s32.totalorder %s72, %s73
      %p85 = scmp.eq.s32.totalorder %s21, 1
      %p86 = por %p84, %p85
      %p88 = scmp.ne.s32.totalorder %s73, %s87
      %p89 = scmp.eq.s32.totalorder %s21, 0
      %p90 = por %p88, %p89
      %s92 = sadd.s32 %s91, 1
      %p95 = scmp.eq.s32.totalorder %s15, 1
      %p96 = scmp.ne.s32.totalorder %s91, %s93
      %p97 = scmp.eq.s32.totalorder %s15, 0
      %p98 = por %p96, %p97
      %p99 = scmp.ne.s32.totalorder %s91, %s93
      %p100 = scmp.eq.s32.totalorder %s20, 1
      %p101 = por %p99, %p100
      %p102 = scmp.ne.s32.totalorder %s93, %s94
      %p103 = scmp.eq.s32.totalorder %s20, 0
      %p104 = por %p102, %p103
      %p105 = scmp.ne.s32.totalorder %s93, %s94
      %p106 = scmp.eq.s32.totalorder %s21, 1
      %p107 = por %p105, %p106
      %p109 = scmp.ne.s32.totalorder %s94, %s108
      %p110 = scmp.eq.s32.totalorder %s21, 0
      %p111 = por %p109, %p110
      %s113 = sadd.s32 %s112, 1
      %p116 = scmp.eq.s32.totalorder %s15, 1
      %p117 = scmp.ne.s32.totalorder %s112, %s114
      %p118 = scmp.eq.s32.totalorder %s15, 0
      %p119 = por %p117, %p118
      %p120 = scmp.ne.s32.totalorder %s112, %s114
      %p121 = scmp.eq.s32.totalorder %s20, 1
      %p122 = por %p120, %p121
      %p123 = scmp.ne.s32.totalorder %s114, %s115
      %p124 = scmp.eq.s32.totalorder %s20, 0
      %p125 = por %p123, %p124
      %p126 = scmp.ne.s32.totalorder %s114, %s115
      %p127 = scmp.eq.s32.totalorder %s21, 1
      %p128 = por %p126, %p127
      %p130 = scmp.ne.s32.totalorder %s115, %s129
      %p131 = scmp.eq.s32.totalorder %s21, 0
      %p132 = por %p130, %p131
      %s134 = sadd.s32 %s133, 1
      %p137 = scmp.eq.s32.totalorder %s15, 1
      %p138 = scmp.ne.s32.totalorder %s133, %s135
      %p139 = scmp.eq.s32.totalorder %s15, 0
      %p140 = por %p138, %p139
      %p141 = scmp.ne.s32.totalorder %s133, %s135
      %p142 = scmp.eq.s32.totalorder %s20, 1
      %p143 = por %p141, %p142
      %p144 = scmp.ne.s32.totalorder %s135, %s136
      %p145 = scmp.eq.s32.totalorder %s20, 0
      %p146 = por %p144, %p145
      %p147 = scmp.ne.s32.totalorder %s135, %s136
      %p148 = scmp.eq.s32.totalorder %s21, 1
      %p149 = por %p147, %p148
      %p151 = scmp.ne.s32.totalorder %s136, %s150
      %p152 = scmp.eq.s32.totalorder %s21, 0
      %p153 = por %p151, %p152
      %s154 = ssub.s32 %s15, %s22
      %p155 = scmp.eq.s32.totalorder %s154, 0
      %s157 = sadd.s32 %s156, 1
      %s158 = scalar_select %p155, %s156, %s157
      %p161 = pneg %p155
      %p162 = scmp.eq.s32.totalorder %s15, 1
      %p163 = por %p161, %p162
      %p164 = scmp.ne.s32.totalorder %s156, %s159
      %p165 = scmp.eq.s32.totalorder %s15, 0
      %p166 = por %p164, %p165
      %p167 = scmp.ne.s32.totalorder %s156, %s159
      %p168 = scmp.eq.s32.totalorder %s20, 1
      %p169 = por %p167, %p168
      %p170 = scmp.ne.s32.totalorder %s159, %s160
      %p171 = scmp.eq.s32.totalorder %s20, 0
      %p172 = por %p170, %p171
      %p173 = scmp.ne.s32.totalorder %s159, %s160
      %p174 = scmp.eq.s32.totalorder %s21, 1
      %p175 = por %p173, %p174
      %p177 = scmp.ne.s32.totalorder %s160, %s176
      %p178 = scmp.eq.s32.totalorder %s21, 0
      %p179 = por %p177, %p178
      %p180 = scmp.le.s32.totalorder 1, %s15
      %p181 = scmp.lt.s32.totalorder %s15, 3
      %p182 = pnand %p180, %p181
      %p183 = pneg %p182
      // Predicated region
      $region9: #{tpu_custom_call.1} parent=5 // pred_check
        _
      $region10: #{tpu_custom_call.1} parent=5 // pred_check_branch
        %185 = sbr.rel (%p182) target = $region12
      $region11: #{tpu_custom_call.1} parent=5 // pred_region
        %s186 = ssub.s32 %s15, 1
        // Predicated region
        $region13: #{tpu_custom_call.1} parent=11 // pred_check
          %p187 = pneg %p62
        $region14: #{tpu_custom_call.1} parent=11 // pred_check_branch
          %189 = sbr.rel (%p187) target = $region16
        $region15: #{tpu_custom_call.1} parent=11 // pred_region
          _
        $region16: #{tpu_custom_call.1} parent=11 // pred_fallthru
          _
        // Predicated region
        $region17: #{tpu_custom_call.1} parent=11 // pred_check
          %p190 = pneg %p83
        $region18: #{tpu_custom_call.1} parent=11 // pred_check_branch
          %192 = sbr.rel (%p190) target = $region20
        $region19: #{tpu_custom_call.1} parent=11 // pred_region
          _
        $region20: #{tpu_custom_call.1} parent=11 // pred_fallthru
          _
        // Predicated region
        $region21: #{tpu_custom_call.1} parent=11 // pred_check
          %p193 = pneg %p104
        $region22: #{tpu_custom_call.1} parent=11 // pred_check_branch
          %195 = sbr.rel (%p193) target = $region24
        $region23: #{tpu_custom_call.1} parent=11 // pred_region
          _
        $region24: #{tpu_custom_call.1} parent=11 // pred_fallthru
          _
        // Predicated region
        $region25: #{tpu_custom_call.1} parent=11 // pred_check
          %p196 = pneg %p125
        $region26: #{tpu_custom_call.1} parent=11 // pred_check_branch
          %198 = sbr.rel (%p196) target = $region28
        $region27: #{tpu_custom_call.1} parent=11 // pred_region
          _
        $region28: #{tpu_custom_call.1} parent=11 // pred_fallthru
          _
        // Predicated region
        $region29: #{tpu_custom_call.1} parent=11 // pred_check
          %p199 = pneg %p146
        $region30: #{tpu_custom_call.1} parent=11 // pred_check_branch
          %201 = sbr.rel (%p199) target = $region32
        $region31: #{tpu_custom_call.1} parent=11 // pred_region
          _
        $region32: #{tpu_custom_call.1} parent=11 // pred_fallthru
          _
      $region12: #{tpu_custom_call.1} parent=5 // pred_fallthru
        _
      %p202 = scmp.lt.s32.totalorder %s15, 2
      // Predicated region
      $region33: #{tpu_custom_call.1} parent=5 // pred_check
        %p203 = pneg %p202
      $region34: #{tpu_custom_call.1} parent=5 // pred_check_branch
        %205 = sbr.rel (%p203) target = $region36
      $region35: #{tpu_custom_call.1} parent=5 // pred_region
        // Predicated region
        $region37: #{tpu_custom_call.1} parent=35 // pred_check
          %p206 = pneg %p35
        $region38: #{tpu_custom_call.1} parent=35 // pred_check_branch
          %208 = sbr.rel (%p206) target = $region40
        $region39: #{tpu_custom_call.1} parent=35 // pred_region
          %s209 = sand.u32 %s25, 1
          %s210 = sand.u32 %s25, 1
          %s211 = smul.addr %s210, 32
          %s212 = scalar_lea.vmem [#allocation2], %s211
          %s213 = smul.addr %s15, 8
          %s214 = scalar_lea.vmem %s0, %s213
          // Predicated region
          $region41: #{tpu_custom_call.1} parent=39 // pred_check
            _
          $region42: #{tpu_custom_call.1} parent=39 // pred_check_branch
            %216 = sbr.rel (0) target = $region44
          $region43: #{tpu_custom_call.1} parent=39 // pred_region
            // Predicated region
            $region45: #{tpu_custom_call.1} parent=43 // pred_check
              _
            $region46: #{tpu_custom_call.1} parent=43 // pred_check_branch
              %218 = sbr.rel (0) target = $region48
            $region47: #{tpu_custom_call.1} parent=43 // pred_region
              // Predicated region
              $region60: #{tpu_custom_call.1} parent=47 // pred_check
                _
              $region61: #{tpu_custom_call.1} parent=47 // pred_check_branch
                %240 = sbr.rel (0) target = $region63
              $region62: #{tpu_custom_call.1} parent=47 // pred_region
                loop: start=0, step=1, limit=1
                $region64: #{tpu_custom_call.1} parent=62 // loop_pre_header
                  _
                $region65: #{tpu_custom_call.1} parent=62 // loop_header
                  %s242 = sphi 0, %s246
                  %p243 = scmp.ge.s32.totalorder %s242, 1
                  %s247 = sphi %s214, %s214
                  %s248 = sphi %s212, %s212
                $region66: #{tpu_custom_call.1} parent=62 // loop_header_branch
                  %245 = sbr.rel (%p243) target = $region70
                $region67: #{tpu_custom_call.1} parent=62 // loop_body
                  %v249 = vld [vmem:[%s247] sm:$0xff]
                  %250 = vst [vmem:[%s248] sm:$0xff] %v249
                  %v251 = vld [vmem:[%s247 + $0x10] sm:$0xff]
                  %252 = vst [vmem:[%s248 + $0x8] sm:$0xff] %v251
                  %v253 = vld [vmem:[%s247 + $0x20] sm:$0xff]
                  %254 = vst [vmem:[%s248 + $0x10] sm:$0xff] %v253
                  %v255 = vld [vmem:[%s247 + $0x30] sm:$0xff]
                  %256 = vst [vmem:[%s248 + $0x18] sm:$0xff] %v255
                $region68: #{tpu_custom_call.1} parent=62 // loop_footer
                  %s246 = sadd.s32 1, %s242
                $region69: #{tpu_custom_call.1} parent=62 // loop_footer_branch
                  %241 = sbr.rel target = $region65
                $region70: #{tpu_custom_call.1} parent=62 // loop_exit
                  _
              $region63: #{tpu_custom_call.1} parent=47 // pred_fallthru
                _
              // Predicated region
              $region71: #{tpu_custom_call.1} parent=47 // pred_check
                _
              $region72: #{tpu_custom_call.1} parent=47 // pred_check_branch
                %258 = sbr.rel target = $region74
              $region73: #{tpu_custom_call.1} parent=47 // pred_region
                _
              $region74: #{tpu_custom_call.1} parent=47 // pred_fallthru
                _
            $region48: #{tpu_custom_call.1} parent=43 // pred_fallthru
              _
            // Predicated region
            $region49: #{tpu_custom_call.1} parent=43 // pred_check
              _
            $region50: #{tpu_custom_call.1} parent=43 // pred_check_branch
              %220 = sbr.rel target = $region52
            $region51: #{tpu_custom_call.1} parent=43 // pred_region
              %s222 = ssub.s32 256, 1
              loop: start=0, step=1, limit=1
              $region53: #{tpu_custom_call.1} parent=51 // loop_pre_header
                _
              $region54: #{tpu_custom_call.1} parent=51 // loop_header
                %s224 = sphi 0, %s228
                %p225 = scmp.ge.s32.totalorder %s224, 1
                %s229 = sphi %s214, %s214
                %s230 = sphi %s212, %s212
              $region55: #{tpu_custom_call.1} parent=51 // loop_header_branch
                %227 = sbr.rel (%p225) target = $region59
              $region56: #{tpu_custom_call.1} parent=51 // loop_body
                %v231 = vld [vmem:[%s229] sm:%s222]
                %232 = vst [vmem:[%s230] sm:%s222] %v231
                %v233 = vld [vmem:[%s229 + $0x10] sm:%s222]
                %234 = vst [vmem:[%s230 + $0x8] sm:%s222] %v233
                %v235 = vld [vmem:[%s229 + $0x20] sm:%s222]
                %236 = vst [vmem:[%s230 + $0x10] sm:%s222] %v235
                %v237 = vld [vmem:[%s229 + $0x30] sm:%s222]
                %238 = vst [vmem:[%s230 + $0x18] sm:%s222] %v237
              $region57: #{tpu_custom_call.1} parent=51 // loop_footer
                %s228 = sadd.s32 1, %s224
              $region58: #{tpu_custom_call.1} parent=51 // loop_footer_branch
                %223 = sbr.rel target = $region54
              $region59: #{tpu_custom_call.1} parent=51 // loop_exit
                _
            $region52: #{tpu_custom_call.1} parent=43 // pred_fallthru
              _
          $region44: #{tpu_custom_call.1} parent=39 // pred_fallthru
            _
          %259 = vnop
        $region40: #{tpu_custom_call.1} parent=35 // pred_fallthru
          _
      $region36: #{tpu_custom_call.1} parent=5 // pred_fallthru
        _
      %p260 = scmp.le.s32.totalorder 1, %s15
      %p261 = scmp.lt.s32.totalorder %s15, 3
      %p262 = pnand %p260, %p261
      %p263 = pneg %p262
      // Predicated region
      $region75: #{tpu_custom_call.1} parent=5 // pred_check
        _
      $region76: #{tpu_custom_call.1} parent=5 // pred_check_branch
        %265 = sbr.rel (%p262) target = $region78
      $region77: #{tpu_custom_call.1} parent=5 // pred_region
        %s266 = ssub.s32 %s15, 1
        %s267 = sand.u32 %s28, 1
        %s268 = sand.u32 %s28, 1
        %s269 = smul.addr %s268, 32
        %s270 = scalar_lea.vmem [#allocation2], %s269
        // Predicated region
        $region79: #{tpu_custom_call.1} parent=77 // pred_check
          %p271 = pneg %p41
        $region80: #{tpu_custom_call.1} parent=77 // pred_check_branch
          %273 = sbr.rel (%p271) target = $region82
        $region81: #{tpu_custom_call.1} parent=77 // pred_region
          _
        $region82: #{tpu_custom_call.1} parent=77 // pred_fallthru
          _
        %s274 = sand.u32 %s28, 1
        %s275 = sand.u32 %s28, 1
        %s276 = smul.addr %s275, 32
        %s277 = scalar_lea.vmem [#allocation2], %s276
        %p278 = pneg %p41
        %p279 = pneg %p38
        %p280 = pneg %p62
        %p281 = pneg %p59
        %p282 = pneg %p83
        %p283 = pneg %p80
        %p284 = pneg %p104
        %p285 = pneg %p101
        %p286 = pneg %p125
        %p287 = pneg %p122
        %p288 = pneg %p146
        %p289 = pneg %p143
        %p290 = pneg %p172
        %p291 = pneg %p169
        %s292 = sand.u32 %s159, 1
        %s293 = scalar_lea.sflag [#allocation4], %s292
        %s294 = sand.u32 %s159, 1
        %s295 = smul.addr %s294, 64
        %s296 = scalar_lea.vmem [#allocation3], %s295
        %v297 = vld [vmem:[%s270] sm:$0xff]
        %v298 = vld [vmem:[%s270 + $0x8] sm:$0xff]
        %v299 = vld [vmem:[%s270 + $0x10] sm:$0xff]
        %v300 = vld [vmem:[%s270 + $0x18] sm:$0xff]
        %v301 = vld [vmem:[%s1] sm:$0xff]
        %v302 = vld [vmem:[%s1 + $0x8] sm:$0xff]
        %v303 = vld [vmem:[%s1 + $0x10] sm:$0xff]
        %v304 = vld [vmem:[%s1 + $0x18] sm:$0xff]
        %306 = vset.pattern.permute.xlu0 0
        %307 = vperm.xlu0 %306, %v301
        %v308 = vpop.permute.xlu0 %307
        %311 = vset.pattern.permute.xlu0 0
        %312 = vperm.xlu0 %311, %v302
        %v313 = vpop.permute.xlu0 %312
        %316 = vset.pattern.permute.xlu0 0
        %317 = vperm.xlu0 %316, %v303
        %v318 = vpop.permute.xlu0 %317
        %321 = vset.pattern.permute.xlu0 0
        %322 = vperm.xlu0 %321, %v304
        %v323 = vpop.permute.xlu0 %322
        %v325 = vmul.f32 %v297, %v308
        %v326 = vmul.f32 %v298, %v313
        %v327 = vmul.f32 %v299, %v318
        %v328 = vmul.f32 %v300, %v323
        %v329 = vld [vmem:[%s2] sm:$0xff]
        %v330 = vld [vmem:[%s2 + $0x8] sm:$0xff]
        %v331 = vld [vmem:[%s2 + $0x10] sm:$0xff]
        %v332 = vld [vmem:[%s2 + $0x18] sm:$0xff]
        %334 = vset.pattern.permute.xlu0 0
        %335 = vperm.xlu0 %334, %v329
        %v336 = vpop.permute.xlu0 %335
        %339 = vset.pattern.permute.xlu0 0
        %340 = vperm.xlu0 %339, %v330
        %v341 = vpop.permute.xlu0 %340
        %344 = vset.pattern.permute.xlu0 0
        %345 = vperm.xlu0 %344, %v331
        %v346 = vpop.permute.xlu0 %345
        %349 = vset.pattern.permute.xlu0 0
        %350 = vperm.xlu0 %349, %v332
        %v351 = vpop.permute.xlu0 %350
        %v353 = vadd.f32 %v325, %v336
        %v354 = vadd.f32 %v326, %v341
        %v355 = vadd.f32 %v327, %v346
        %v356 = vadd.f32 %v328, %v351
        %v357 = vld [vmem:[%s3] sm:$0xff]
        %v358 = vld [vmem:[%s3 + $0x8] sm:$0xff]
        %v359 = vld [vmem:[%s3 + $0x10] sm:$0xff]
        %v360 = vld [vmem:[%s3 + $0x18] sm:$0xff]
        %v361 = vld [vmem:[%s3 + $0x20] sm:$0xff]
        %v362 = vld [vmem:[%s3 + $0x28] sm:$0xff]
        %v363 = vld [vmem:[%s3 + $0x30] sm:$0xff]
        %v364 = vld [vmem:[%s3 + $0x38] sm:$0xff]
        %v365 = vld [vmem:[%s4] sm:$0xff]
        %v366 = vld [vmem:[%s4 + $0x8] sm:$0xff]
        %v367 = vld [vmem:[%s4 + $0x10] sm:$0xff]
        %v368 = vld [vmem:[%s4 + $0x18] sm:$0xff]
        %v369 = vld [vmem:[%s4 + $0x20] sm:$0xff]
        %v370 = vld [vmem:[%s4 + $0x28] sm:$0xff]
        %v371 = vld [vmem:[%s4 + $0x30] sm:$0xff]
        %v372 = vld [vmem:[%s4 + $0x38] sm:$0xff]
        %v373 = vld [vmem:[%s5] sm:$0xff]
        %v374 = vld [vmem:[%s5 + $0x8] sm:$0xff]
        %v375 = vld [vmem:[%s5 + $0x10] sm:$0xff]
        %v376 = vld [vmem:[%s5 + $0x18] sm:$0xff]
        %v377 = vld [vmem:[%s5 + $0x20] sm:$0xff]
        %v378 = vld [vmem:[%s5 + $0x28] sm:$0xff]
        %v379 = vld [vmem:[%s5 + $0x30] sm:$0xff]
        %v380 = vld [vmem:[%s5 + $0x38] sm:$0xff]
        %v381 = vlaneseq
        %v382 = vshrl.u32 %v381, 7
        %v383 = vsub.s32 0, %v382
        %v384 = vrot.slane %v353, %v383
        %386 = vset.pattern.permute.xlu0 0
        %387 = vperm.xlu0 %386, %v365
        %v388 = vpop.permute.xlu0 %387
        %391 = vset.pattern.permute.xlu0 0
        %392 = vperm.xlu0 %391, %v366
        %v393 = vpop.permute.xlu0 %392
        %396 = vset.pattern.permute.xlu0 0
        %397 = vperm.xlu0 %396, %v367
        %v398 = vpop.permute.xlu0 %397
        %401 = vset.pattern.permute.xlu0 0
        %402 = vperm.xlu0 %401, %v368
        %v403 = vpop.permute.xlu0 %402
        %406 = vset.pattern.permute.xlu0 0
        %407 = vperm.xlu0 %406, %v369
        %v408 = vpop.permute.xlu0 %407
        %411 = vset.pattern.permute.xlu0 0
        %412 = vperm.xlu0 %411, %v370
        %v413 = vpop.permute.xlu0 %412
        %416 = vset.pattern.permute.xlu0 0
        %417 = vperm.xlu0 %416, %v371
        %v418 = vpop.permute.xlu0 %417
        %421 = vset.pattern.permute.xlu0 0
        %422 = vperm.xlu0 %421, %v372
        %v423 = vpop.permute.xlu0 %422
        %v425 = vsub.f32 %v384, %v388
        %v426 = vsub.f32 %v384, %v393
        %v427 = vsub.f32 %v384, %v398
        %v428 = vsub.f32 %v384, %v403
        %v429 = vsub.f32 %v384, %v408
        %v430 = vsub.f32 %v384, %v413
        %v431 = vsub.f32 %v384, %v418
        %v432 = vsub.f32 %v384, %v423
        %434 = vset.pattern.permute.xlu0 0
        %435 = vperm.xlu0 %434, %v357
        %v436 = vpop.permute.xlu0 %435
        %439 = vset.pattern.permute.xlu0 0
        %440 = vperm.xlu0 %439, %v358
        %v441 = vpop.permute.xlu0 %440
        %444 = vset.pattern.permute.xlu0 0
        %445 = vperm.xlu0 %444, %v359
        %v446 = vpop.permute.xlu0 %445
        %449 = vset.pattern.permute.xlu0 0
        %450 = vperm.xlu0 %449, %v360
        %v451 = vpop.permute.xlu0 %450
        %454 = vset.pattern.permute.xlu0 0
        %455 = vperm.xlu0 %454, %v361
        %v456 = vpop.permute.xlu0 %455
        %459 = vset.pattern.permute.xlu0 0
        %460 = vperm.xlu0 %459, %v362
        %v461 = vpop.permute.xlu0 %460
        %464 = vset.pattern.permute.xlu0 0
        %465 = vperm.xlu0 %464, %v363
        %v466 = vpop.permute.xlu0 %465
        %469 = vset.pattern.permute.xlu0 0
        %470 = vperm.xlu0 %469, %v364
        %v471 = vpop.permute.xlu0 %470
        %v473 = vmul.f32 %v425, %v436
        %v474 = vmul.f32 %v426, %v441
        %v475 = vmul.f32 %v427, %v446
        %v476 = vmul.f32 %v428, %v451
        %v477 = vmul.f32 %v429, %v456
        %v478 = vmul.f32 %v430, %v461
        %v479 = vmul.f32 %v431, %v466
        %v480 = vmul.f32 %v432, %v471
        %v481 = vsub.f32 0.0, %v473
        %v482 = vsub.f32 0.0, %v474
        %v483 = vsub.f32 0.0, %v475
        %v484 = vsub.f32 0.0, %v476
        %v485 = vsub.f32 0.0, %v477
        %v486 = vsub.f32 0.0, %v478
        %v487 = vsub.f32 0.0, %v479
        %v488 = vsub.f32 0.0, %v480
        %490 = vset.pattern.permute.xlu0 0
        %491 = vperm.xlu0 %490, %v373
        %v492 = vpop.permute.xlu0 %491
        %495 = vset.pattern.permute.xlu0 0
        %496 = vperm.xlu0 %495, %v374
        %v497 = vpop.permute.xlu0 %496
        %500 = vset.pattern.permute.xlu0 0
        %501 = vperm.xlu0 %500, %v375
        %v502 = vpop.permute.xlu0 %501
        %505 = vset.pattern.permute.xlu0 0
        %506 = vperm.xlu0 %505, %v376
        %v507 = vpop.permute.xlu0 %506
        %510 = vset.pattern.permute.xlu0 0
        %511 = vperm.xlu0 %510, %v377
        %v512 = vpop.permute.xlu0 %511
        %515 = vset.pattern.permute.xlu0 0
        %516 = vperm.xlu0 %515, %v378
        %v517 = vpop.permute.xlu0 %516
        %520 = vset.pattern.permute.xlu0 0
        %521 = vperm.xlu0 %520, %v379
        %v522 = vpop.permute.xlu0 %521
        %525 = vset.pattern.permute.xlu0 0
        %526 = vperm.xlu0 %525, %v380
        %v527 = vpop.permute.xlu0 %526
        %v529 = vmul.f32 %v492, %v481
        %v530 = vmul.f32 %v497, %v482
        %v531 = vmul.f32 %v502, %v483
        %v532 = vmul.f32 %v507, %v484
        %v533 = vmul.f32 %v512, %v485
        %v534 = vmul.f32 %v517, %v486
        %v535 = vmul.f32 %v522, %v487
        %v536 = vmul.f32 %v527, %v488
        %v537 = vmul.f32 %v473, %v473
        %v538 = vmul.f32 %v474, %v474
        %v539 = vmul.f32 %v475, %v475
        %v540 = vmul.f32 %v476, %v476
        %v541 = vmul.f32 %v477, %v477
        %v542 = vmul.f32 %v478, %v478
        %v543 = vmul.f32 %v479, %v479
        %v544 = vmul.f32 %v480, %v480
        %v545 = vmul.f32 %v537, -0.5
        %v546 = vmul.f32 %v538, -0.5
        %v547 = vmul.f32 %v539, -0.5
        %v548 = vmul.f32 %v540, -0.5
        %v549 = vmul.f32 %v541, -0.5
        %v550 = vmul.f32 %v542, -0.5
        %v551 = vmul.f32 %v543, -0.5
        %v552 = vmul.f32 %v544, -0.5
        %v553 = vmul.f32 %v545, 1.442695
        %v554 = vpow.pop %v553
        %v555 = vmul.f32 %v546, 1.442695
        %v556 = vpow.pop %v555
        %v557 = vmul.f32 %v547, 1.442695
        %v558 = vpow.pop %v557
        %v559 = vmul.f32 %v548, 1.442695
        %v560 = vpow.pop %v559
        %v561 = vmul.f32 %v549, 1.442695
        %v562 = vpow.pop %v561
        %v563 = vmul.f32 %v550, 1.442695
        %v564 = vpow.pop %v563
        %v565 = vmul.f32 %v551, 1.442695
        %v566 = vpow.pop %v565
        %v567 = vmul.f32 %v552, 1.442695
        %v568 = vpow.pop %v567
        %v569 = vmul.f32 %v529, %v554
        %v570 = vmul.f32 %v530, %v556
        %v571 = vmul.f32 %v531, %v558
        %v572 = vmul.f32 %v532, %v560
        %v573 = vmul.f32 %v533, %v562
        %v574 = vmul.f32 %v534, %v564
        %v575 = vmul.f32 %v535, %v566
        %v576 = vmul.f32 %v536, %v568
        %v577 = vadd.f32 %v569, 0.0
        %v578 = vadd.f32 %v570, 0.0
        %v579 = vadd.f32 %v571, 0.0
        %v580 = vadd.f32 %v572, 0.0
        %v581 = vadd.f32 %v573, 0.0
        %v582 = vadd.f32 %v574, 0.0
        %v583 = vadd.f32 %v575, 0.0
        %v584 = vadd.f32 %v576, 0.0
        %v585 = vlaneseq
        %v586 = vshrl.u32 %v585, 7
        %v587 = vsub.s32 1, %v586
        %v588 = vrot.slane %v353, %v587
        %589 = vset.pattern.permute.xlu0 1
        %590 = vperm.xlu0 %589, %v365
        %v591 = vpop.permute.xlu0 %590
        %593 = vset.pattern.permute.xlu0 1
        %594 = vperm.xlu0 %593, %v366
        %v595 = vpop.permute.xlu0 %594
        %597 = vset.pattern.permute.xlu0 1
        %598 = vperm.xlu0 %597, %v367
        %v599 = vpop.permute.xlu0 %598
        %601 = vset.pattern.permute.xlu0 1
        %602 = vperm.xlu0 %601, %v368
        %v603 = vpop.permute.xlu0 %602
        %605 = vset.pattern.permute.xlu0 1
        %606 = vperm.xlu0 %605, %v369
        %v607 = vpop.permute.xlu0 %606
        %609 = vset.pattern.permute.xlu0 1
        %610 = vperm.xlu0 %609, %v370
        %v611 = vpop.permute.xlu0 %610
        %613 = vset.pattern.permute.xlu0 1
        %614 = vperm.xlu0 %613, %v371
        %v615 = vpop.permute.xlu0 %614
        %617 = vset.pattern.permute.xlu0 1
        %618 = vperm.xlu0 %617, %v372
        %v619 = vpop.permute.xlu0 %618
        %v621 = vsub.f32 %v588, %v591
        %v622 = vsub.f32 %v588, %v595
        %v623 = vsub.f32 %v588, %v599
        %v624 = vsub.f32 %v588, %v603
        %v625 = vsub.f32 %v588, %v607
        %v626 = vsub.f32 %v588, %v611
        %v627 = vsub.f32 %v588, %v615
        %v628 = vsub.f32 %v588, %v619
        %629 = vset.pattern.permute.xlu0 1
        %630 = vperm.xlu0 %629, %v357
        %v631 = vpop.permute.xlu0 %630
        %633 = vset.pattern.permute.xlu0 1
        %634 = vperm.xlu0 %633, %v358
        %v635 = vpop.permute.xlu0 %634
        %637 = vset.pattern.permute.xlu0 1
        %638 = vperm.xlu0 %637, %v359
        %v639 = vpop.permute.xlu0 %638
        %641 = vset.pattern.permute.xlu0 1
        %642 = vperm.xlu0 %641, %v360
        %v643 = vpop.permute.xlu0 %642
        %645 = vset.pattern.permute.xlu0 1
        %646 = vperm.xlu0 %645, %v361
        %v647 = vpop.permute.xlu0 %646
        %649 = vset.pattern.permute.xlu0 1
        %650 = vperm.xlu0 %649, %v362
        %v651 = vpop.permute.xlu0 %650
        %653 = vset.pattern.permute.xlu0 1
        %654 = vperm.xlu0 %653, %v363
        %v655 = vpop.permute.xlu0 %654
        %657 = vset.pattern.permute.xlu0 1
        %658 = vperm.xlu0 %657, %v364
        %v659 = vpop.permute.xlu0 %658
        %v661 = vmul.f32 %v621, %v631
        %v662 = vmul.f32 %v622, %v635
        %v663 = vmul.f32 %v623, %v639
        %v664 = vmul.f32 %v624, %v643
        %v665 = vmul.f32 %v625, %v647
        %v666 = vmul.f32 %v626, %v651
        %v667 = vmul.f32 %v627, %v655
        %v668 = vmul.f32 %v628, %v659
        %v669 = vsub.f32 0.0, %v661
        %v670 = vsub.f32 0.0, %v662
        %v671 = vsub.f32 0.0, %v663
        %v672 = vsub.f32 0.0, %v664
        %v673 = vsub.f32 0.0, %v665
        %v674 = vsub.f32 0.0, %v666
        %v675 = vsub.f32 0.0, %v667
        %v676 = vsub.f32 0.0, %v668
        %677 = vset.pattern.permute.xlu0 1
        %678 = vperm.xlu0 %677, %v373
        %v679 = vpop.permute.xlu0 %678
        %681 = vset.pattern.permute.xlu0 1
        %682 = vperm.xlu0 %681, %v374
        %v683 = vpop.permute.xlu0 %682
        %685 = vset.pattern.permute.xlu0 1
        %686 = vperm.xlu0 %685, %v375
        %v687 = vpop.permute.xlu0 %686
        %689 = vset.pattern.permute.xlu0 1
        %690 = vperm.xlu0 %689, %v376
        %v691 = vpop.permute.xlu0 %690
        %693 = vset.pattern.permute.xlu0 1
        %694 = vperm.xlu0 %693, %v377
        %v695 = vpop.permute.xlu0 %694
        %697 = vset.pattern.permute.xlu0 1
        %698 = vperm.xlu0 %697, %v378
        %v699 = vpop.permute.xlu0 %698
        %701 = vset.pattern.permute.xlu0 1
        %702 = vperm.xlu0 %701, %v379
        %v703 = vpop.permute.xlu0 %702
        %705 = vset.pattern.permute.xlu0 1
        %706 = vperm.xlu0 %705, %v380
        %v707 = vpop.permute.xlu0 %706
        %v709 = vmul.f32 %v679, %v669
        %v710 = vmul.f32 %v683, %v670
        %v711 = vmul.f32 %v687, %v671
        %v712 = vmul.f32 %v691, %v672
        %v713 = vmul.f32 %v695, %v673
        %v714 = vmul.f32 %v699, %v674
        %v715 = vmul.f32 %v703, %v675
        %v716 = vmul.f32 %v707, %v676
        %v717 = vmul.f32 %v661, %v661
        %v718 = vmul.f32 %v662, %v662
        %v719 = vmul.f32 %v663, %v663
        %v720 = vmul.f32 %v664, %v664
        %v721 = vmul.f32 %v665, %v665
        %v722 = vmul.f32 %v666, %v666
        %v723 = vmul.f32 %v667, %v667
        %v724 = vmul.f32 %v668, %v668
        %v725 = vmul.f32 %v717, -0.5
        %v726 = vmul.f32 %v718, -0.5
        %v727 = vmul.f32 %v719, -0.5
        %v728 = vmul.f32 %v720, -0.5
        %v729 = vmul.f32 %v721, -0.5
        %v730 = vmul.f32 %v722, -0.5
        %v731 = vmul.f32 %v723, -0.5
        %v732 = vmul.f32 %v724, -0.5
        %v733 = vmul.f32 %v725, 1.442695
        %v734 = vpow.pop %v733
        %v735 = vmul.f32 %v726, 1.442695
        %v736 = vpow.pop %v735
        %v737 = vmul.f32 %v727, 1.442695
        %v738 = vpow.pop %v737
        %v739 = vmul.f32 %v728, 1.442695
        %v740 = vpow.pop %v739
        %v741 = vmul.f32 %v729, 1.442695
        %v742 = vpow.pop %v741
        %v743 = vmul.f32 %v730, 1.442695
        %v744 = vpow.pop %v743
        %v745 = vmul.f32 %v731, 1.442695
        %v746 = vpow.pop %v745
        %v747 = vmul.f32 %v732, 1.442695
        %v748 = vpow.pop %v747
        %v749 = vmul.f32 %v709, %v734
        %v750 = vmul.f32 %v710, %v736
        %v751 = vmul.f32 %v711, %v738
        %v752 = vmul.f32 %v712, %v740
        %v753 = vmul.f32 %v713, %v742
        %v754 = vmul.f32 %v714, %v744
        %v755 = vmul.f32 %v715, %v746
        %v756 = vmul.f32 %v716, %v748
        %v757 = vadd.f32 %v577, %v749
        %v758 = vadd.f32 %v578, %v750
        %v759 = vadd.f32 %v579, %v751
        %v760 = vadd.f32 %v580, %v752
        %v761 = vadd.f32 %v581, %v753
        %v762 = vadd.f32 %v582, %v754
        %v763 = vadd.f32 %v583, %v755
        %v764 = vadd.f32 %v584, %v756
        %v765 = vlaneseq
        %v766 = vshrl.u32 %v765, 7
        %v767 = vsub.s32 2, %v766
        %v768 = vrot.slane %v353, %v767
        %769 = vset.pattern.permute.xlu0 2
        %770 = vperm.xlu0 %769, %v365
        %v771 = vpop.permute.xlu0 %770
        %773 = vset.pattern.permute.xlu0 2
        %774 = vperm.xlu0 %773, %v366
        %v775 = vpop.permute.xlu0 %774
        %777 = vset.pattern.permute.xlu0 2
        %778 = vperm.xlu0 %777, %v367
        %v779 = vpop.permute.xlu0 %778
        %781 = vset.pattern.permute.xlu0 2
        %782 = vperm.xlu0 %781, %v368
        %v783 = vpop.permute.xlu0 %782
        %785 = vset.pattern.permute.xlu0 2
        %786 = vperm.xlu0 %785, %v369
        %v787 = vpop.permute.xlu0 %786
        %789 = vset.pattern.permute.xlu0 2
        %790 = vperm.xlu0 %789, %v370
        %v791 = vpop.permute.xlu0 %790
        %793 = vset.pattern.permute.xlu0 2
        %794 = vperm.xlu0 %793, %v371
        %v795 = vpop.permute.xlu0 %794
        %797 = vset.pattern.permute.xlu0 2
        %798 = vperm.xlu0 %797, %v372
        %v799 = vpop.permute.xlu0 %798
        %v801 = vsub.f32 %v768, %v771
        %v802 = vsub.f32 %v768, %v775
        %v803 = vsub.f32 %v768, %v779
        %v804 = vsub.f32 %v768, %v783
        %v805 = vsub.f32 %v768, %v787
        %v806 = vsub.f32 %v768, %v791
        %v807 = vsub.f32 %v768, %v795
        %v808 = vsub.f32 %v768, %v799
        %809 = vset.pattern.permute.xlu0 2
        %810 = vperm.xlu0 %809, %v357
        %v811 = vpop.permute.xlu0 %810
        %813 = vset.pattern.permute.xlu0 2
        %814 = vperm.xlu0 %813, %v358
        %v815 = vpop.permute.xlu0 %814
        %817 = vset.pattern.permute.xlu0 2
        %818 = vperm.xlu0 %817, %v359
        %v819 = vpop.permute.xlu0 %818
        %821 = vset.pattern.permute.xlu0 2
        %822 = vperm.xlu0 %821, %v360
        %v823 = vpop.permute.xlu0 %822
        %825 = vset.pattern.permute.xlu0 2
        %826 = vperm.xlu0 %825, %v361
        %v827 = vpop.permute.xlu0 %826
        %829 = vset.pattern.permute.xlu0 2
        %830 = vperm.xlu0 %829, %v362
        %v831 = vpop.permute.xlu0 %830
        %833 = vset.pattern.permute.xlu0 2
        %834 = vperm.xlu0 %833, %v363
        %v835 = vpop.permute.xlu0 %834
        %837 = vset.pattern.permute.xlu0 2
        %838 = vperm.xlu0 %837, %v364
        %v839 = vpop.permute.xlu0 %838
        %v841 = vmul.f32 %v801, %v811
        %v842 = vmul.f32 %v802, %v815
        %v843 = vmul.f32 %v803, %v819
        %v844 = vmul.f32 %v804, %v823
        %v845 = vmul.f32 %v805, %v827
        %v846 = vmul.f32 %v806, %v831
        %v847 = vmul.f32 %v807, %v835
        %v848 = vmul.f32 %v808, %v839
        %v849 = vsub.f32 0.0, %v841
        %v850 = vsub.f32 0.0, %v842
        %v851 = vsub.f32 0.0, %v843
        %v852 = vsub.f32 0.0, %v844
        %v853 = vsub.f32 0.0, %v845
        %v854 = vsub.f32 0.0, %v846
        %v855 = vsub.f32 0.0, %v847
        %v856 = vsub.f32 0.0, %v848
        %857 = vset.pattern.permute.xlu0 2
        %858 = vperm.xlu0 %857, %v373
        %v859 = vpop.permute.xlu0 %858
        %861 = vset.pattern.permute.xlu0 2
        %862 = vperm.xlu0 %861, %v374
        %v863 = vpop.permute.xlu0 %862
        %865 = vset.pattern.permute.xlu0 2
        %866 = vperm.xlu0 %865, %v375
        %v867 = vpop.permute.xlu0 %866
        %869 = vset.pattern.permute.xlu0 2
        %870 = vperm.xlu0 %869, %v376
        %v871 = vpop.permute.xlu0 %870
        %873 = vset.pattern.permute.xlu0 2
        %874 = vperm.xlu0 %873, %v377
        %v875 = vpop.permute.xlu0 %874
        %877 = vset.pattern.permute.xlu0 2
        %878 = vperm.xlu0 %877, %v378
        %v879 = vpop.permute.xlu0 %878
        %881 = vset.pattern.permute.xlu0 2
        %882 = vperm.xlu0 %881, %v379
        %v883 = vpop.permute.xlu0 %882
        %885 = vset.pattern.permute.xlu0 2
        %886 = vperm.xlu0 %885, %v380
        %v887 = vpop.permute.xlu0 %886
        %v889 = vmul.f32 %v859, %v849
        %v890 = vmul.f32 %v863, %v850
        %v891 = vmul.f32 %v867, %v851
        %v892 = vmul.f32 %v871, %v852
        %v893 = vmul.f32 %v875, %v853
        %v894 = vmul.f32 %v879, %v854
        %v895 = vmul.f32 %v883, %v855
        %v896 = vmul.f32 %v887, %v856
        %v897 = vmul.f32 %v841, %v841
        %v898 = vmul.f32 %v842, %v842
        %v899 = vmul.f32 %v843, %v843
        %v900 = vmul.f32 %v844, %v844
        %v901 = vmul.f32 %v845, %v845
        %v902 = vmul.f32 %v846, %v846
        %v903 = vmul.f32 %v847, %v847
        %v904 = vmul.f32 %v848, %v848
        %v905 = vmul.f32 %v897, -0.5
        %v906 = vmul.f32 %v898, -0.5
        %v907 = vmul.f32 %v899, -0.5
        %v908 = vmul.f32 %v900, -0.5
        %v909 = vmul.f32 %v901, -0.5
        %v910 = vmul.f32 %v902, -0.5
        %v911 = vmul.f32 %v903, -0.5
        %v912 = vmul.f32 %v904, -0.5
        %v913 = vmul.f32 %v905, 1.442695
        %v914 = vpow.pop %v913
        %v915 = vmul.f32 %v906, 1.442695
        %v916 = vpow.pop %v915
        %v917 = vmul.f32 %v907, 1.442695
        %v918 = vpow.pop %v917
        %v919 = vmul.f32 %v908, 1.442695
        %v920 = vpow.pop %v919
        %v921 = vmul.f32 %v909, 1.442695
        %v922 = vpow.pop %v921
        %v923 = vmul.f32 %v910, 1.442695
        %v924 = vpow.pop %v923
        %v925 = vmul.f32 %v911, 1.442695
        %v926 = vpow.pop %v925
        %v927 = vmul.f32 %v912, 1.442695
        %v928 = vpow.pop %v927
        %v929 = vmul.f32 %v889, %v914
        %v930 = vmul.f32 %v890, %v916
        %v931 = vmul.f32 %v891, %v918
        %v932 = vmul.f32 %v892, %v920
        %v933 = vmul.f32 %v893, %v922
        %v934 = vmul.f32 %v894, %v924
        %v935 = vmul.f32 %v895, %v926
        %v936 = vmul.f32 %v896, %v928
        %v937 = vadd.f32 %v757, %v929
        %v938 = vadd.f32 %v758, %v930
        %v939 = vadd.f32 %v759, %v931
        %v940 = vadd.f32 %v760, %v932
        %v941 = vadd.f32 %v761, %v933
        %v942 = vadd.f32 %v762, %v934
        %v943 = vadd.f32 %v763, %v935
        %v944 = vadd.f32 %v764, %v936
        %v945 = vlaneseq
        %v946 = vshrl.u32 %v945, 7
        %v947 = vsub.s32 3, %v946
        %v948 = vrot.slane %v353, %v947
        %949 = vset.pattern.permute.xlu0 3
        %950 = vperm.xlu0 %949, %v365
        %v951 = vpop.permute.xlu0 %950
        %953 = vset.pattern.permute.xlu0 3
        %954 = vperm.xlu0 %953, %v366
        %v955 = vpop.permute.xlu0 %954
        %957 = vset.pattern.permute.xlu0 3
        %958 = vperm.xlu0 %957, %v367
        %v959 = vpop.permute.xlu0 %958
        %961 = vset.pattern.permute.xlu0 3
        %962 = vperm.xlu0 %961, %v368
        %v963 = vpop.permute.xlu0 %962
        %965 = vset.pattern.permute.xlu0 3
        %966 = vperm.xlu0 %965, %v369
        %v967 = vpop.permute.xlu0 %966
        %969 = vset.pattern.permute.xlu0 3
        %970 = vperm.xlu0 %969, %v370
        %v971 = vpop.permute.xlu0 %970
        %973 = vset.pattern.permute.xlu0 3
        %974 = vperm.xlu0 %973, %v371
        %v975 = vpop.permute.xlu0 %974
        %977 = vset.pattern.permute.xlu0 3
        %978 = vperm.xlu0 %977, %v372
        %v979 = vpop.permute.xlu0 %978
        %v981 = vsub.f32 %v948, %v951
        %v982 = vsub.f32 %v948, %v955
        %v983 = vsub.f32 %v948, %v959
        %v984 = vsub.f32 %v948, %v963
        %v985 = vsub.f32 %v948, %v967
        %v986 = vsub.f32 %v948, %v971
        %v987 = vsub.f32 %v948, %v975
        %v988 = vsub.f32 %v948, %v979
        %989 = vset.pattern.permute.xlu0 3
        %990 = vperm.xlu0 %989, %v357
        %v991 = vpop.permute.xlu0 %990
        %993 = vset.pattern.permute.xlu0 3
        %994 = vperm.xlu0 %993, %v358
        %v995 = vpop.permute.xlu0 %994
        %997 = vset.pattern.permute.xlu0 3
        %998 = vperm.xlu0 %997, %v359
        %v999 = vpop.permute.xlu0 %998
        %1001 = vset.pattern.permute.xlu0 3
        %1002 = vperm.xlu0 %1001, %v360
        %v1003 = vpop.permute.xlu0 %1002
        %1005 = vset.pattern.permute.xlu0 3
        %1006 = vperm.xlu0 %1005, %v361
        %v1007 = vpop.permute.xlu0 %1006
        %1009 = vset.pattern.permute.xlu0 3
        %1010 = vperm.xlu0 %1009, %v362
        %v1011 = vpop.permute.xlu0 %1010
        %1013 = vset.pattern.permute.xlu0 3
        %1014 = vperm.xlu0 %1013, %v363
        %v1015 = vpop.permute.xlu0 %1014
        %1017 = vset.pattern.permute.xlu0 3
        %1018 = vperm.xlu0 %1017, %v364
        %v1019 = vpop.permute.xlu0 %1018
        %v1021 = vmul.f32 %v981, %v991
        %v1022 = vmul.f32 %v982, %v995
        %v1023 = vmul.f32 %v983, %v999
        %v1024 = vmul.f32 %v984, %v1003
        %v1025 = vmul.f32 %v985, %v1007
        %v1026 = vmul.f32 %v986, %v1011
        %v1027 = vmul.f32 %v987, %v1015
        %v1028 = vmul.f32 %v988, %v1019
        %v1029 = vsub.f32 0.0, %v1021
        %v1030 = vsub.f32 0.0, %v1022
        %v1031 = vsub.f32 0.0, %v1023
        %v1032 = vsub.f32 0.0, %v1024
        %v1033 = vsub.f32 0.0, %v1025
        %v1034 = vsub.f32 0.0, %v1026
        %v1035 = vsub.f32 0.0, %v1027
        %v1036 = vsub.f32 0.0, %v1028
        %1037 = vset.pattern.permute.xlu0 3
        %1038 = vperm.xlu0 %1037, %v373
        %v1039 = vpop.permute.xlu0 %1038
        %1041 = vset.pattern.permute.xlu0 3
        %1042 = vperm.xlu0 %1041, %v374
        %v1043 = vpop.permute.xlu0 %1042
        %1045 = vset.pattern.permute.xlu0 3
        %1046 = vperm.xlu0 %1045, %v375
        %v1047 = vpop.permute.xlu0 %1046
        %1049 = vset.pattern.permute.xlu0 3
        %1050 = vperm.xlu0 %1049, %v376
        %v1051 = vpop.permute.xlu0 %1050
        %1053 = vset.pattern.permute.xlu0 3
        %1054 = vperm.xlu0 %1053, %v377
        %v1055 = vpop.permute.xlu0 %1054
        %1057 = vset.pattern.permute.xlu0 3
        %1058 = vperm.xlu0 %1057, %v378
        %v1059 = vpop.permute.xlu0 %1058
        %1061 = vset.pattern.permute.xlu0 3
        %1062 = vperm.xlu0 %1061, %v379
        %v1063 = vpop.permute.xlu0 %1062
        %1065 = vset.pattern.permute.xlu0 3
        %1066 = vperm.xlu0 %1065, %v380
        %v1067 = vpop.permute.xlu0 %1066
        %v1069 = vmul.f32 %v1039, %v1029
        %v1070 = vmul.f32 %v1043, %v1030
        %v1071 = vmul.f32 %v1047, %v1031
        %v1072 = vmul.f32 %v1051, %v1032
        %v1073 = vmul.f32 %v1055, %v1033
        %v1074 = vmul.f32 %v1059, %v1034
        %v1075 = vmul.f32 %v1063, %v1035
        %v1076 = vmul.f32 %v1067, %v1036
        %v1077 = vmul.f32 %v1021, %v1021
        %v1078 = vmul.f32 %v1022, %v1022
        %v1079 = vmul.f32 %v1023, %v1023
        %v1080 = vmul.f32 %v1024, %v1024
        %v1081 = vmul.f32 %v1025, %v1025
        %v1082 = vmul.f32 %v1026, %v1026
        %v1083 = vmul.f32 %v1027, %v1027
        %v1084 = vmul.f32 %v1028, %v1028
        %v1085 = vmul.f32 %v1077, -0.5
        %v1086 = vmul.f32 %v1078, -0.5
        %v1087 = vmul.f32 %v1079, -0.5
        %v1088 = vmul.f32 %v1080, -0.5
        %v1089 = vmul.f32 %v1081, -0.5
        %v1090 = vmul.f32 %v1082, -0.5
        %v1091 = vmul.f32 %v1083, -0.5
        %v1092 = vmul.f32 %v1084, -0.5
        %v1093 = vmul.f32 %v1085, 1.442695
        %v1094 = vpow.pop %v1093
        %v1095 = vmul.f32 %v1086, 1.442695
        %v1096 = vpow.pop %v1095
        %v1097 = vmul.f32 %v1087, 1.442695
        %v1098 = vpow.pop %v1097
        %v1099 = vmul.f32 %v1088, 1.442695
        %v1100 = vpow.pop %v1099
        %v1101 = vmul.f32 %v1089, 1.442695
        %v1102 = vpow.pop %v1101
        %v1103 = vmul.f32 %v1090, 1.442695
        %v1104 = vpow.pop %v1103
        %v1105 = vmul.f32 %v1091, 1.442695
        %v1106 = vpow.pop %v1105
        %v1107 = vmul.f32 %v1092, 1.442695
        %v1108 = vpow.pop %v1107
        %v1109 = vmul.f32 %v1069, %v1094
        %v1110 = vmul.f32 %v1070, %v1096
        %v1111 = vmul.f32 %v1071, %v1098
        %v1112 = vmul.f32 %v1072, %v1100
        %v1113 = vmul.f32 %v1073, %v1102
        %v1114 = vmul.f32 %v1074, %v1104
        %v1115 = vmul.f32 %v1075, %v1106
        %v1116 = vmul.f32 %v1076, %v1108
        %v1117 = vadd.f32 %v937, %v1109
        %v1118 = vadd.f32 %v938, %v1110
        %v1119 = vadd.f32 %v939, %v1111
        %v1120 = vadd.f32 %v940, %v1112
        %v1121 = vadd.f32 %v941, %v1113
        %v1122 = vadd.f32 %v942, %v1114
        %v1123 = vadd.f32 %v943, %v1115
        %v1124 = vadd.f32 %v944, %v1116
        %v1125 = vlaneseq
        %v1126 = vshrl.u32 %v1125, 7
        %v1127 = vsub.s32 4, %v1126
        %v1128 = vrot.slane %v353, %v1127
        %1129 = vset.pattern.permute.xlu0 4
        %1130 = vperm.xlu0 %1129, %v365
        %v1131 = vpop.permute.xlu0 %1130
        %1133 = vset.pattern.permute.xlu0 4
        %1134 = vperm.xlu0 %1133, %v366
        %v1135 = vpop.permute.xlu0 %1134
        %1137 = vset.pattern.permute.xlu0 4
        %1138 = vperm.xlu0 %1137, %v367
        %v1139 = vpop.permute.xlu0 %1138
        %1141 = vset.pattern.permute.xlu0 4
        %1142 = vperm.xlu0 %1141, %v368
        %v1143 = vpop.permute.xlu0 %1142
        %1145 = vset.pattern.permute.xlu0 4
        %1146 = vperm.xlu0 %1145, %v369
        %v1147 = vpop.permute.xlu0 %1146
        %1149 = vset.pattern.permute.xlu0 4
        %1150 = vperm.xlu0 %1149, %v370
        %v1151 = vpop.permute.xlu0 %1150
        %1153 = vset.pattern.permute.xlu0 4
        %1154 = vperm.xlu0 %1153, %v371
        %v1155 = vpop.permute.xlu0 %1154
        %1157 = vset.pattern.permute.xlu0 4
        %1158 = vperm.xlu0 %1157, %v372
        %v1159 = vpop.permute.xlu0 %1158
        %v1161 = vsub.f32 %v1128, %v1131
        %v1162 = vsub.f32 %v1128, %v1135
        %v1163 = vsub.f32 %v1128, %v1139
        %v1164 = vsub.f32 %v1128, %v1143
        %v1165 = vsub.f32 %v1128, %v1147
        %v1166 = vsub.f32 %v1128, %v1151
        %v1167 = vsub.f32 %v1128, %v1155
        %v1168 = vsub.f32 %v1128, %v1159
        %1169 = vset.pattern.permute.xlu0 4
        %1170 = vperm.xlu0 %1169, %v357
        %v1171 = vpop.permute.xlu0 %1170
        %1173 = vset.pattern.permute.xlu0 4
        %1174 = vperm.xlu0 %1173, %v358
        %v1175 = vpop.permute.xlu0 %1174
        %1177 = vset.pattern.permute.xlu0 4
        %1178 = vperm.xlu0 %1177, %v359
        %v1179 = vpop.permute.xlu0 %1178
        %1181 = vset.pattern.permute.xlu0 4
        %1182 = vperm.xlu0 %1181, %v360
        %v1183 = vpop.permute.xlu0 %1182
        %1185 = vset.pattern.permute.xlu0 4
        %1186 = vperm.xlu0 %1185, %v361
        %v1187 = vpop.permute.xlu0 %1186
        %1189 = vset.pattern.permute.xlu0 4
        %1190 = vperm.xlu0 %1189, %v362
        %v1191 = vpop.permute.xlu0 %1190
        %1193 = vset.pattern.permute.xlu0 4
        %1194 = vperm.xlu0 %1193, %v363
        %v1195 = vpop.permute.xlu0 %1194
        %1197 = vset.pattern.permute.xlu0 4
        %1198 = vperm.xlu0 %1197, %v364
        %v1199 = vpop.permute.xlu0 %1198
        %v1201 = vmul.f32 %v1161, %v1171
        %v1202 = vmul.f32 %v1162, %v1175
        %v1203 = vmul.f32 %v1163, %v1179
        %v1204 = vmul.f32 %v1164, %v1183
        %v1205 = vmul.f32 %v1165, %v1187
        %v1206 = vmul.f32 %v1166, %v1191
        %v1207 = vmul.f32 %v1167, %v1195
        %v1208 = vmul.f32 %v1168, %v1199
        %v1209 = vsub.f32 0.0, %v1201
        %v1210 = vsub.f32 0.0, %v1202
        %v1211 = vsub.f32 0.0, %v1203
        %v1212 = vsub.f32 0.0, %v1204
        %v1213 = vsub.f32 0.0, %v1205
        %v1214 = vsub.f32 0.0, %v1206
        %v1215 = vsub.f32 0.0, %v1207
        %v1216 = vsub.f32 0.0, %v1208
        %1217 = vset.pattern.permute.xlu0 4
        %1218 = vperm.xlu0 %1217, %v373
        %v1219 = vpop.permute.xlu0 %1218
        %1221 = vset.pattern.permute.xlu0 4
        %1222 = vperm.xlu0 %1221, %v374
        %v1223 = vpop.permute.xlu0 %1222
        %1225 = vset.pattern.permute.xlu0 4
        %1226 = vperm.xlu0 %1225, %v375
        %v1227 = vpop.permute.xlu0 %1226
        %1229 = vset.pattern.permute.xlu0 4
        %1230 = vperm.xlu0 %1229, %v376
        %v1231 = vpop.permute.xlu0 %1230
        %1233 = vset.pattern.permute.xlu0 4
        %1234 = vperm.xlu0 %1233, %v377
        %v1235 = vpop.permute.xlu0 %1234
        %1237 = vset.pattern.permute.xlu0 4
        %1238 = vperm.xlu0 %1237, %v378
        %v1239 = vpop.permute.xlu0 %1238
        %1241 = vset.pattern.permute.xlu0 4
        %1242 = vperm.xlu0 %1241, %v379
        %v1243 = vpop.permute.xlu0 %1242
        %1245 = vset.pattern.permute.xlu0 4
        %1246 = vperm.xlu0 %1245, %v380
        %v1247 = vpop.permute.xlu0 %1246
        %v1249 = vmul.f32 %v1219, %v1209
        %v1250 = vmul.f32 %v1223, %v1210
        %v1251 = vmul.f32 %v1227, %v1211
        %v1252 = vmul.f32 %v1231, %v1212
        %v1253 = vmul.f32 %v1235, %v1213
        %v1254 = vmul.f32 %v1239, %v1214
        %v1255 = vmul.f32 %v1243, %v1215
        %v1256 = vmul.f32 %v1247, %v1216
        %v1257 = vmul.f32 %v1201, %v1201
        %v1258 = vmul.f32 %v1202, %v1202
        %v1259 = vmul.f32 %v1203, %v1203
        %v1260 = vmul.f32 %v1204, %v1204
        %v1261 = vmul.f32 %v1205, %v1205
        %v1262 = vmul.f32 %v1206, %v1206
        %v1263 = vmul.f32 %v1207, %v1207
        %v1264 = vmul.f32 %v1208, %v1208
        %v1265 = vmul.f32 %v1257, -0.5
        %v1266 = vmul.f32 %v1258, -0.5
        %v1267 = vmul.f32 %v1259, -0.5
        %v1268 = vmul.f32 %v1260, -0.5
        %v1269 = vmul.f32 %v1261, -0.5
        %v1270 = vmul.f32 %v1262, -0.5
        %v1271 = vmul.f32 %v1263, -0.5
        %v1272 = vmul.f32 %v1264, -0.5
        %v1273 = vmul.f32 %v1265, 1.442695
        %v1274 = vpow.pop %v1273
        %v1275 = vmul.f32 %v1266, 1.442695
        %v1276 = vpow.pop %v1275
        %v1277 = vmul.f32 %v1267, 1.442695
        %v1278 = vpow.pop %v1277
        %v1279 = vmul.f32 %v1268, 1.442695
        %v1280 = vpow.pop %v1279
        %v1281 = vmul.f32 %v1269, 1.442695
        %v1282 = vpow.pop %v1281
        %v1283 = vmul.f32 %v1270, 1.442695
        %v1284 = vpow.pop %v1283
        %v1285 = vmul.f32 %v1271, 1.442695
        %v1286 = vpow.pop %v1285
        %v1287 = vmul.f32 %v1272, 1.442695
        %v1288 = vpow.pop %v1287
        %v1289 = vmul.f32 %v1249, %v1274
        %v1290 = vmul.f32 %v1250, %v1276
        %v1291 = vmul.f32 %v1251, %v1278
        %v1292 = vmul.f32 %v1252, %v1280
        %v1293 = vmul.f32 %v1253, %v1282
        %v1294 = vmul.f32 %v1254, %v1284
        %v1295 = vmul.f32 %v1255, %v1286
        %v1296 = vmul.f32 %v1256, %v1288
        %v1297 = vadd.f32 %v1117, %v1289
        %v1298 = vadd.f32 %v1118, %v1290
        %v1299 = vadd.f32 %v1119, %v1291
        %v1300 = vadd.f32 %v1120, %v1292
        %v1301 = vadd.f32 %v1121, %v1293
        %v1302 = vadd.f32 %v1122, %v1294
        %v1303 = vadd.f32 %v1123, %v1295
        %v1304 = vadd.f32 %v1124, %v1296
        %v1305 = vlaneseq
        %v1306 = vshrl.u32 %v1305, 7
        %v1307 = vsub.s32 5, %v1306
        %v1308 = vrot.slane %v353, %v1307
        %1309 = vset.pattern.permute.xlu0 5
        %1310 = vperm.xlu0 %1309, %v365
        %v1311 = vpop.permute.xlu0 %1310
        %1313 = vset.pattern.permute.xlu0 5
        %1314 = vperm.xlu0 %1313, %v366
        %v1315 = vpop.permute.xlu0 %1314
        %1317 = vset.pattern.permute.xlu0 5
        %1318 = vperm.xlu0 %1317, %v367
        %v1319 = vpop.permute.xlu0 %1318
        %1321 = vset.pattern.permute.xlu0 5
        %1322 = vperm.xlu0 %1321, %v368
        %v1323 = vpop.permute.xlu0 %1322
        %1325 = vset.pattern.permute.xlu0 5
        %1326 = vperm.xlu0 %1325, %v369
        %v1327 = vpop.permute.xlu0 %1326
        %1329 = vset.pattern.permute.xlu0 5
        %1330 = vperm.xlu0 %1329, %v370
        %v1331 = vpop.permute.xlu0 %1330
        %1333 = vset.pattern.permute.xlu0 5
        %1334 = vperm.xlu0 %1333, %v371
        %v1335 = vpop.permute.xlu0 %1334
        %1337 = vset.pattern.permute.xlu0 5
        %1338 = vperm.xlu0 %1337, %v372
        %v1339 = vpop.permute.xlu0 %1338
        %v1341 = vsub.f32 %v1308, %v1311
        %v1342 = vsub.f32 %v1308, %v1315
        %v1343 = vsub.f32 %v1308, %v1319
        %v1344 = vsub.f32 %v1308, %v1323
        %v1345 = vsub.f32 %v1308, %v1327
        %v1346 = vsub.f32 %v1308, %v1331
        %v1347 = vsub.f32 %v1308, %v1335
        %v1348 = vsub.f32 %v1308, %v1339
        %1349 = vset.pattern.permute.xlu0 5
        %1350 = vperm.xlu0 %1349, %v357
        %v1351 = vpop.permute.xlu0 %1350
        %1353 = vset.pattern.permute.xlu0 5
        %1354 = vperm.xlu0 %1353, %v358
        %v1355 = vpop.permute.xlu0 %1354
        %1357 = vset.pattern.permute.xlu0 5
        %1358 = vperm.xlu0 %1357, %v359
        %v1359 = vpop.permute.xlu0 %1358
        %1361 = vset.pattern.permute.xlu0 5
        %1362 = vperm.xlu0 %1361, %v360
        %v1363 = vpop.permute.xlu0 %1362
        %1365 = vset.pattern.permute.xlu0 5
        %1366 = vperm.xlu0 %1365, %v361
        %v1367 = vpop.permute.xlu0 %1366
        %1369 = vset.pattern.permute.xlu0 5
        %1370 = vperm.xlu0 %1369, %v362
        %v1371 = vpop.permute.xlu0 %1370
        %1373 = vset.pattern.permute.xlu0 5
        %1374 = vperm.xlu0 %1373, %v363
        %v1375 = vpop.permute.xlu0 %1374
        %1377 = vset.pattern.permute.xlu0 5
        %1378 = vperm.xlu0 %1377, %v364
        %v1379 = vpop.permute.xlu0 %1378
        %v1381 = vmul.f32 %v1341, %v1351
        %v1382 = vmul.f32 %v1342, %v1355
        %v1383 = vmul.f32 %v1343, %v1359
        %v1384 = vmul.f32 %v1344, %v1363
        %v1385 = vmul.f32 %v1345, %v1367
        %v1386 = vmul.f32 %v1346, %v1371
        %v1387 = vmul.f32 %v1347, %v1375
        %v1388 = vmul.f32 %v1348, %v1379
        %v1389 = vsub.f32 0.0, %v1381
        %v1390 = vsub.f32 0.0, %v1382
        %v1391 = vsub.f32 0.0, %v1383
        %v1392 = vsub.f32 0.0, %v1384
        %v1393 = vsub.f32 0.0, %v1385
        %v1394 = vsub.f32 0.0, %v1386
        %v1395 = vsub.f32 0.0, %v1387
        %v1396 = vsub.f32 0.0, %v1388
        %1397 = vset.pattern.permute.xlu0 5
        %1398 = vperm.xlu0 %1397, %v373
        %v1399 = vpop.permute.xlu0 %1398
        %1401 = vset.pattern.permute.xlu0 5
        %1402 = vperm.xlu0 %1401, %v374
        %v1403 = vpop.permute.xlu0 %1402
        %1405 = vset.pattern.permute.xlu0 5
        %1406 = vperm.xlu0 %1405, %v375
        %v1407 = vpop.permute.xlu0 %1406
        %1409 = vset.pattern.permute.xlu0 5
        %1410 = vperm.xlu0 %1409, %v376
        %v1411 = vpop.permute.xlu0 %1410
        %1413 = vset.pattern.permute.xlu0 5
        %1414 = vperm.xlu0 %1413, %v377
        %v1415 = vpop.permute.xlu0 %1414
        %1417 = vset.pattern.permute.xlu0 5
        %1418 = vperm.xlu0 %1417, %v378
        %v1419 = vpop.permute.xlu0 %1418
        %1421 = vset.pattern.permute.xlu0 5
        %1422 = vperm.xlu0 %1421, %v379
        %v1423 = vpop.permute.xlu0 %1422
        %1425 = vset.pattern.permute.xlu0 5
        %1426 = vperm.xlu0 %1425, %v380
        %v1427 = vpop.permute.xlu0 %1426
        %v1429 = vmul.f32 %v1399, %v1389
        %v1430 = vmul.f32 %v1403, %v1390
        %v1431 = vmul.f32 %v1407, %v1391
        %v1432 = vmul.f32 %v1411, %v1392
        %v1433 = vmul.f32 %v1415, %v1393
        %v1434 = vmul.f32 %v1419, %v1394
        %v1435 = vmul.f32 %v1423, %v1395
        %v1436 = vmul.f32 %v1427, %v1396
        %v1437 = vmul.f32 %v1381, %v1381
        %v1438 = vmul.f32 %v1382, %v1382
        %v1439 = vmul.f32 %v1383, %v1383
        %v1440 = vmul.f32 %v1384, %v1384
        %v1441 = vmul.f32 %v1385, %v1385
        %v1442 = vmul.f32 %v1386, %v1386
        %v1443 = vmul.f32 %v1387, %v1387
        %v1444 = vmul.f32 %v1388, %v1388
        %v1445 = vmul.f32 %v1437, -0.5
        %v1446 = vmul.f32 %v1438, -0.5
        %v1447 = vmul.f32 %v1439, -0.5
        %v1448 = vmul.f32 %v1440, -0.5
        %v1449 = vmul.f32 %v1441, -0.5
        %v1450 = vmul.f32 %v1442, -0.5
        %v1451 = vmul.f32 %v1443, -0.5
        %v1452 = vmul.f32 %v1444, -0.5
        %v1453 = vmul.f32 %v1445, 1.442695
        %v1454 = vpow.pop %v1453
        %v1455 = vmul.f32 %v1446, 1.442695
        %v1456 = vpow.pop %v1455
        %v1457 = vmul.f32 %v1447, 1.442695
        %v1458 = vpow.pop %v1457
        %v1459 = vmul.f32 %v1448, 1.442695
        %v1460 = vpow.pop %v1459
        %v1461 = vmul.f32 %v1449, 1.442695
        %v1462 = vpow.pop %v1461
        %v1463 = vmul.f32 %v1450, 1.442695
        %v1464 = vpow.pop %v1463
        %v1465 = vmul.f32 %v1451, 1.442695
        %v1466 = vpow.pop %v1465
        %v1467 = vmul.f32 %v1452, 1.442695
        %v1468 = vpow.pop %v1467
        %v1469 = vmul.f32 %v1429, %v1454
        %v1470 = vmul.f32 %v1430, %v1456
        %v1471 = vmul.f32 %v1431, %v1458
        %v1472 = vmul.f32 %v1432, %v1460
        %v1473 = vmul.f32 %v1433, %v1462
        %v1474 = vmul.f32 %v1434, %v1464
        %v1475 = vmul.f32 %v1435, %v1466
        %v1476 = vmul.f32 %v1436, %v1468
        %v1477 = vadd.f32 %v1297, %v1469
        %v1478 = vadd.f32 %v1298, %v1470
        %v1479 = vadd.f32 %v1299, %v1471
        %v1480 = vadd.f32 %v1300, %v1472
        %v1481 = vadd.f32 %v1301, %v1473
        %v1482 = vadd.f32 %v1302, %v1474
        %v1483 = vadd.f32 %v1303, %v1475
        %v1484 = vadd.f32 %v1304, %v1476
        %v1485 = vlaneseq
        %v1486 = vshrl.u32 %v1485, 7
        %v1487 = vsub.s32 6, %v1486
        %v1488 = vrot.slane %v353, %v1487
        %1489 = vset.pattern.permute.xlu0 6
        %1490 = vperm.xlu0 %1489, %v365
        %v1491 = vpop.permute.xlu0 %1490
        %1493 = vset.pattern.permute.xlu0 6
        %1494 = vperm.xlu0 %1493, %v366
        %v1495 = vpop.permute.xlu0 %1494
        %1497 = vset.pattern.permute.xlu0 6
        %1498 = vperm.xlu0 %1497, %v367
        %v1499 = vpop.permute.xlu0 %1498
        %1501 = vset.pattern.permute.xlu0 6
        %1502 = vperm.xlu0 %1501, %v368
        %v1503 = vpop.permute.xlu0 %1502
        %1505 = vset.pattern.permute.xlu0 6
        %1506 = vperm.xlu0 %1505, %v369
        %v1507 = vpop.permute.xlu0 %1506
        %1509 = vset.pattern.permute.xlu0 6
        %1510 = vperm.xlu0 %1509, %v370
        %v1511 = vpop.permute.xlu0 %1510
        %1513 = vset.pattern.permute.xlu0 6
        %1514 = vperm.xlu0 %1513, %v371
        %v1515 = vpop.permute.xlu0 %1514
        %1517 = vset.pattern.permute.xlu0 6
        %1518 = vperm.xlu0 %1517, %v372
        %v1519 = vpop.permute.xlu0 %1518
        %v1521 = vsub.f32 %v1488, %v1491
        %v1522 = vsub.f32 %v1488, %v1495
        %v1523 = vsub.f32 %v1488, %v1499
        %v1524 = vsub.f32 %v1488, %v1503
        %v1525 = vsub.f32 %v1488, %v1507
        %v1526 = vsub.f32 %v1488, %v1511
        %v1527 = vsub.f32 %v1488, %v1515
        %v1528 = vsub.f32 %v1488, %v1519
        %1529 = vset.pattern.permute.xlu0 6
        %1530 = vperm.xlu0 %1529, %v357
        %v1531 = vpop.permute.xlu0 %1530
        %1533 = vset.pattern.permute.xlu0 6
        %1534 = vperm.xlu0 %1533, %v358
        %v1535 = vpop.permute.xlu0 %1534
        %1537 = vset.pattern.permute.xlu0 6
        %1538 = vperm.xlu0 %1537, %v359
        %v1539 = vpop.permute.xlu0 %1538
        %1541 = vset.pattern.permute.xlu0 6
        %1542 = vperm.xlu0 %1541, %v360
        %v1543 = vpop.permute.xlu0 %1542
        %1545 = vset.pattern.permute.xlu0 6
        %1546 = vperm.xlu0 %1545, %v361
        %v1547 = vpop.permute.xlu0 %1546
        %1549 = vset.pattern.permute.xlu0 6
        %1550 = vperm.xlu0 %1549, %v362
        %v1551 = vpop.permute.xlu0 %1550
        %1553 = vset.pattern.permute.xlu0 6
        %1554 = vperm.xlu0 %1553, %v363
        %v1555 = vpop.permute.xlu0 %1554
        %1557 = vset.pattern.permute.xlu0 6
        %1558 = vperm.xlu0 %1557, %v364
        %v1559 = vpop.permute.xlu0 %1558
        %v1561 = vmul.f32 %v1521, %v1531
        %v1562 = vmul.f32 %v1522, %v1535
        %v1563 = vmul.f32 %v1523, %v1539
        %v1564 = vmul.f32 %v1524, %v1543
        %v1565 = vmul.f32 %v1525, %v1547
        %v1566 = vmul.f32 %v1526, %v1551
        %v1567 = vmul.f32 %v1527, %v1555
        %v1568 = vmul.f32 %v1528, %v1559
        %v1569 = vsub.f32 0.0, %v1561
        %v1570 = vsub.f32 0.0, %v1562
        %v1571 = vsub.f32 0.0, %v1563
        %v1572 = vsub.f32 0.0, %v1564
        %v1573 = vsub.f32 0.0, %v1565
        %v1574 = vsub.f32 0.0, %v1566
        %v1575 = vsub.f32 0.0, %v1567
        %v1576 = vsub.f32 0.0, %v1568
        %1577 = vset.pattern.permute.xlu0 6
        %1578 = vperm.xlu0 %1577, %v373
        %v1579 = vpop.permute.xlu0 %1578
        %1581 = vset.pattern.permute.xlu0 6
        %1582 = vperm.xlu0 %1581, %v374
        %v1583 = vpop.permute.xlu0 %1582
        %1585 = vset.pattern.permute.xlu0 6
        %1586 = vperm.xlu0 %1585, %v375
        %v1587 = vpop.permute.xlu0 %1586
        %1589 = vset.pattern.permute.xlu0 6
        %1590 = vperm.xlu0 %1589, %v376
        %v1591 = vpop.permute.xlu0 %1590
        %1593 = vset.pattern.permute.xlu0 6
        %1594 = vperm.xlu0 %1593, %v377
        %v1595 = vpop.permute.xlu0 %1594
        %1597 = vset.pattern.permute.xlu0 6
        %1598 = vperm.xlu0 %1597, %v378
        %v1599 = vpop.permute.xlu0 %1598
        %1601 = vset.pattern.permute.xlu0 6
        %1602 = vperm.xlu0 %1601, %v379
        %v1603 = vpop.permute.xlu0 %1602
        %1605 = vset.pattern.permute.xlu0 6
        %1606 = vperm.xlu0 %1605, %v380
        %v1607 = vpop.permute.xlu0 %1606
        %v1609 = vmul.f32 %v1579, %v1569
        %v1610 = vmul.f32 %v1583, %v1570
        %v1611 = vmul.f32 %v1587, %v1571
        %v1612 = vmul.f32 %v1591, %v1572
        %v1613 = vmul.f32 %v1595, %v1573
        %v1614 = vmul.f32 %v1599, %v1574
        %v1615 = vmul.f32 %v1603, %v1575
        %v1616 = vmul.f32 %v1607, %v1576
        %v1617 = vmul.f32 %v1561, %v1561
        %v1618 = vmul.f32 %v1562, %v1562
        %v1619 = vmul.f32 %v1563, %v1563
        %v1620 = vmul.f32 %v1564, %v1564
        %v1621 = vmul.f32 %v1565, %v1565
        %v1622 = vmul.f32 %v1566, %v1566
        %v1623 = vmul.f32 %v1567, %v1567
        %v1624 = vmul.f32 %v1568, %v1568
        %v1625 = vmul.f32 %v1617, -0.5
        %v1626 = vmul.f32 %v1618, -0.5
        %v1627 = vmul.f32 %v1619, -0.5
        %v1628 = vmul.f32 %v1620, -0.5
        %v1629 = vmul.f32 %v1621, -0.5
        %v1630 = vmul.f32 %v1622, -0.5
        %v1631 = vmul.f32 %v1623, -0.5
        %v1632 = vmul.f32 %v1624, -0.5
        %v1633 = vmul.f32 %v1625, 1.442695
        %v1634 = vpow.pop %v1633
        %v1635 = vmul.f32 %v1626, 1.442695
        %v1636 = vpow.pop %v1635
        %v1637 = vmul.f32 %v1627, 1.442695
        %v1638 = vpow.pop %v1637
        %v1639 = vmul.f32 %v1628, 1.442695
        %v1640 = vpow.pop %v1639
        %v1641 = vmul.f32 %v1629, 1.442695
        %v1642 = vpow.pop %v1641
        %v1643 = vmul.f32 %v1630, 1.442695
        %v1644 = vpow.pop %v1643
        %v1645 = vmul.f32 %v1631, 1.442695
        %v1646 = vpow.pop %v1645
        %v1647 = vmul.f32 %v1632, 1.442695
        %v1648 = vpow.pop %v1647
        %v1649 = vmul.f32 %v1609, %v1634
        %v1650 = vmul.f32 %v1610, %v1636
        %v1651 = vmul.f32 %v1611, %v1638
        %v1652 = vmul.f32 %v1612, %v1640
        %v1653 = vmul.f32 %v1613, %v1642
        %v1654 = vmul.f32 %v1614, %v1644
        %v1655 = vmul.f32 %v1615, %v1646
        %v1656 = vmul.f32 %v1616, %v1648
        %v1657 = vadd.f32 %v1477, %v1649
        %v1658 = vadd.f32 %v1478, %v1650
        %v1659 = vadd.f32 %v1479, %v1651
        %v1660 = vadd.f32 %v1480, %v1652
        %v1661 = vadd.f32 %v1481, %v1653
        %v1662 = vadd.f32 %v1482, %v1654
        %v1663 = vadd.f32 %v1483, %v1655
        %v1664 = vadd.f32 %v1484, %v1656
        %v1665 = vlaneseq
        %v1666 = vshrl.u32 %v1665, 7
        %v1667 = vsub.s32 7, %v1666
        %v1668 = vrot.slane %v353, %v1667
        %1669 = vset.pattern.permute.xlu0 7
        %1670 = vperm.xlu0 %1669, %v365
        %v1671 = vpop.permute.xlu0 %1670
        %1673 = vset.pattern.permute.xlu0 7
        %1674 = vperm.xlu0 %1673, %v366
        %v1675 = vpop.permute.xlu0 %1674
        %1677 = vset.pattern.permute.xlu0 7
        %1678 = vperm.xlu0 %1677, %v367
        %v1679 = vpop.permute.xlu0 %1678
        %1681 = vset.pattern.permute.xlu0 7
        %1682 = vperm.xlu0 %1681, %v368
        %v1683 = vpop.permute.xlu0 %1682
        %1685 = vset.pattern.permute.xlu0 7
        %1686 = vperm.xlu0 %1685, %v369
        %v1687 = vpop.permute.xlu0 %1686
        %1689 = vset.pattern.permute.xlu0 7
        %1690 = vperm.xlu0 %1689, %v370
        %v1691 = vpop.permute.xlu0 %1690
        %1693 = vset.pattern.permute.xlu0 7
        %1694 = vperm.xlu0 %1693, %v371
        %v1695 = vpop.permute.xlu0 %1694
        %1697 = vset.pattern.permute.xlu0 7
        %1698 = vperm.xlu0 %1697, %v372
        %v1699 = vpop.permute.xlu0 %1698
        %v1701 = vsub.f32 %v1668, %v1671
        %v1702 = vsub.f32 %v1668, %v1675
        %v1703 = vsub.f32 %v1668, %v1679
        %v1704 = vsub.f32 %v1668, %v1683
        %v1705 = vsub.f32 %v1668, %v1687
        %v1706 = vsub.f32 %v1668, %v1691
        %v1707 = vsub.f32 %v1668, %v1695
        %v1708 = vsub.f32 %v1668, %v1699
        %1709 = vset.pattern.permute.xlu0 7
        %1710 = vperm.xlu0 %1709, %v357
        %v1711 = vpop.permute.xlu0 %1710
        %1713 = vset.pattern.permute.xlu0 7
        %1714 = vperm.xlu0 %1713, %v358
        %v1715 = vpop.permute.xlu0 %1714
        %1717 = vset.pattern.permute.xlu0 7
        %1718 = vperm.xlu0 %1717, %v359
        %v1719 = vpop.permute.xlu0 %1718
        %1721 = vset.pattern.permute.xlu0 7
        %1722 = vperm.xlu0 %1721, %v360
        %v1723 = vpop.permute.xlu0 %1722
        %1725 = vset.pattern.permute.xlu0 7
        %1726 = vperm.xlu0 %1725, %v361
        %v1727 = vpop.permute.xlu0 %1726
        %1729 = vset.pattern.permute.xlu0 7
        %1730 = vperm.xlu0 %1729, %v362
        %v1731 = vpop.permute.xlu0 %1730
        %1733 = vset.pattern.permute.xlu0 7
        %1734 = vperm.xlu0 %1733, %v363
        %v1735 = vpop.permute.xlu0 %1734
        %1737 = vset.pattern.permute.xlu0 7
        %1738 = vperm.xlu0 %1737, %v364
        %v1739 = vpop.permute.xlu0 %1738
        %v1741 = vmul.f32 %v1701, %v1711
        %v1742 = vmul.f32 %v1702, %v1715
        %v1743 = vmul.f32 %v1703, %v1719
        %v1744 = vmul.f32 %v1704, %v1723
        %v1745 = vmul.f32 %v1705, %v1727
        %v1746 = vmul.f32 %v1706, %v1731
        %v1747 = vmul.f32 %v1707, %v1735
        %v1748 = vmul.f32 %v1708, %v1739
        %v1749 = vsub.f32 0.0, %v1741
        %v1750 = vsub.f32 0.0, %v1742
        %v1751 = vsub.f32 0.0, %v1743
        %v1752 = vsub.f32 0.0, %v1744
        %v1753 = vsub.f32 0.0, %v1745
        %v1754 = vsub.f32 0.0, %v1746
        %v1755 = vsub.f32 0.0, %v1747
        %v1756 = vsub.f32 0.0, %v1748
        %1757 = vset.pattern.permute.xlu0 7
        %1758 = vperm.xlu0 %1757, %v373
        %v1759 = vpop.permute.xlu0 %1758
        %1761 = vset.pattern.permute.xlu0 7
        %1762 = vperm.xlu0 %1761, %v374
        %v1763 = vpop.permute.xlu0 %1762
        %1765 = vset.pattern.permute.xlu0 7
        %1766 = vperm.xlu0 %1765, %v375
        %v1767 = vpop.permute.xlu0 %1766
        %1769 = vset.pattern.permute.xlu0 7
        %1770 = vperm.xlu0 %1769, %v376
        %v1771 = vpop.permute.xlu0 %1770
        %1773 = vset.pattern.permute.xlu0 7
        %1774 = vperm.xlu0 %1773, %v377
        %v1775 = vpop.permute.xlu0 %1774
        %1777 = vset.pattern.permute.xlu0 7
        %1778 = vperm.xlu0 %1777, %v378
        %v1779 = vpop.permute.xlu0 %1778
        %1781 = vset.pattern.permute.xlu0 7
        %1782 = vperm.xlu0 %1781, %v379
        %v1783 = vpop.permute.xlu0 %1782
        %1785 = vset.pattern.permute.xlu0 7
        %1786 = vperm.xlu0 %1785, %v380
        %v1787 = vpop.permute.xlu0 %1786
        %v1789 = vmul.f32 %v1759, %v1749
        %v1790 = vmul.f32 %v1763, %v1750
        %v1791 = vmul.f32 %v1767, %v1751
        %v1792 = vmul.f32 %v1771, %v1752
        %v1793 = vmul.f32 %v1775, %v1753
        %v1794 = vmul.f32 %v1779, %v1754
        %v1795 = vmul.f32 %v1783, %v1755
        %v1796 = vmul.f32 %v1787, %v1756
        %v1797 = vmul.f32 %v1741, %v1741
        %v1798 = vmul.f32 %v1742, %v1742
        %v1799 = vmul.f32 %v1743, %v1743
        %v1800 = vmul.f32 %v1744, %v1744
        %v1801 = vmul.f32 %v1745, %v1745
        %v1802 = vmul.f32 %v1746, %v1746
        %v1803 = vmul.f32 %v1747, %v1747
        %v1804 = vmul.f32 %v1748, %v1748
        %v1805 = vmul.f32 %v1797, -0.5
        %v1806 = vmul.f32 %v1798, -0.5
        %v1807 = vmul.f32 %v1799, -0.5
        %v1808 = vmul.f32 %v1800, -0.5
        %v1809 = vmul.f32 %v1801, -0.5
        %v1810 = vmul.f32 %v1802, -0.5
        %v1811 = vmul.f32 %v1803, -0.5
        %v1812 = vmul.f32 %v1804, -0.5
        %v1813 = vmul.f32 %v1805, 1.442695
        %v1814 = vpow.pop %v1813
        %v1815 = vmul.f32 %v1806, 1.442695
        %v1816 = vpow.pop %v1815
        %v1817 = vmul.f32 %v1807, 1.442695
        %v1818 = vpow.pop %v1817
        %v1819 = vmul.f32 %v1808, 1.442695
        %v1820 = vpow.pop %v1819
        %v1821 = vmul.f32 %v1809, 1.442695
        %v1822 = vpow.pop %v1821
        %v1823 = vmul.f32 %v1810, 1.442695
        %v1824 = vpow.pop %v1823
        %v1825 = vmul.f32 %v1811, 1.442695
        %v1826 = vpow.pop %v1825
        %v1827 = vmul.f32 %v1812, 1.442695
        %v1828 = vpow.pop %v1827
        %v1829 = vmul.f32 %v1789, %v1814
        %v1830 = vmul.f32 %v1790, %v1816
        %v1831 = vmul.f32 %v1791, %v1818
        %v1832 = vmul.f32 %v1792, %v1820
        %v1833 = vmul.f32 %v1793, %v1822
        %v1834 = vmul.f32 %v1794, %v1824
        %v1835 = vmul.f32 %v1795, %v1826
        %v1836 = vmul.f32 %v1796, %v1828
        %v1837 = vadd.f32 %v1657, %v1829
        %v1838 = vadd.f32 %v1658, %v1830
        %v1839 = vadd.f32 %v1659, %v1831
        %v1840 = vadd.f32 %v1660, %v1832
        %v1841 = vadd.f32 %v1661, %v1833
        %v1842 = vadd.f32 %v1662, %v1834
        %v1843 = vadd.f32 %v1663, %v1835
        %v1844 = vadd.f32 %v1664, %v1836
        %v1845 = vlaneseq
        %v1846 = vshrl.u32 %v1845, 7
        %v1847 = vsub.s32 0, %v1846
        %v1848 = vrot.slane %v354, %v1847
        %1849 = vset.pattern.permute.xlu0 8
        %1850 = vperm.xlu0 %1849, %v365
        %v1851 = vpop.permute.xlu0 %1850
        %1853 = vset.pattern.permute.xlu0 8
        %1854 = vperm.xlu0 %1853, %v366
        %v1855 = vpop.permute.xlu0 %1854
        %1857 = vset.pattern.permute.xlu0 8
        %1858 = vperm.xlu0 %1857, %v367
        %v1859 = vpop.permute.xlu0 %1858
        %1861 = vset.pattern.permute.xlu0 8
        %1862 = vperm.xlu0 %1861, %v368
        %v1863 = vpop.permute.xlu0 %1862
        %1865 = vset.pattern.permute.xlu0 8
        %1866 = vperm.xlu0 %1865, %v369
        %v1867 = vpop.permute.xlu0 %1866
        %1869 = vset.pattern.permute.xlu0 8
        %1870 = vperm.xlu0 %1869, %v370
        %v1871 = vpop.permute.xlu0 %1870
        %1873 = vset.pattern.permute.xlu0 8
        %1874 = vperm.xlu0 %1873, %v371
        %v1875 = vpop.permute.xlu0 %1874
        %1877 = vset.pattern.permute.xlu0 8
        %1878 = vperm.xlu0 %1877, %v372
        %v1879 = vpop.permute.xlu0 %1878
        %v1881 = vsub.f32 %v1848, %v1851
        %v1882 = vsub.f32 %v1848, %v1855
        %v1883 = vsub.f32 %v1848, %v1859
        %v1884 = vsub.f32 %v1848, %v1863
        %v1885 = vsub.f32 %v1848, %v1867
        %v1886 = vsub.f32 %v1848, %v1871
        %v1887 = vsub.f32 %v1848, %v1875
        %v1888 = vsub.f32 %v1848, %v1879
        %1889 = vset.pattern.permute.xlu0 8
        %1890 = vperm.xlu0 %1889, %v357
        %v1891 = vpop.permute.xlu0 %1890
        %1893 = vset.pattern.permute.xlu0 8
        %1894 = vperm.xlu0 %1893, %v358
        %v1895 = vpop.permute.xlu0 %1894
        %1897 = vset.pattern.permute.xlu0 8
        %1898 = vperm.xlu0 %1897, %v359
        %v1899 = vpop.permute.xlu0 %1898
        %1901 = vset.pattern.permute.xlu0 8
        %1902 = vperm.xlu0 %1901, %v360
        %v1903 = vpop.permute.xlu0 %1902
        %1905 = vset.pattern.permute.xlu0 8
        %1906 = vperm.xlu0 %1905, %v361
        %v1907 = vpop.permute.xlu0 %1906
        %1909 = vset.pattern.permute.xlu0 8
        %1910 = vperm.xlu0 %1909, %v362
        %v1911 = vpop.permute.xlu0 %1910
        %1913 = vset.pattern.permute.xlu0 8
        %1914 = vperm.xlu0 %1913, %v363
        %v1915 = vpop.permute.xlu0 %1914
        %1917 = vset.pattern.permute.xlu0 8
        %1918 = vperm.xlu0 %1917, %v364
        %v1919 = vpop.permute.xlu0 %1918
        %v1921 = vmul.f32 %v1881, %v1891
        %v1922 = vmul.f32 %v1882, %v1895
        %v1923 = vmul.f32 %v1883, %v1899
        %v1924 = vmul.f32 %v1884, %v1903
        %v1925 = vmul.f32 %v1885, %v1907
        %v1926 = vmul.f32 %v1886, %v1911
        %v1927 = vmul.f32 %v1887, %v1915
        %v1928 = vmul.f32 %v1888, %v1919
        %v1929 = vsub.f32 0.0, %v1921
        %v1930 = vsub.f32 0.0, %v1922
        %v1931 = vsub.f32 0.0, %v1923
        %v1932 = vsub.f32 0.0, %v1924
        %v1933 = vsub.f32 0.0, %v1925
        %v1934 = vsub.f32 0.0, %v1926
        %v1935 = vsub.f32 0.0, %v1927
        %v1936 = vsub.f32 0.0, %v1928
        %1937 = vset.pattern.permute.xlu0 8
        %1938 = vperm.xlu0 %1937, %v373
        %v1939 = vpop.permute.xlu0 %1938
        %1941 = vset.pattern.permute.xlu0 8
        %1942 = vperm.xlu0 %1941, %v374
        %v1943 = vpop.permute.xlu0 %1942
        %1945 = vset.pattern.permute.xlu0 8
        %1946 = vperm.xlu0 %1945, %v375
        %v1947 = vpop.permute.xlu0 %1946
        %1949 = vset.pattern.permute.xlu0 8
        %1950 = vperm.xlu0 %1949, %v376
        %v1951 = vpop.permute.xlu0 %1950
        %1953 = vset.pattern.permute.xlu0 8
        %1954 = vperm.xlu0 %1953, %v377
        %v1955 = vpop.permute.xlu0 %1954
        %1957 = vset.pattern.permute.xlu0 8
        %1958 = vperm.xlu0 %1957, %v378
        %v1959 = vpop.permute.xlu0 %1958
        %1961 = vset.pattern.permute.xlu0 8
        %1962 = vperm.xlu0 %1961, %v379
        %v1963 = vpop.permute.xlu0 %1962
        %1965 = vset.pattern.permute.xlu0 8
        %1966 = vperm.xlu0 %1965, %v380
        %v1967 = vpop.permute.xlu0 %1966
        %v1969 = vmul.f32 %v1939, %v1929
        %v1970 = vmul.f32 %v1943, %v1930
        %v1971 = vmul.f32 %v1947, %v1931
        %v1972 = vmul.f32 %v1951, %v1932
        %v1973 = vmul.f32 %v1955, %v1933
        %v1974 = vmul.f32 %v1959, %v1934
        %v1975 = vmul.f32 %v1963, %v1935
        %v1976 = vmul.f32 %v1967, %v1936
        %v1977 = vmul.f32 %v1921, %v1921
        %v1978 = vmul.f32 %v1922, %v1922
        %v1979 = vmul.f32 %v1923, %v1923
        %v1980 = vmul.f32 %v1924, %v1924
        %v1981 = vmul.f32 %v1925, %v1925
        %v1982 = vmul.f32 %v1926, %v1926
        %v1983 = vmul.f32 %v1927, %v1927
        %v1984 = vmul.f32 %v1928, %v1928
        %v1985 = vmul.f32 %v1977, -0.5
        %v1986 = vmul.f32 %v1978, -0.5
        %v1987 = vmul.f32 %v1979, -0.5
        %v1988 = vmul.f32 %v1980, -0.5
        %v1989 = vmul.f32 %v1981, -0.5
        %v1990 = vmul.f32 %v1982, -0.5
        %v1991 = vmul.f32 %v1983, -0.5
        %v1992 = vmul.f32 %v1984, -0.5
        %v1993 = vmul.f32 %v1985, 1.442695
        %v1994 = vpow.pop %v1993
        %v1995 = vmul.f32 %v1986, 1.442695
        %v1996 = vpow.pop %v1995
        %v1997 = vmul.f32 %v1987, 1.442695
        %v1998 = vpow.pop %v1997
        %v1999 = vmul.f32 %v1988, 1.442695
        %v2000 = vpow.pop %v1999
        %v2001 = vmul.f32 %v1989, 1.442695
        %v2002 = vpow.pop %v2001
        %v2003 = vmul.f32 %v1990, 1.442695
        %v2004 = vpow.pop %v2003
        %v2005 = vmul.f32 %v1991, 1.442695
        %v2006 = vpow.pop %v2005
        %v2007 = vmul.f32 %v1992, 1.442695
        %v2008 = vpow.pop %v2007
        %v2009 = vmul.f32 %v1969, %v1994
        %v2010 = vmul.f32 %v1970, %v1996
        %v2011 = vmul.f32 %v1971, %v1998
        %v2012 = vmul.f32 %v1972, %v2000
        %v2013 = vmul.f32 %v1973, %v2002
        %v2014 = vmul.f32 %v1974, %v2004
        %v2015 = vmul.f32 %v1975, %v2006
        %v2016 = vmul.f32 %v1976, %v2008
        %v2017 = vadd.f32 %v1837, %v2009
        %v2018 = vadd.f32 %v1838, %v2010
        %v2019 = vadd.f32 %v1839, %v2011
        %v2020 = vadd.f32 %v1840, %v2012
        %v2021 = vadd.f32 %v1841, %v2013
        %v2022 = vadd.f32 %v1842, %v2014
        %v2023 = vadd.f32 %v1843, %v2015
        %v2024 = vadd.f32 %v1844, %v2016
        %v2025 = vlaneseq
        %v2026 = vshrl.u32 %v2025, 7
        %v2027 = vsub.s32 1, %v2026
        %v2028 = vrot.slane %v354, %v2027
        %2029 = vset.pattern.permute.xlu0 9
        %2030 = vperm.xlu0 %2029, %v365
        %v2031 = vpop.permute.xlu0 %2030
        %2033 = vset.pattern.permute.xlu0 9
        %2034 = vperm.xlu0 %2033, %v366
        %v2035 = vpop.permute.xlu0 %2034
        %2037 = vset.pattern.permute.xlu0 9
        %2038 = vperm.xlu0 %2037, %v367
        %v2039 = vpop.permute.xlu0 %2038
        %2041 = vset.pattern.permute.xlu0 9
        %2042 = vperm.xlu0 %2041, %v368
        %v2043 = vpop.permute.xlu0 %2042
        %2045 = vset.pattern.permute.xlu0 9
        %2046 = vperm.xlu0 %2045, %v369
        %v2047 = vpop.permute.xlu0 %2046
        %2049 = vset.pattern.permute.xlu0 9
        %2050 = vperm.xlu0 %2049, %v370
        %v2051 = vpop.permute.xlu0 %2050
        %2053 = vset.pattern.permute.xlu0 9
        %2054 = vperm.xlu0 %2053, %v371
        %v2055 = vpop.permute.xlu0 %2054
        %2057 = vset.pattern.permute.xlu0 9
        %2058 = vperm.xlu0 %2057, %v372
        %v2059 = vpop.permute.xlu0 %2058
        %v2061 = vsub.f32 %v2028, %v2031
        %v2062 = vsub.f32 %v2028, %v2035
        %v2063 = vsub.f32 %v2028, %v2039
        %v2064 = vsub.f32 %v2028, %v2043
        %v2065 = vsub.f32 %v2028, %v2047
        %v2066 = vsub.f32 %v2028, %v2051
        %v2067 = vsub.f32 %v2028, %v2055
        %v2068 = vsub.f32 %v2028, %v2059
        %2069 = vset.pattern.permute.xlu0 9
        %2070 = vperm.xlu0 %2069, %v357
        %v2071 = vpop.permute.xlu0 %2070
        %2073 = vset.pattern.permute.xlu0 9
        %2074 = vperm.xlu0 %2073, %v358
        %v2075 = vpop.permute.xlu0 %2074
        %2077 = vset.pattern.permute.xlu0 9
        %2078 = vperm.xlu0 %2077, %v359
        %v2079 = vpop.permute.xlu0 %2078
        %2081 = vset.pattern.permute.xlu0 9
        %2082 = vperm.xlu0 %2081, %v360
        %v2083 = vpop.permute.xlu0 %2082
        %2085 = vset.pattern.permute.xlu0 9
        %2086 = vperm.xlu0 %2085, %v361
        %v2087 = vpop.permute.xlu0 %2086
        %2089 = vset.pattern.permute.xlu0 9
        %2090 = vperm.xlu0 %2089, %v362
        %v2091 = vpop.permute.xlu0 %2090
        %2093 = vset.pattern.permute.xlu0 9
        %2094 = vperm.xlu0 %2093, %v363
        %v2095 = vpop.permute.xlu0 %2094
        %2097 = vset.pattern.permute.xlu0 9
        %2098 = vperm.xlu0 %2097, %v364
        %v2099 = vpop.permute.xlu0 %2098
        %v2101 = vmul.f32 %v2061, %v2071
        %v2102 = vmul.f32 %v2062, %v2075
        %v2103 = vmul.f32 %v2063, %v2079
        %v2104 = vmul.f32 %v2064, %v2083
        %v2105 = vmul.f32 %v2065, %v2087
        %v2106 = vmul.f32 %v2066, %v2091
        %v2107 = vmul.f32 %v2067, %v2095
        %v2108 = vmul.f32 %v2068, %v2099
        %v2109 = vsub.f32 0.0, %v2101
        %v2110 = vsub.f32 0.0, %v2102
        %v2111 = vsub.f32 0.0, %v2103
        %v2112 = vsub.f32 0.0, %v2104
        %v2113 = vsub.f32 0.0, %v2105
        %v2114 = vsub.f32 0.0, %v2106
        %v2115 = vsub.f32 0.0, %v2107
        %v2116 = vsub.f32 0.0, %v2108
        %2117 = vset.pattern.permute.xlu0 9
        %2118 = vperm.xlu0 %2117, %v373
        %v2119 = vpop.permute.xlu0 %2118
        %2121 = vset.pattern.permute.xlu0 9
        %2122 = vperm.xlu0 %2121, %v374
        %v2123 = vpop.permute.xlu0 %2122
        %2125 = vset.pattern.permute.xlu0 9
        %2126 = vperm.xlu0 %2125, %v375
        %v2127 = vpop.permute.xlu0 %2126
        %2129 = vset.pattern.permute.xlu0 9
        %2130 = vperm.xlu0 %2129, %v376
        %v2131 = vpop.permute.xlu0 %2130
        %2133 = vset.pattern.permute.xlu0 9
        %2134 = vperm.xlu0 %2133, %v377
        %v2135 = vpop.permute.xlu0 %2134
        %2137 = vset.pattern.permute.xlu0 9
        %2138 = vperm.xlu0 %2137, %v378
        %v2139 = vpop.permute.xlu0 %2138
        %2141 = vset.pattern.permute.xlu0 9
        %2142 = vperm.xlu0 %2141, %v379
        %v2143 = vpop.permute.xlu0 %2142
        %2145 = vset.pattern.permute.xlu0 9
        %2146 = vperm.xlu0 %2145, %v380
        %v2147 = vpop.permute.xlu0 %2146
        %v2149 = vmul.f32 %v2119, %v2109
        %v2150 = vmul.f32 %v2123, %v2110
        %v2151 = vmul.f32 %v2127, %v2111
        %v2152 = vmul.f32 %v2131, %v2112
        %v2153 = vmul.f32 %v2135, %v2113
        %v2154 = vmul.f32 %v2139, %v2114
        %v2155 = vmul.f32 %v2143, %v2115
        %v2156 = vmul.f32 %v2147, %v2116
        %v2157 = vmul.f32 %v2101, %v2101
        %v2158 = vmul.f32 %v2102, %v2102
        %v2159 = vmul.f32 %v2103, %v2103
        %v2160 = vmul.f32 %v2104, %v2104
        %v2161 = vmul.f32 %v2105, %v2105
        %v2162 = vmul.f32 %v2106, %v2106
        %v2163 = vmul.f32 %v2107, %v2107
        %v2164 = vmul.f32 %v2108, %v2108
        %v2165 = vmul.f32 %v2157, -0.5
        %v2166 = vmul.f32 %v2158, -0.5
        %v2167 = vmul.f32 %v2159, -0.5
        %v2168 = vmul.f32 %v2160, -0.5
        %v2169 = vmul.f32 %v2161, -0.5
        %v2170 = vmul.f32 %v2162, -0.5
        %v2171 = vmul.f32 %v2163, -0.5
        %v2172 = vmul.f32 %v2164, -0.5
        %v2173 = vmul.f32 %v2165, 1.442695
        %v2174 = vpow.pop %v2173
        %v2175 = vmul.f32 %v2166, 1.442695
        %v2176 = vpow.pop %v2175
        %v2177 = vmul.f32 %v2167, 1.442695
        %v2178 = vpow.pop %v2177
        %v2179 = vmul.f32 %v2168, 1.442695
        %v2180 = vpow.pop %v2179
        %v2181 = vmul.f32 %v2169, 1.442695
        %v2182 = vpow.pop %v2181
        %v2183 = vmul.f32 %v2170, 1.442695
        %v2184 = vpow.pop %v2183
        %v2185 = vmul.f32 %v2171, 1.442695
        %v2186 = vpow.pop %v2185
        %v2187 = vmul.f32 %v2172, 1.442695
        %v2188 = vpow.pop %v2187
        %v2189 = vmul.f32 %v2149, %v2174
        %v2190 = vmul.f32 %v2150, %v2176
        %v2191 = vmul.f32 %v2151, %v2178
        %v2192 = vmul.f32 %v2152, %v2180
        %v2193 = vmul.f32 %v2153, %v2182
        %v2194 = vmul.f32 %v2154, %v2184
        %v2195 = vmul.f32 %v2155, %v2186
        %v2196 = vmul.f32 %v2156, %v2188
        %v2197 = vadd.f32 %v2017, %v2189
        %v2198 = vadd.f32 %v2018, %v2190
        %v2199 = vadd.f32 %v2019, %v2191
        %v2200 = vadd.f32 %v2020, %v2192
        %v2201 = vadd.f32 %v2021, %v2193
        %v2202 = vadd.f32 %v2022, %v2194
        %v2203 = vadd.f32 %v2023, %v2195
        %v2204 = vadd.f32 %v2024, %v2196
        %v2205 = vlaneseq
        %v2206 = vshrl.u32 %v2205, 7
        %v2207 = vsub.s32 2, %v2206
        %v2208 = vrot.slane %v354, %v2207
        %2209 = vset.pattern.permute.xlu0 10
        %2210 = vperm.xlu0 %2209, %v365
        %v2211 = vpop.permute.xlu0 %2210
        %2213 = vset.pattern.permute.xlu0 10
        %2214 = vperm.xlu0 %2213, %v366
        %v2215 = vpop.permute.xlu0 %2214
        %2217 = vset.pattern.permute.xlu0 10
        %2218 = vperm.xlu0 %2217, %v367
        %v2219 = vpop.permute.xlu0 %2218
        %2221 = vset.pattern.permute.xlu0 10
        %2222 = vperm.xlu0 %2221, %v368
        %v2223 = vpop.permute.xlu0 %2222
        %2225 = vset.pattern.permute.xlu0 10
        %2226 = vperm.xlu0 %2225, %v369
        %v2227 = vpop.permute.xlu0 %2226
        %2229 = vset.pattern.permute.xlu0 10
        %2230 = vperm.xlu0 %2229, %v370
        %v2231 = vpop.permute.xlu0 %2230
        %2233 = vset.pattern.permute.xlu0 10
        %2234 = vperm.xlu0 %2233, %v371
        %v2235 = vpop.permute.xlu0 %2234
        %2237 = vset.pattern.permute.xlu0 10
        %2238 = vperm.xlu0 %2237, %v372
        %v2239 = vpop.permute.xlu0 %2238
        %v2241 = vsub.f32 %v2208, %v2211
        %v2242 = vsub.f32 %v2208, %v2215
        %v2243 = vsub.f32 %v2208, %v2219
        %v2244 = vsub.f32 %v2208, %v2223
        %v2245 = vsub.f32 %v2208, %v2227
        %v2246 = vsub.f32 %v2208, %v2231
        %v2247 = vsub.f32 %v2208, %v2235
        %v2248 = vsub.f32 %v2208, %v2239
        %2249 = vset.pattern.permute.xlu0 10
        %2250 = vperm.xlu0 %2249, %v357
        %v2251 = vpop.permute.xlu0 %2250
        %2253 = vset.pattern.permute.xlu0 10
        %2254 = vperm.xlu0 %2253, %v358
        %v2255 = vpop.permute.xlu0 %2254
        %2257 = vset.pattern.permute.xlu0 10
        %2258 = vperm.xlu0 %2257, %v359
        %v2259 = vpop.permute.xlu0 %2258
        %2261 = vset.pattern.permute.xlu0 10
        %2262 = vperm.xlu0 %2261, %v360
        %v2263 = vpop.permute.xlu0 %2262
        %2265 = vset.pattern.permute.xlu0 10
        %2266 = vperm.xlu0 %2265, %v361
        %v2267 = vpop.permute.xlu0 %2266
        %2269 = vset.pattern.permute.xlu0 10
        %2270 = vperm.xlu0 %2269, %v362
        %v2271 = vpop.permute.xlu0 %2270
        %2273 = vset.pattern.permute.xlu0 10
        %2274 = vperm.xlu0 %2273, %v363
        %v2275 = vpop.permute.xlu0 %2274
        %2277 = vset.pattern.permute.xlu0 10
        %2278 = vperm.xlu0 %2277, %v364
        %v2279 = vpop.permute.xlu0 %2278
        %v2281 = vmul.f32 %v2241, %v2251
        %v2282 = vmul.f32 %v2242, %v2255
        %v2283 = vmul.f32 %v2243, %v2259
        %v2284 = vmul.f32 %v2244, %v2263
        %v2285 = vmul.f32 %v2245, %v2267
        %v2286 = vmul.f32 %v2246, %v2271
        %v2287 = vmul.f32 %v2247, %v2275
        %v2288 = vmul.f32 %v2248, %v2279
        %v2289 = vsub.f32 0.0, %v2281
        %v2290 = vsub.f32 0.0, %v2282
        %v2291 = vsub.f32 0.0, %v2283
        %v2292 = vsub.f32 0.0, %v2284
        %v2293 = vsub.f32 0.0, %v2285
        %v2294 = vsub.f32 0.0, %v2286
        %v2295 = vsub.f32 0.0, %v2287
        %v2296 = vsub.f32 0.0, %v2288
        %2297 = vset.pattern.permute.xlu0 10
        %2298 = vperm.xlu0 %2297, %v373
        %v2299 = vpop.permute.xlu0 %2298
        %2301 = vset.pattern.permute.xlu0 10
        %2302 = vperm.xlu0 %2301, %v374
        %v2303 = vpop.permute.xlu0 %2302
        %2305 = vset.pattern.permute.xlu0 10
        %2306 = vperm.xlu0 %2305, %v375
        %v2307 = vpop.permute.xlu0 %2306
        %2309 = vset.pattern.permute.xlu0 10
        %2310 = vperm.xlu0 %2309, %v376
        %v2311 = vpop.permute.xlu0 %2310
        %2313 = vset.pattern.permute.xlu0 10
        %2314 = vperm.xlu0 %2313, %v377
        %v2315 = vpop.permute.xlu0 %2314
        %2317 = vset.pattern.permute.xlu0 10
        %2318 = vperm.xlu0 %2317, %v378
        %v2319 = vpop.permute.xlu0 %2318
        %2321 = vset.pattern.permute.xlu0 10
        %2322 = vperm.xlu0 %2321, %v379
        %v2323 = vpop.permute.xlu0 %2322
        %2325 = vset.pattern.permute.xlu0 10
        %2326 = vperm.xlu0 %2325, %v380
        %v2327 = vpop.permute.xlu0 %2326
        %v2329 = vmul.f32 %v2299, %v2289
        %v2330 = vmul.f32 %v2303, %v2290
        %v2331 = vmul.f32 %v2307, %v2291
        %v2332 = vmul.f32 %v2311, %v2292
        %v2333 = vmul.f32 %v2315, %v2293
        %v2334 = vmul.f32 %v2319, %v2294
        %v2335 = vmul.f32 %v2323, %v2295
        %v2336 = vmul.f32 %v2327, %v2296
        %v2337 = vmul.f32 %v2281, %v2281
        %v2338 = vmul.f32 %v2282, %v2282
        %v2339 = vmul.f32 %v2283, %v2283
        %v2340 = vmul.f32 %v2284, %v2284
        %v2341 = vmul.f32 %v2285, %v2285
        %v2342 = vmul.f32 %v2286, %v2286
        %v2343 = vmul.f32 %v2287, %v2287
        %v2344 = vmul.f32 %v2288, %v2288
        %v2345 = vmul.f32 %v2337, -0.5
        %v2346 = vmul.f32 %v2338, -0.5
        %v2347 = vmul.f32 %v2339, -0.5
        %v2348 = vmul.f32 %v2340, -0.5
        %v2349 = vmul.f32 %v2341, -0.5
        %v2350 = vmul.f32 %v2342, -0.5
        %v2351 = vmul.f32 %v2343, -0.5
        %v2352 = vmul.f32 %v2344, -0.5
        %v2353 = vmul.f32 %v2345, 1.442695
        %v2354 = vpow.pop %v2353
        %v2355 = vmul.f32 %v2346, 1.442695
        %v2356 = vpow.pop %v2355
        %v2357 = vmul.f32 %v2347, 1.442695
        %v2358 = vpow.pop %v2357
        %v2359 = vmul.f32 %v2348, 1.442695
        %v2360 = vpow.pop %v2359
        %v2361 = vmul.f32 %v2349, 1.442695
        %v2362 = vpow.pop %v2361
        %v2363 = vmul.f32 %v2350, 1.442695
        %v2364 = vpow.pop %v2363
        %v2365 = vmul.f32 %v2351, 1.442695
        %v2366 = vpow.pop %v2365
        %v2367 = vmul.f32 %v2352, 1.442695
        %v2368 = vpow.pop %v2367
        %v2369 = vmul.f32 %v2329, %v2354
        %v2370 = vmul.f32 %v2330, %v2356
        %v2371 = vmul.f32 %v2331, %v2358
        %v2372 = vmul.f32 %v2332, %v2360
        %v2373 = vmul.f32 %v2333, %v2362
        %v2374 = vmul.f32 %v2334, %v2364
        %v2375 = vmul.f32 %v2335, %v2366
        %v2376 = vmul.f32 %v2336, %v2368
        %v2377 = vadd.f32 %v2197, %v2369
        %v2378 = vadd.f32 %v2198, %v2370
        %v2379 = vadd.f32 %v2199, %v2371
        %v2380 = vadd.f32 %v2200, %v2372
        %v2381 = vadd.f32 %v2201, %v2373
        %v2382 = vadd.f32 %v2202, %v2374
        %v2383 = vadd.f32 %v2203, %v2375
        %v2384 = vadd.f32 %v2204, %v2376
        %v2385 = vlaneseq
        %v2386 = vshrl.u32 %v2385, 7
        %v2387 = vsub.s32 3, %v2386
        %v2388 = vrot.slane %v354, %v2387
        %2389 = vset.pattern.permute.xlu0 11
        %2390 = vperm.xlu0 %2389, %v365
        %v2391 = vpop.permute.xlu0 %2390
        %2393 = vset.pattern.permute.xlu0 11
        %2394 = vperm.xlu0 %2393, %v366
        %v2395 = vpop.permute.xlu0 %2394
        %2397 = vset.pattern.permute.xlu0 11
        %2398 = vperm.xlu0 %2397, %v367
        %v2399 = vpop.permute.xlu0 %2398
        %2401 = vset.pattern.permute.xlu0 11
        %2402 = vperm.xlu0 %2401, %v368
        %v2403 = vpop.permute.xlu0 %2402
        %2405 = vset.pattern.permute.xlu0 11
        %2406 = vperm.xlu0 %2405, %v369
        %v2407 = vpop.permute.xlu0 %2406
        %2409 = vset.pattern.permute.xlu0 11
        %2410 = vperm.xlu0 %2409, %v370
        %v2411 = vpop.permute.xlu0 %2410
        %2413 = vset.pattern.permute.xlu0 11
        %2414 = vperm.xlu0 %2413, %v371
        %v2415 = vpop.permute.xlu0 %2414
        %2417 = vset.pattern.permute.xlu0 11
        %2418 = vperm.xlu0 %2417, %v372
        %v2419 = vpop.permute.xlu0 %2418
        %v2421 = vsub.f32 %v2388, %v2391
        %v2422 = vsub.f32 %v2388, %v2395
        %v2423 = vsub.f32 %v2388, %v2399
        %v2424 = vsub.f32 %v2388, %v2403
        %v2425 = vsub.f32 %v2388, %v2407
        %v2426 = vsub.f32 %v2388, %v2411
        %v2427 = vsub.f32 %v2388, %v2415
        %v2428 = vsub.f32 %v2388, %v2419
        %2429 = vset.pattern.permute.xlu0 11
        %2430 = vperm.xlu0 %2429, %v357
        %v2431 = vpop.permute.xlu0 %2430
        %2433 = vset.pattern.permute.xlu0 11
        %2434 = vperm.xlu0 %2433, %v358
        %v2435 = vpop.permute.xlu0 %2434
        %2437 = vset.pattern.permute.xlu0 11
        %2438 = vperm.xlu0 %2437, %v359
        %v2439 = vpop.permute.xlu0 %2438
        %2441 = vset.pattern.permute.xlu0 11
        %2442 = vperm.xlu0 %2441, %v360
        %v2443 = vpop.permute.xlu0 %2442
        %2445 = vset.pattern.permute.xlu0 11
        %2446 = vperm.xlu0 %2445, %v361
        %v2447 = vpop.permute.xlu0 %2446
        %2449 = vset.pattern.permute.xlu0 11
        %2450 = vperm.xlu0 %2449, %v362
        %v2451 = vpop.permute.xlu0 %2450
        %2453 = vset.pattern.permute.xlu0 11
        %2454 = vperm.xlu0 %2453, %v363
        %v2455 = vpop.permute.xlu0 %2454
        %2457 = vset.pattern.permute.xlu0 11
        %2458 = vperm.xlu0 %2457, %v364
        %v2459 = vpop.permute.xlu0 %2458
        %v2461 = vmul.f32 %v2421, %v2431
        %v2462 = vmul.f32 %v2422, %v2435
        %v2463 = vmul.f32 %v2423, %v2439
        %v2464 = vmul.f32 %v2424, %v2443
        %v2465 = vmul.f32 %v2425, %v2447
        %v2466 = vmul.f32 %v2426, %v2451
        %v2467 = vmul.f32 %v2427, %v2455
        %v2468 = vmul.f32 %v2428, %v2459
        %v2469 = vsub.f32 0.0, %v2461
        %v2470 = vsub.f32 0.0, %v2462
        %v2471 = vsub.f32 0.0, %v2463
        %v2472 = vsub.f32 0.0, %v2464
        %v2473 = vsub.f32 0.0, %v2465
        %v2474 = vsub.f32 0.0, %v2466
        %v2475 = vsub.f32 0.0, %v2467
        %v2476 = vsub.f32 0.0, %v2468
        %2477 = vset.pattern.permute.xlu0 11
        %2478 = vperm.xlu0 %2477, %v373
        %v2479 = vpop.permute.xlu0 %2478
        %2481 = vset.pattern.permute.xlu0 11
        %2482 = vperm.xlu0 %2481, %v374
        %v2483 = vpop.permute.xlu0 %2482
        %2485 = vset.pattern.permute.xlu0 11
        %2486 = vperm.xlu0 %2485, %v375
        %v2487 = vpop.permute.xlu0 %2486
        %2489 = vset.pattern.permute.xlu0 11
        %2490 = vperm.xlu0 %2489, %v376
        %v2491 = vpop.permute.xlu0 %2490
        %2493 = vset.pattern.permute.xlu0 11
        %2494 = vperm.xlu0 %2493, %v377
        %v2495 = vpop.permute.xlu0 %2494
        %2497 = vset.pattern.permute.xlu0 11
        %2498 = vperm.xlu0 %2497, %v378
        %v2499 = vpop.permute.xlu0 %2498
        %2501 = vset.pattern.permute.xlu0 11
        %2502 = vperm.xlu0 %2501, %v379
        %v2503 = vpop.permute.xlu0 %2502
        %2505 = vset.pattern.permute.xlu0 11
        %2506 = vperm.xlu0 %2505, %v380
        %v2507 = vpop.permute.xlu0 %2506
        %v2509 = vmul.f32 %v2479, %v2469
        %v2510 = vmul.f32 %v2483, %v2470
        %v2511 = vmul.f32 %v2487, %v2471
        %v2512 = vmul.f32 %v2491, %v2472
        %v2513 = vmul.f32 %v2495, %v2473
        %v2514 = vmul.f32 %v2499, %v2474
        %v2515 = vmul.f32 %v2503, %v2475
        %v2516 = vmul.f32 %v2507, %v2476
        %v2517 = vmul.f32 %v2461, %v2461
        %v2518 = vmul.f32 %v2462, %v2462
        %v2519 = vmul.f32 %v2463, %v2463
        %v2520 = vmul.f32 %v2464, %v2464
        %v2521 = vmul.f32 %v2465, %v2465
        %v2522 = vmul.f32 %v2466, %v2466
        %v2523 = vmul.f32 %v2467, %v2467
        %v2524 = vmul.f32 %v2468, %v2468
        %v2525 = vmul.f32 %v2517, -0.5
        %v2526 = vmul.f32 %v2518, -0.5
        %v2527 = vmul.f32 %v2519, -0.5
        %v2528 = vmul.f32 %v2520, -0.5
        %v2529 = vmul.f32 %v2521, -0.5
        %v2530 = vmul.f32 %v2522, -0.5
        %v2531 = vmul.f32 %v2523, -0.5
        %v2532 = vmul.f32 %v2524, -0.5
        %v2533 = vmul.f32 %v2525, 1.442695
        %v2534 = vpow.pop %v2533
        %v2535 = vmul.f32 %v2526, 1.442695
        %v2536 = vpow.pop %v2535
        %v2537 = vmul.f32 %v2527, 1.442695
        %v2538 = vpow.pop %v2537
        %v2539 = vmul.f32 %v2528, 1.442695
        %v2540 = vpow.pop %v2539
        %v2541 = vmul.f32 %v2529, 1.442695
        %v2542 = vpow.pop %v2541
        %v2543 = vmul.f32 %v2530, 1.442695
        %v2544 = vpow.pop %v2543
        %v2545 = vmul.f32 %v2531, 1.442695
        %v2546 = vpow.pop %v2545
        %v2547 = vmul.f32 %v2532, 1.442695
        %v2548 = vpow.pop %v2547
        %v2549 = vmul.f32 %v2509, %v2534
        %v2550 = vmul.f32 %v2510, %v2536
        %v2551 = vmul.f32 %v2511, %v2538
        %v2552 = vmul.f32 %v2512, %v2540
        %v2553 = vmul.f32 %v2513, %v2542
        %v2554 = vmul.f32 %v2514, %v2544
        %v2555 = vmul.f32 %v2515, %v2546
        %v2556 = vmul.f32 %v2516, %v2548
        %v2557 = vadd.f32 %v2377, %v2549
        %v2558 = vadd.f32 %v2378, %v2550
        %v2559 = vadd.f32 %v2379, %v2551
        %v2560 = vadd.f32 %v2380, %v2552
        %v2561 = vadd.f32 %v2381, %v2553
        %v2562 = vadd.f32 %v2382, %v2554
        %v2563 = vadd.f32 %v2383, %v2555
        %v2564 = vadd.f32 %v2384, %v2556
        %v2565 = vlaneseq
        %v2566 = vshrl.u32 %v2565, 7
        %v2567 = vsub.s32 4, %v2566
        %v2568 = vrot.slane %v354, %v2567
        %2569 = vset.pattern.permute.xlu0 12
        %2570 = vperm.xlu0 %2569, %v365
        %v2571 = vpop.permute.xlu0 %2570
        %2573 = vset.pattern.permute.xlu0 12
        %2574 = vperm.xlu0 %2573, %v366
        %v2575 = vpop.permute.xlu0 %2574
        %2577 = vset.pattern.permute.xlu0 12
        %2578 = vperm.xlu0 %2577, %v367
        %v2579 = vpop.permute.xlu0 %2578
        %2581 = vset.pattern.permute.xlu0 12
        %2582 = vperm.xlu0 %2581, %v368
        %v2583 = vpop.permute.xlu0 %2582
        %2585 = vset.pattern.permute.xlu0 12
        %2586 = vperm.xlu0 %2585, %v369
        %v2587 = vpop.permute.xlu0 %2586
        %2589 = vset.pattern.permute.xlu0 12
        %2590 = vperm.xlu0 %2589, %v370
        %v2591 = vpop.permute.xlu0 %2590
        %2593 = vset.pattern.permute.xlu0 12
        %2594 = vperm.xlu0 %2593, %v371
        %v2595 = vpop.permute.xlu0 %2594
        %2597 = vset.pattern.permute.xlu0 12
        %2598 = vperm.xlu0 %2597, %v372
        %v2599 = vpop.permute.xlu0 %2598
        %v2601 = vsub.f32 %v2568, %v2571
        %v2602 = vsub.f32 %v2568, %v2575
        %v2603 = vsub.f32 %v2568, %v2579
        %v2604 = vsub.f32 %v2568, %v2583
        %v2605 = vsub.f32 %v2568, %v2587
        %v2606 = vsub.f32 %v2568, %v2591
        %v2607 = vsub.f32 %v2568, %v2595
        %v2608 = vsub.f32 %v2568, %v2599
        %2609 = vset.pattern.permute.xlu0 12
        %2610 = vperm.xlu0 %2609, %v357
        %v2611 = vpop.permute.xlu0 %2610
        %2613 = vset.pattern.permute.xlu0 12
        %2614 = vperm.xlu0 %2613, %v358
        %v2615 = vpop.permute.xlu0 %2614
        %2617 = vset.pattern.permute.xlu0 12
        %2618 = vperm.xlu0 %2617, %v359
        %v2619 = vpop.permute.xlu0 %2618
        %2621 = vset.pattern.permute.xlu0 12
        %2622 = vperm.xlu0 %2621, %v360
        %v2623 = vpop.permute.xlu0 %2622
        %2625 = vset.pattern.permute.xlu0 12
        %2626 = vperm.xlu0 %2625, %v361
        %v2627 = vpop.permute.xlu0 %2626
        %2629 = vset.pattern.permute.xlu0 12
        %2630 = vperm.xlu0 %2629, %v362
        %v2631 = vpop.permute.xlu0 %2630
        %2633 = vset.pattern.permute.xlu0 12
        %2634 = vperm.xlu0 %2633, %v363
        %v2635 = vpop.permute.xlu0 %2634
        %2637 = vset.pattern.permute.xlu0 12
        %2638 = vperm.xlu0 %2637, %v364
        %v2639 = vpop.permute.xlu0 %2638
        %v2641 = vmul.f32 %v2601, %v2611
        %v2642 = vmul.f32 %v2602, %v2615
        %v2643 = vmul.f32 %v2603, %v2619
        %v2644 = vmul.f32 %v2604, %v2623
        %v2645 = vmul.f32 %v2605, %v2627
        %v2646 = vmul.f32 %v2606, %v2631
        %v2647 = vmul.f32 %v2607, %v2635
        %v2648 = vmul.f32 %v2608, %v2639
        %v2649 = vsub.f32 0.0, %v2641
        %v2650 = vsub.f32 0.0, %v2642
        %v2651 = vsub.f32 0.0, %v2643
        %v2652 = vsub.f32 0.0, %v2644
        %v2653 = vsub.f32 0.0, %v2645
        %v2654 = vsub.f32 0.0, %v2646
        %v2655 = vsub.f32 0.0, %v2647
        %v2656 = vsub.f32 0.0, %v2648
        %2657 = vset.pattern.permute.xlu0 12
        %2658 = vperm.xlu0 %2657, %v373
        %v2659 = vpop.permute.xlu0 %2658
        %2661 = vset.pattern.permute.xlu0 12
        %2662 = vperm.xlu0 %2661, %v374
        %v2663 = vpop.permute.xlu0 %2662
        %2665 = vset.pattern.permute.xlu0 12
        %2666 = vperm.xlu0 %2665, %v375
        %v2667 = vpop.permute.xlu0 %2666
        %2669 = vset.pattern.permute.xlu0 12
        %2670 = vperm.xlu0 %2669, %v376
        %v2671 = vpop.permute.xlu0 %2670
        %2673 = vset.pattern.permute.xlu0 12
        %2674 = vperm.xlu0 %2673, %v377
        %v2675 = vpop.permute.xlu0 %2674
        %2677 = vset.pattern.permute.xlu0 12
        %2678 = vperm.xlu0 %2677, %v378
        %v2679 = vpop.permute.xlu0 %2678
        %2681 = vset.pattern.permute.xlu0 12
        %2682 = vperm.xlu0 %2681, %v379
        %v2683 = vpop.permute.xlu0 %2682
        %2685 = vset.pattern.permute.xlu0 12
        %2686 = vperm.xlu0 %2685, %v380
        %v2687 = vpop.permute.xlu0 %2686
        %v2689 = vmul.f32 %v2659, %v2649
        %v2690 = vmul.f32 %v2663, %v2650
        %v2691 = vmul.f32 %v2667, %v2651
        %v2692 = vmul.f32 %v2671, %v2652
        %v2693 = vmul.f32 %v2675, %v2653
        %v2694 = vmul.f32 %v2679, %v2654
        %v2695 = vmul.f32 %v2683, %v2655
        %v2696 = vmul.f32 %v2687, %v2656
        %v2697 = vmul.f32 %v2641, %v2641
        %v2698 = vmul.f32 %v2642, %v2642
        %v2699 = vmul.f32 %v2643, %v2643
        %v2700 = vmul.f32 %v2644, %v2644
        %v2701 = vmul.f32 %v2645, %v2645
        %v2702 = vmul.f32 %v2646, %v2646
        %v2703 = vmul.f32 %v2647, %v2647
        %v2704 = vmul.f32 %v2648, %v2648
        %v2705 = vmul.f32 %v2697, -0.5
        %v2706 = vmul.f32 %v2698, -0.5
        %v2707 = vmul.f32 %v2699, -0.5
        %v2708 = vmul.f32 %v2700, -0.5
        %v2709 = vmul.f32 %v2701, -0.5
        %v2710 = vmul.f32 %v2702, -0.5
        %v2711 = vmul.f32 %v2703, -0.5
        %v2712 = vmul.f32 %v2704, -0.5
        %v2713 = vmul.f32 %v2705, 1.442695
        %v2714 = vpow.pop %v2713
        %v2715 = vmul.f32 %v2706, 1.442695
        %v2716 = vpow.pop %v2715
        %v2717 = vmul.f32 %v2707, 1.442695
        %v2718 = vpow.pop %v2717
        %v2719 = vmul.f32 %v2708, 1.442695
        %v2720 = vpow.pop %v2719
        %v2721 = vmul.f32 %v2709, 1.442695
        %v2722 = vpow.pop %v2721
        %v2723 = vmul.f32 %v2710, 1.442695
        %v2724 = vpow.pop %v2723
        %v2725 = vmul.f32 %v2711, 1.442695
        %v2726 = vpow.pop %v2725
        %v2727 = vmul.f32 %v2712, 1.442695
        %v2728 = vpow.pop %v2727
        %v2729 = vmul.f32 %v2689, %v2714
        %v2730 = vmul.f32 %v2690, %v2716
        %v2731 = vmul.f32 %v2691, %v2718
        %v2732 = vmul.f32 %v2692, %v2720
        %v2733 = vmul.f32 %v2693, %v2722
        %v2734 = vmul.f32 %v2694, %v2724
        %v2735 = vmul.f32 %v2695, %v2726
        %v2736 = vmul.f32 %v2696, %v2728
        %v2737 = vadd.f32 %v2557, %v2729
        %v2738 = vadd.f32 %v2558, %v2730
        %v2739 = vadd.f32 %v2559, %v2731
        %v2740 = vadd.f32 %v2560, %v2732
        %v2741 = vadd.f32 %v2561, %v2733
        %v2742 = vadd.f32 %v2562, %v2734
        %v2743 = vadd.f32 %v2563, %v2735
        %v2744 = vadd.f32 %v2564, %v2736
        %v2745 = vlaneseq
        %v2746 = vshrl.u32 %v2745, 7
        %v2747 = vsub.s32 5, %v2746
        %v2748 = vrot.slane %v354, %v2747
        %2749 = vset.pattern.permute.xlu0 13
        %2750 = vperm.xlu0 %2749, %v365
        %v2751 = vpop.permute.xlu0 %2750
        %2753 = vset.pattern.permute.xlu0 13
        %2754 = vperm.xlu0 %2753, %v366
        %v2755 = vpop.permute.xlu0 %2754
        %2757 = vset.pattern.permute.xlu0 13
        %2758 = vperm.xlu0 %2757, %v367
        %v2759 = vpop.permute.xlu0 %2758
        %2761 = vset.pattern.permute.xlu0 13
        %2762 = vperm.xlu0 %2761, %v368
        %v2763 = vpop.permute.xlu0 %2762
        %2765 = vset.pattern.permute.xlu0 13
        %2766 = vperm.xlu0 %2765, %v369
        %v2767 = vpop.permute.xlu0 %2766
        %2769 = vset.pattern.permute.xlu0 13
        %2770 = vperm.xlu0 %2769, %v370
        %v2771 = vpop.permute.xlu0 %2770
        %2773 = vset.pattern.permute.xlu0 13
        %2774 = vperm.xlu0 %2773, %v371
        %v2775 = vpop.permute.xlu0 %2774
        %2777 = vset.pattern.permute.xlu0 13
        %2778 = vperm.xlu0 %2777, %v372
        %v2779 = vpop.permute.xlu0 %2778
        %v2781 = vsub.f32 %v2748, %v2751
        %v2782 = vsub.f32 %v2748, %v2755
        %v2783 = vsub.f32 %v2748, %v2759
        %v2784 = vsub.f32 %v2748, %v2763
        %v2785 = vsub.f32 %v2748, %v2767
        %v2786 = vsub.f32 %v2748, %v2771
        %v2787 = vsub.f32 %v2748, %v2775
        %v2788 = vsub.f32 %v2748, %v2779
        %2789 = vset.pattern.permute.xlu0 13
        %2790 = vperm.xlu0 %2789, %v357
        %v2791 = vpop.permute.xlu0 %2790
        %2793 = vset.pattern.permute.xlu0 13
        %2794 = vperm.xlu0 %2793, %v358
        %v2795 = vpop.permute.xlu0 %2794
        %2797 = vset.pattern.permute.xlu0 13
        %2798 = vperm.xlu0 %2797, %v359
        %v2799 = vpop.permute.xlu0 %2798
        %2801 = vset.pattern.permute.xlu0 13
        %2802 = vperm.xlu0 %2801, %v360
        %v2803 = vpop.permute.xlu0 %2802
        %2805 = vset.pattern.permute.xlu0 13
        %2806 = vperm.xlu0 %2805, %v361
        %v2807 = vpop.permute.xlu0 %2806
        %2809 = vset.pattern.permute.xlu0 13
        %2810 = vperm.xlu0 %2809, %v362
        %v2811 = vpop.permute.xlu0 %2810
        %2813 = vset.pattern.permute.xlu0 13
        %2814 = vperm.xlu0 %2813, %v363
        %v2815 = vpop.permute.xlu0 %2814
        %2817 = vset.pattern.permute.xlu0 13
        %2818 = vperm.xlu0 %2817, %v364
        %v2819 = vpop.permute.xlu0 %2818
        %v2821 = vmul.f32 %v2781, %v2791
        %v2822 = vmul.f32 %v2782, %v2795
        %v2823 = vmul.f32 %v2783, %v2799
        %v2824 = vmul.f32 %v2784, %v2803
        %v2825 = vmul.f32 %v2785, %v2807
        %v2826 = vmul.f32 %v2786, %v2811
        %v2827 = vmul.f32 %v2787, %v2815
        %v2828 = vmul.f32 %v2788, %v2819
        %v2829 = vsub.f32 0.0, %v2821
        %v2830 = vsub.f32 0.0, %v2822
        %v2831 = vsub.f32 0.0, %v2823
        %v2832 = vsub.f32 0.0, %v2824
        %v2833 = vsub.f32 0.0, %v2825
        %v2834 = vsub.f32 0.0, %v2826
        %v2835 = vsub.f32 0.0, %v2827
        %v2836 = vsub.f32 0.0, %v2828
        %2837 = vset.pattern.permute.xlu0 13
        %2838 = vperm.xlu0 %2837, %v373
        %v2839 = vpop.permute.xlu0 %2838
        %2841 = vset.pattern.permute.xlu0 13
        %2842 = vperm.xlu0 %2841, %v374
        %v2843 = vpop.permute.xlu0 %2842
        %2845 = vset.pattern.permute.xlu0 13
        %2846 = vperm.xlu0 %2845, %v375
        %v2847 = vpop.permute.xlu0 %2846
        %2849 = vset.pattern.permute.xlu0 13
        %2850 = vperm.xlu0 %2849, %v376
        %v2851 = vpop.permute.xlu0 %2850
        %2853 = vset.pattern.permute.xlu0 13
        %2854 = vperm.xlu0 %2853, %v377
        %v2855 = vpop.permute.xlu0 %2854
        %2857 = vset.pattern.permute.xlu0 13
        %2858 = vperm.xlu0 %2857, %v378
        %v2859 = vpop.permute.xlu0 %2858
        %2861 = vset.pattern.permute.xlu0 13
        %2862 = vperm.xlu0 %2861, %v379
        %v2863 = vpop.permute.xlu0 %2862
        %2865 = vset.pattern.permute.xlu0 13
        %2866 = vperm.xlu0 %2865, %v380
        %v2867 = vpop.permute.xlu0 %2866
        %v2869 = vmul.f32 %v2839, %v2829
        %v2870 = vmul.f32 %v2843, %v2830
        %v2871 = vmul.f32 %v2847, %v2831
        %v2872 = vmul.f32 %v2851, %v2832
        %v2873 = vmul.f32 %v2855, %v2833
        %v2874 = vmul.f32 %v2859, %v2834
        %v2875 = vmul.f32 %v2863, %v2835
        %v2876 = vmul.f32 %v2867, %v2836
        %v2877 = vmul.f32 %v2821, %v2821
        %v2878 = vmul.f32 %v2822, %v2822
        %v2879 = vmul.f32 %v2823, %v2823
        %v2880 = vmul.f32 %v2824, %v2824
        %v2881 = vmul.f32 %v2825, %v2825
        %v2882 = vmul.f32 %v2826, %v2826
        %v2883 = vmul.f32 %v2827, %v2827
        %v2884 = vmul.f32 %v2828, %v2828
        %v2885 = vmul.f32 %v2877, -0.5
        %v2886 = vmul.f32 %v2878, -0.5
        %v2887 = vmul.f32 %v2879, -0.5
        %v2888 = vmul.f32 %v2880, -0.5
        %v2889 = vmul.f32 %v2881, -0.5
        %v2890 = vmul.f32 %v2882, -0.5
        %v2891 = vmul.f32 %v2883, -0.5
        %v2892 = vmul.f32 %v2884, -0.5
        %v2893 = vmul.f32 %v2885, 1.442695
        %v2894 = vpow.pop %v2893
        %v2895 = vmul.f32 %v2886, 1.442695
        %v2896 = vpow.pop %v2895
        %v2897 = vmul.f32 %v2887, 1.442695
        %v2898 = vpow.pop %v2897
        %v2899 = vmul.f32 %v2888, 1.442695
        %v2900 = vpow.pop %v2899
        %v2901 = vmul.f32 %v2889, 1.442695
        %v2902 = vpow.pop %v2901
        %v2903 = vmul.f32 %v2890, 1.442695
        %v2904 = vpow.pop %v2903
        %v2905 = vmul.f32 %v2891, 1.442695
        %v2906 = vpow.pop %v2905
        %v2907 = vmul.f32 %v2892, 1.442695
        %v2908 = vpow.pop %v2907
        %v2909 = vmul.f32 %v2869, %v2894
        %v2910 = vmul.f32 %v2870, %v2896
        %v2911 = vmul.f32 %v2871, %v2898
        %v2912 = vmul.f32 %v2872, %v2900
        %v2913 = vmul.f32 %v2873, %v2902
        %v2914 = vmul.f32 %v2874, %v2904
        %v2915 = vmul.f32 %v2875, %v2906
        %v2916 = vmul.f32 %v2876, %v2908
        %v2917 = vadd.f32 %v2737, %v2909
        %v2918 = vadd.f32 %v2738, %v2910
        %v2919 = vadd.f32 %v2739, %v2911
        %v2920 = vadd.f32 %v2740, %v2912
        %v2921 = vadd.f32 %v2741, %v2913
        %v2922 = vadd.f32 %v2742, %v2914
        %v2923 = vadd.f32 %v2743, %v2915
        %v2924 = vadd.f32 %v2744, %v2916
        %v2925 = vlaneseq
        %v2926 = vshrl.u32 %v2925, 7
        %v2927 = vsub.s32 6, %v2926
        %v2928 = vrot.slane %v354, %v2927
        %2929 = vset.pattern.permute.xlu0 14
        %2930 = vperm.xlu0 %2929, %v365
        %v2931 = vpop.permute.xlu0 %2930
        %2933 = vset.pattern.permute.xlu0 14
        %2934 = vperm.xlu0 %2933, %v366
        %v2935 = vpop.permute.xlu0 %2934
        %2937 = vset.pattern.permute.xlu0 14
        %2938 = vperm.xlu0 %2937, %v367
        %v2939 = vpop.permute.xlu0 %2938
        %2941 = vset.pattern.permute.xlu0 14
        %2942 = vperm.xlu0 %2941, %v368
        %v2943 = vpop.permute.xlu0 %2942
        %2945 = vset.pattern.permute.xlu0 14
        %2946 = vperm.xlu0 %2945, %v369
        %v2947 = vpop.permute.xlu0 %2946
        %2949 = vset.pattern.permute.xlu0 14
        %2950 = vperm.xlu0 %2949, %v370
        %v2951 = vpop.permute.xlu0 %2950
        %2953 = vset.pattern.permute.xlu0 14
        %2954 = vperm.xlu0 %2953, %v371
        %v2955 = vpop.permute.xlu0 %2954
        %2957 = vset.pattern.permute.xlu0 14
        %2958 = vperm.xlu0 %2957, %v372
        %v2959 = vpop.permute.xlu0 %2958
        %v2961 = vsub.f32 %v2928, %v2931
        %v2962 = vsub.f32 %v2928, %v2935
        %v2963 = vsub.f32 %v2928, %v2939
        %v2964 = vsub.f32 %v2928, %v2943
        %v2965 = vsub.f32 %v2928, %v2947
        %v2966 = vsub.f32 %v2928, %v2951
        %v2967 = vsub.f32 %v2928, %v2955
        %v2968 = vsub.f32 %v2928, %v2959
        %2969 = vset.pattern.permute.xlu0 14
        %2970 = vperm.xlu0 %2969, %v357
        %v2971 = vpop.permute.xlu0 %2970
        %2973 = vset.pattern.permute.xlu0 14
        %2974 = vperm.xlu0 %2973, %v358
        %v2975 = vpop.permute.xlu0 %2974
        %2977 = vset.pattern.permute.xlu0 14
        %2978 = vperm.xlu0 %2977, %v359
        %v2979 = vpop.permute.xlu0 %2978
        %2981 = vset.pattern.permute.xlu0 14
        %2982 = vperm.xlu0 %2981, %v360
        %v2983 = vpop.permute.xlu0 %2982
        %2985 = vset.pattern.permute.xlu0 14
        %2986 = vperm.xlu0 %2985, %v361
        %v2987 = vpop.permute.xlu0 %2986
        %2989 = vset.pattern.permute.xlu0 14
        %2990 = vperm.xlu0 %2989, %v362
        %v2991 = vpop.permute.xlu0 %2990
        %2993 = vset.pattern.permute.xlu0 14
        %2994 = vperm.xlu0 %2993, %v363
        %v2995 = vpop.permute.xlu0 %2994
        %2997 = vset.pattern.permute.xlu0 14
        %2998 = vperm.xlu0 %2997, %v364
        %v2999 = vpop.permute.xlu0 %2998
        %v3001 = vmul.f32 %v2961, %v2971
        %v3002 = vmul.f32 %v2962, %v2975
        %v3003 = vmul.f32 %v2963, %v2979
        %v3004 = vmul.f32 %v2964, %v2983
        %v3005 = vmul.f32 %v2965, %v2987
        %v3006 = vmul.f32 %v2966, %v2991
        %v3007 = vmul.f32 %v2967, %v2995
        %v3008 = vmul.f32 %v2968, %v2999
        %v3009 = vsub.f32 0.0, %v3001
        %v3010 = vsub.f32 0.0, %v3002
        %v3011 = vsub.f32 0.0, %v3003
        %v3012 = vsub.f32 0.0, %v3004
        %v3013 = vsub.f32 0.0, %v3005
        %v3014 = vsub.f32 0.0, %v3006
        %v3015 = vsub.f32 0.0, %v3007
        %v3016 = vsub.f32 0.0, %v3008
        %3017 = vset.pattern.permute.xlu0 14
        %3018 = vperm.xlu0 %3017, %v373
        %v3019 = vpop.permute.xlu0 %3018
        %3021 = vset.pattern.permute.xlu0 14
        %3022 = vperm.xlu0 %3021, %v374
        %v3023 = vpop.permute.xlu0 %3022
        %3025 = vset.pattern.permute.xlu0 14
        %3026 = vperm.xlu0 %3025, %v375
        %v3027 = vpop.permute.xlu0 %3026
        %3029 = vset.pattern.permute.xlu0 14
        %3030 = vperm.xlu0 %3029, %v376
        %v3031 = vpop.permute.xlu0 %3030
        %3033 = vset.pattern.permute.xlu0 14
        %3034 = vperm.xlu0 %3033, %v377
        %v3035 = vpop.permute.xlu0 %3034
        %3037 = vset.pattern.permute.xlu0 14
        %3038 = vperm.xlu0 %3037, %v378
        %v3039 = vpop.permute.xlu0 %3038
        %3041 = vset.pattern.permute.xlu0 14
        %3042 = vperm.xlu0 %3041, %v379
        %v3043 = vpop.permute.xlu0 %3042
        %3045 = vset.pattern.permute.xlu0 14
        %3046 = vperm.xlu0 %3045, %v380
        %v3047 = vpop.permute.xlu0 %3046
        %v3049 = vmul.f32 %v3019, %v3009
        %v3050 = vmul.f32 %v3023, %v3010
        %v3051 = vmul.f32 %v3027, %v3011
        %v3052 = vmul.f32 %v3031, %v3012
        %v3053 = vmul.f32 %v3035, %v3013
        %v3054 = vmul.f32 %v3039, %v3014
        %v3055 = vmul.f32 %v3043, %v3015
        %v3056 = vmul.f32 %v3047, %v3016
        %v3057 = vmul.f32 %v3001, %v3001
        %v3058 = vmul.f32 %v3002, %v3002
        %v3059 = vmul.f32 %v3003, %v3003
        %v3060 = vmul.f32 %v3004, %v3004
        %v3061 = vmul.f32 %v3005, %v3005
        %v3062 = vmul.f32 %v3006, %v3006
        %v3063 = vmul.f32 %v3007, %v3007
        %v3064 = vmul.f32 %v3008, %v3008
        %v3065 = vmul.f32 %v3057, -0.5
        %v3066 = vmul.f32 %v3058, -0.5
        %v3067 = vmul.f32 %v3059, -0.5
        %v3068 = vmul.f32 %v3060, -0.5
        %v3069 = vmul.f32 %v3061, -0.5
        %v3070 = vmul.f32 %v3062, -0.5
        %v3071 = vmul.f32 %v3063, -0.5
        %v3072 = vmul.f32 %v3064, -0.5
        %v3073 = vmul.f32 %v3065, 1.442695
        %v3074 = vpow.pop %v3073
        %v3075 = vmul.f32 %v3066, 1.442695
        %v3076 = vpow.pop %v3075
        %v3077 = vmul.f32 %v3067, 1.442695
        %v3078 = vpow.pop %v3077
        %v3079 = vmul.f32 %v3068, 1.442695
        %v3080 = vpow.pop %v3079
        %v3081 = vmul.f32 %v3069, 1.442695
        %v3082 = vpow.pop %v3081
        %v3083 = vmul.f32 %v3070, 1.442695
        %v3084 = vpow.pop %v3083
        %v3085 = vmul.f32 %v3071, 1.442695
        %v3086 = vpow.pop %v3085
        %v3087 = vmul.f32 %v3072, 1.442695
        %v3088 = vpow.pop %v3087
        %v3089 = vmul.f32 %v3049, %v3074
        %v3090 = vmul.f32 %v3050, %v3076
        %v3091 = vmul.f32 %v3051, %v3078
        %v3092 = vmul.f32 %v3052, %v3080
        %v3093 = vmul.f32 %v3053, %v3082
        %v3094 = vmul.f32 %v3054, %v3084
        %v3095 = vmul.f32 %v3055, %v3086
        %v3096 = vmul.f32 %v3056, %v3088
        %v3097 = vadd.f32 %v2917, %v3089
        %v3098 = vadd.f32 %v2918, %v3090
        %v3099 = vadd.f32 %v2919, %v3091
        %v3100 = vadd.f32 %v2920, %v3092
        %v3101 = vadd.f32 %v2921, %v3093
        %v3102 = vadd.f32 %v2922, %v3094
        %v3103 = vadd.f32 %v2923, %v3095
        %v3104 = vadd.f32 %v2924, %v3096
        %v3105 = vlaneseq
        %v3106 = vshrl.u32 %v3105, 7
        %v3107 = vsub.s32 7, %v3106
        %v3108 = vrot.slane %v354, %v3107
        %3109 = vset.pattern.permute.xlu0 15
        %3110 = vperm.xlu0 %3109, %v365
        %v3111 = vpop.permute.xlu0 %3110
        %3113 = vset.pattern.permute.xlu0 15
        %3114 = vperm.xlu0 %3113, %v366
        %v3115 = vpop.permute.xlu0 %3114
        %3117 = vset.pattern.permute.xlu0 15
        %3118 = vperm.xlu0 %3117, %v367
        %v3119 = vpop.permute.xlu0 %3118
        %3121 = vset.pattern.permute.xlu0 15
        %3122 = vperm.xlu0 %3121, %v368
        %v3123 = vpop.permute.xlu0 %3122
        %3125 = vset.pattern.permute.xlu0 15
        %3126 = vperm.xlu0 %3125, %v369
        %v3127 = vpop.permute.xlu0 %3126
        %3129 = vset.pattern.permute.xlu0 15
        %3130 = vperm.xlu0 %3129, %v370
        %v3131 = vpop.permute.xlu0 %3130
        %3133 = vset.pattern.permute.xlu0 15
        %3134 = vperm.xlu0 %3133, %v371
        %v3135 = vpop.permute.xlu0 %3134
        %3137 = vset.pattern.permute.xlu0 15
        %3138 = vperm.xlu0 %3137, %v372
        %v3139 = vpop.permute.xlu0 %3138
        %v3141 = vsub.f32 %v3108, %v3111
        %v3142 = vsub.f32 %v3108, %v3115
        %v3143 = vsub.f32 %v3108, %v3119
        %v3144 = vsub.f32 %v3108, %v3123
        %v3145 = vsub.f32 %v3108, %v3127
        %v3146 = vsub.f32 %v3108, %v3131
        %v3147 = vsub.f32 %v3108, %v3135
        %v3148 = vsub.f32 %v3108, %v3139
        %3149 = vset.pattern.permute.xlu0 15
        %3150 = vperm.xlu0 %3149, %v357
        %v3151 = vpop.permute.xlu0 %3150
        %3153 = vset.pattern.permute.xlu0 15
        %3154 = vperm.xlu0 %3153, %v358
        %v3155 = vpop.permute.xlu0 %3154
        %3157 = vset.pattern.permute.xlu0 15
        %3158 = vperm.xlu0 %3157, %v359
        %v3159 = vpop.permute.xlu0 %3158
        %3161 = vset.pattern.permute.xlu0 15
        %3162 = vperm.xlu0 %3161, %v360
        %v3163 = vpop.permute.xlu0 %3162
        %3165 = vset.pattern.permute.xlu0 15
        %3166 = vperm.xlu0 %3165, %v361
        %v3167 = vpop.permute.xlu0 %3166
        %3169 = vset.pattern.permute.xlu0 15
        %3170 = vperm.xlu0 %3169, %v362
        %v3171 = vpop.permute.xlu0 %3170
        %3173 = vset.pattern.permute.xlu0 15
        %3174 = vperm.xlu0 %3173, %v363
        %v3175 = vpop.permute.xlu0 %3174
        %3177 = vset.pattern.permute.xlu0 15
        %3178 = vperm.xlu0 %3177, %v364
        %v3179 = vpop.permute.xlu0 %3178
        %v3181 = vmul.f32 %v3141, %v3151
        %v3182 = vmul.f32 %v3142, %v3155
        %v3183 = vmul.f32 %v3143, %v3159
        %v3184 = vmul.f32 %v3144, %v3163
        %v3185 = vmul.f32 %v3145, %v3167
        %v3186 = vmul.f32 %v3146, %v3171
        %v3187 = vmul.f32 %v3147, %v3175
        %v3188 = vmul.f32 %v3148, %v3179
        %v3189 = vsub.f32 0.0, %v3181
        %v3190 = vsub.f32 0.0, %v3182
        %v3191 = vsub.f32 0.0, %v3183
        %v3192 = vsub.f32 0.0, %v3184
        %v3193 = vsub.f32 0.0, %v3185
        %v3194 = vsub.f32 0.0, %v3186
        %v3195 = vsub.f32 0.0, %v3187
        %v3196 = vsub.f32 0.0, %v3188
        %3197 = vset.pattern.permute.xlu0 15
        %3198 = vperm.xlu0 %3197, %v373
        %v3199 = vpop.permute.xlu0 %3198
        %3201 = vset.pattern.permute.xlu0 15
        %3202 = vperm.xlu0 %3201, %v374
        %v3203 = vpop.permute.xlu0 %3202
        %3205 = vset.pattern.permute.xlu0 15
        %3206 = vperm.xlu0 %3205, %v375
        %v3207 = vpop.permute.xlu0 %3206
        %3209 = vset.pattern.permute.xlu0 15
        %3210 = vperm.xlu0 %3209, %v376
        %v3211 = vpop.permute.xlu0 %3210
        %3213 = vset.pattern.permute.xlu0 15
        %3214 = vperm.xlu0 %3213, %v377
        %v3215 = vpop.permute.xlu0 %3214
        %3217 = vset.pattern.permute.xlu0 15
        %3218 = vperm.xlu0 %3217, %v378
        %v3219 = vpop.permute.xlu0 %3218
        %3221 = vset.pattern.permute.xlu0 15
        %3222 = vperm.xlu0 %3221, %v379
        %v3223 = vpop.permute.xlu0 %3222
        %3225 = vset.pattern.permute.xlu0 15
        %3226 = vperm.xlu0 %3225, %v380
        %v3227 = vpop.permute.xlu0 %3226
        %v3229 = vmul.f32 %v3199, %v3189
        %v3230 = vmul.f32 %v3203, %v3190
        %v3231 = vmul.f32 %v3207, %v3191
        %v3232 = vmul.f32 %v3211, %v3192
        %v3233 = vmul.f32 %v3215, %v3193
        %v3234 = vmul.f32 %v3219, %v3194
        %v3235 = vmul.f32 %v3223, %v3195
        %v3236 = vmul.f32 %v3227, %v3196
        %v3237 = vmul.f32 %v3181, %v3181
        %v3238 = vmul.f32 %v3182, %v3182
        %v3239 = vmul.f32 %v3183, %v3183
        %v3240 = vmul.f32 %v3184, %v3184
        %v3241 = vmul.f32 %v3185, %v3185
        %v3242 = vmul.f32 %v3186, %v3186
        %v3243 = vmul.f32 %v3187, %v3187
        %v3244 = vmul.f32 %v3188, %v3188
        %v3245 = vmul.f32 %v3237, -0.5
        %v3246 = vmul.f32 %v3238, -0.5
        %v3247 = vmul.f32 %v3239, -0.5
        %v3248 = vmul.f32 %v3240, -0.5
        %v3249 = vmul.f32 %v3241, -0.5
        %v3250 = vmul.f32 %v3242, -0.5
        %v3251 = vmul.f32 %v3243, -0.5
        %v3252 = vmul.f32 %v3244, -0.5
        %v3253 = vmul.f32 %v3245, 1.442695
        %v3254 = vpow.pop %v3253
        %v3255 = vmul.f32 %v3246, 1.442695
        %v3256 = vpow.pop %v3255
        %v3257 = vmul.f32 %v3247, 1.442695
        %v3258 = vpow.pop %v3257
        %v3259 = vmul.f32 %v3248, 1.442695
        %v3260 = vpow.pop %v3259
        %v3261 = vmul.f32 %v3249, 1.442695
        %v3262 = vpow.pop %v3261
        %v3263 = vmul.f32 %v3250, 1.442695
        %v3264 = vpow.pop %v3263
        %v3265 = vmul.f32 %v3251, 1.442695
        %v3266 = vpow.pop %v3265
        %v3267 = vmul.f32 %v3252, 1.442695
        %v3268 = vpow.pop %v3267
        %v3269 = vmul.f32 %v3229, %v3254
        %v3270 = vmul.f32 %v3230, %v3256
        %v3271 = vmul.f32 %v3231, %v3258
        %v3272 = vmul.f32 %v3232, %v3260
        %v3273 = vmul.f32 %v3233, %v3262
        %v3274 = vmul.f32 %v3234, %v3264
        %v3275 = vmul.f32 %v3235, %v3266
        %v3276 = vmul.f32 %v3236, %v3268
        %v3277 = vadd.f32 %v3097, %v3269
        %v3278 = vadd.f32 %v3098, %v3270
        %v3279 = vadd.f32 %v3099, %v3271
        %v3280 = vadd.f32 %v3100, %v3272
        %v3281 = vadd.f32 %v3101, %v3273
        %v3282 = vadd.f32 %v3102, %v3274
        %v3283 = vadd.f32 %v3103, %v3275
        %v3284 = vadd.f32 %v3104, %v3276
        %v3285 = vlaneseq
        %v3286 = vshrl.u32 %v3285, 7
        %v3287 = vsub.s32 0, %v3286
        %v3288 = vrot.slane %v355, %v3287
        %3289 = vset.pattern.permute.xlu0 16
        %3290 = vperm.xlu0 %3289, %v365
        %v3291 = vpop.permute.xlu0 %3290
        %3293 = vset.pattern.permute.xlu0 16
        %3294 = vperm.xlu0 %3293, %v366
        %v3295 = vpop.permute.xlu0 %3294
        %3297 = vset.pattern.permute.xlu0 16
        %3298 = vperm.xlu0 %3297, %v367
        %v3299 = vpop.permute.xlu0 %3298
        %3301 = vset.pattern.permute.xlu0 16
        %3302 = vperm.xlu0 %3301, %v368
        %v3303 = vpop.permute.xlu0 %3302
        %3305 = vset.pattern.permute.xlu0 16
        %3306 = vperm.xlu0 %3305, %v369
        %v3307 = vpop.permute.xlu0 %3306
        %3309 = vset.pattern.permute.xlu0 16
        %3310 = vperm.xlu0 %3309, %v370
        %v3311 = vpop.permute.xlu0 %3310
        %3313 = vset.pattern.permute.xlu0 16
        %3314 = vperm.xlu0 %3313, %v371
        %v3315 = vpop.permute.xlu0 %3314
        %3317 = vset.pattern.permute.xlu0 16
        %3318 = vperm.xlu0 %3317, %v372
        %v3319 = vpop.permute.xlu0 %3318
        %v3321 = vsub.f32 %v3288, %v3291
        %v3322 = vsub.f32 %v3288, %v3295
        %v3323 = vsub.f32 %v3288, %v3299
        %v3324 = vsub.f32 %v3288, %v3303
        %v3325 = vsub.f32 %v3288, %v3307
        %v3326 = vsub.f32 %v3288, %v3311
        %v3327 = vsub.f32 %v3288, %v3315
        %v3328 = vsub.f32 %v3288, %v3319
        %3329 = vset.pattern.permute.xlu0 16
        %3330 = vperm.xlu0 %3329, %v357
        %v3331 = vpop.permute.xlu0 %3330
        %3333 = vset.pattern.permute.xlu0 16
        %3334 = vperm.xlu0 %3333, %v358
        %v3335 = vpop.permute.xlu0 %3334
        %3337 = vset.pattern.permute.xlu0 16
        %3338 = vperm.xlu0 %3337, %v359
        %v3339 = vpop.permute.xlu0 %3338
        %3341 = vset.pattern.permute.xlu0 16
        %3342 = vperm.xlu0 %3341, %v360
        %v3343 = vpop.permute.xlu0 %3342
        %3345 = vset.pattern.permute.xlu0 16
        %3346 = vperm.xlu0 %3345, %v361
        %v3347 = vpop.permute.xlu0 %3346
        %3349 = vset.pattern.permute.xlu0 16
        %3350 = vperm.xlu0 %3349, %v362
        %v3351 = vpop.permute.xlu0 %3350
        %3353 = vset.pattern.permute.xlu0 16
        %3354 = vperm.xlu0 %3353, %v363
        %v3355 = vpop.permute.xlu0 %3354
        %3357 = vset.pattern.permute.xlu0 16
        %3358 = vperm.xlu0 %3357, %v364
        %v3359 = vpop.permute.xlu0 %3358
        %v3361 = vmul.f32 %v3321, %v3331
        %v3362 = vmul.f32 %v3322, %v3335
        %v3363 = vmul.f32 %v3323, %v3339
        %v3364 = vmul.f32 %v3324, %v3343
        %v3365 = vmul.f32 %v3325, %v3347
        %v3366 = vmul.f32 %v3326, %v3351
        %v3367 = vmul.f32 %v3327, %v3355
        %v3368 = vmul.f32 %v3328, %v3359
        %v3369 = vsub.f32 0.0, %v3361
        %v3370 = vsub.f32 0.0, %v3362
        %v3371 = vsub.f32 0.0, %v3363
        %v3372 = vsub.f32 0.0, %v3364
        %v3373 = vsub.f32 0.0, %v3365
        %v3374 = vsub.f32 0.0, %v3366
        %v3375 = vsub.f32 0.0, %v3367
        %v3376 = vsub.f32 0.0, %v3368
        %3377 = vset.pattern.permute.xlu0 16
        %3378 = vperm.xlu0 %3377, %v373
        %v3379 = vpop.permute.xlu0 %3378
        %3381 = vset.pattern.permute.xlu0 16
        %3382 = vperm.xlu0 %3381, %v374
        %v3383 = vpop.permute.xlu0 %3382
        %3385 = vset.pattern.permute.xlu0 16
        %3386 = vperm.xlu0 %3385, %v375
        %v3387 = vpop.permute.xlu0 %3386
        %3389 = vset.pattern.permute.xlu0 16
        %3390 = vperm.xlu0 %3389, %v376
        %v3391 = vpop.permute.xlu0 %3390
        %3393 = vset.pattern.permute.xlu0 16
        %3394 = vperm.xlu0 %3393, %v377
        %v3395 = vpop.permute.xlu0 %3394
        %3397 = vset.pattern.permute.xlu0 16
        %3398 = vperm.xlu0 %3397, %v378
        %v3399 = vpop.permute.xlu0 %3398
        %3401 = vset.pattern.permute.xlu0 16
        %3402 = vperm.xlu0 %3401, %v379
        %v3403 = vpop.permute.xlu0 %3402
        %3405 = vset.pattern.permute.xlu0 16
        %3406 = vperm.xlu0 %3405, %v380
        %v3407 = vpop.permute.xlu0 %3406
        %v3409 = vmul.f32 %v3379, %v3369
        %v3410 = vmul.f32 %v3383, %v3370
        %v3411 = vmul.f32 %v3387, %v3371
        %v3412 = vmul.f32 %v3391, %v3372
        %v3413 = vmul.f32 %v3395, %v3373
        %v3414 = vmul.f32 %v3399, %v3374
        %v3415 = vmul.f32 %v3403, %v3375
        %v3416 = vmul.f32 %v3407, %v3376
        %v3417 = vmul.f32 %v3361, %v3361
        %v3418 = vmul.f32 %v3362, %v3362
        %v3419 = vmul.f32 %v3363, %v3363
        %v3420 = vmul.f32 %v3364, %v3364
        %v3421 = vmul.f32 %v3365, %v3365
        %v3422 = vmul.f32 %v3366, %v3366
        %v3423 = vmul.f32 %v3367, %v3367
        %v3424 = vmul.f32 %v3368, %v3368
        %v3425 = vmul.f32 %v3417, -0.5
        %v3426 = vmul.f32 %v3418, -0.5
        %v3427 = vmul.f32 %v3419, -0.5
        %v3428 = vmul.f32 %v3420, -0.5
        %v3429 = vmul.f32 %v3421, -0.5
        %v3430 = vmul.f32 %v3422, -0.5
        %v3431 = vmul.f32 %v3423, -0.5
        %v3432 = vmul.f32 %v3424, -0.5
        %v3433 = vmul.f32 %v3425, 1.442695
        %v3434 = vpow.pop %v3433
        %v3435 = vmul.f32 %v3426, 1.442695
        %v3436 = vpow.pop %v3435
        %v3437 = vmul.f32 %v3427, 1.442695
        %v3438 = vpow.pop %v3437
        %v3439 = vmul.f32 %v3428, 1.442695
        %v3440 = vpow.pop %v3439
        %v3441 = vmul.f32 %v3429, 1.442695
        %v3442 = vpow.pop %v3441
        %v3443 = vmul.f32 %v3430, 1.442695
        %v3444 = vpow.pop %v3443
        %v3445 = vmul.f32 %v3431, 1.442695
        %v3446 = vpow.pop %v3445
        %v3447 = vmul.f32 %v3432, 1.442695
        %v3448 = vpow.pop %v3447
        %v3449 = vmul.f32 %v3409, %v3434
        %v3450 = vmul.f32 %v3410, %v3436
        %v3451 = vmul.f32 %v3411, %v3438
        %v3452 = vmul.f32 %v3412, %v3440
        %v3453 = vmul.f32 %v3413, %v3442
        %v3454 = vmul.f32 %v3414, %v3444
        %v3455 = vmul.f32 %v3415, %v3446
        %v3456 = vmul.f32 %v3416, %v3448
        %v3457 = vadd.f32 %v3277, %v3449
        %v3458 = vadd.f32 %v3278, %v3450
        %v3459 = vadd.f32 %v3279, %v3451
        %v3460 = vadd.f32 %v3280, %v3452
        %v3461 = vadd.f32 %v3281, %v3453
        %v3462 = vadd.f32 %v3282, %v3454
        %v3463 = vadd.f32 %v3283, %v3455
        %v3464 = vadd.f32 %v3284, %v3456
        %v3465 = vlaneseq
        %v3466 = vshrl.u32 %v3465, 7
        %v3467 = vsub.s32 1, %v3466
        %v3468 = vrot.slane %v355, %v3467
        %3469 = vset.pattern.permute.xlu0 17
        %3470 = vperm.xlu0 %3469, %v365
        %v3471 = vpop.permute.xlu0 %3470
        %3473 = vset.pattern.permute.xlu0 17
        %3474 = vperm.xlu0 %3473, %v366
        %v3475 = vpop.permute.xlu0 %3474
        %3477 = vset.pattern.permute.xlu0 17
        %3478 = vperm.xlu0 %3477, %v367
        %v3479 = vpop.permute.xlu0 %3478
        %3481 = vset.pattern.permute.xlu0 17
        %3482 = vperm.xlu0 %3481, %v368
        %v3483 = vpop.permute.xlu0 %3482
        %3485 = vset.pattern.permute.xlu0 17
        %3486 = vperm.xlu0 %3485, %v369
        %v3487 = vpop.permute.xlu0 %3486
        %3489 = vset.pattern.permute.xlu0 17
        %3490 = vperm.xlu0 %3489, %v370
        %v3491 = vpop.permute.xlu0 %3490
        %3493 = vset.pattern.permute.xlu0 17
        %3494 = vperm.xlu0 %3493, %v371
        %v3495 = vpop.permute.xlu0 %3494
        %3497 = vset.pattern.permute.xlu0 17
        %3498 = vperm.xlu0 %3497, %v372
        %v3499 = vpop.permute.xlu0 %3498
        %v3501 = vsub.f32 %v3468, %v3471
        %v3502 = vsub.f32 %v3468, %v3475
        %v3503 = vsub.f32 %v3468, %v3479
        %v3504 = vsub.f32 %v3468, %v3483
        %v3505 = vsub.f32 %v3468, %v3487
        %v3506 = vsub.f32 %v3468, %v3491
        %v3507 = vsub.f32 %v3468, %v3495
        %v3508 = vsub.f32 %v3468, %v3499
        %3509 = vset.pattern.permute.xlu0 17
        %3510 = vperm.xlu0 %3509, %v357
        %v3511 = vpop.permute.xlu0 %3510
        %3513 = vset.pattern.permute.xlu0 17
        %3514 = vperm.xlu0 %3513, %v358
        %v3515 = vpop.permute.xlu0 %3514
        %3517 = vset.pattern.permute.xlu0 17
        %3518 = vperm.xlu0 %3517, %v359
        %v3519 = vpop.permute.xlu0 %3518
        %3521 = vset.pattern.permute.xlu0 17
        %3522 = vperm.xlu0 %3521, %v360
        %v3523 = vpop.permute.xlu0 %3522
        %3525 = vset.pattern.permute.xlu0 17
        %3526 = vperm.xlu0 %3525, %v361
        %v3527 = vpop.permute.xlu0 %3526
        %3529 = vset.pattern.permute.xlu0 17
        %3530 = vperm.xlu0 %3529, %v362
        %v3531 = vpop.permute.xlu0 %3530
        %3533 = vset.pattern.permute.xlu0 17
        %3534 = vperm.xlu0 %3533, %v363
        %v3535 = vpop.permute.xlu0 %3534
        %3537 = vset.pattern.permute.xlu0 17
        %3538 = vperm.xlu0 %3537, %v364
        %v3539 = vpop.permute.xlu0 %3538
        %v3541 = vmul.f32 %v3501, %v3511
        %v3542 = vmul.f32 %v3502, %v3515
        %v3543 = vmul.f32 %v3503, %v3519
        %v3544 = vmul.f32 %v3504, %v3523
        %v3545 = vmul.f32 %v3505, %v3527
        %v3546 = vmul.f32 %v3506, %v3531
        %v3547 = vmul.f32 %v3507, %v3535
        %v3548 = vmul.f32 %v3508, %v3539
        %v3549 = vsub.f32 0.0, %v3541
        %v3550 = vsub.f32 0.0, %v3542
        %v3551 = vsub.f32 0.0, %v3543
        %v3552 = vsub.f32 0.0, %v3544
        %v3553 = vsub.f32 0.0, %v3545
        %v3554 = vsub.f32 0.0, %v3546
        %v3555 = vsub.f32 0.0, %v3547
        %v3556 = vsub.f32 0.0, %v3548
        %3557 = vset.pattern.permute.xlu0 17
        %3558 = vperm.xlu0 %3557, %v373
        %v3559 = vpop.permute.xlu0 %3558
        %3561 = vset.pattern.permute.xlu0 17
        %3562 = vperm.xlu0 %3561, %v374
        %v3563 = vpop.permute.xlu0 %3562
        %3565 = vset.pattern.permute.xlu0 17
        %3566 = vperm.xlu0 %3565, %v375
        %v3567 = vpop.permute.xlu0 %3566
        %3569 = vset.pattern.permute.xlu0 17
        %3570 = vperm.xlu0 %3569, %v376
        %v3571 = vpop.permute.xlu0 %3570
        %3573 = vset.pattern.permute.xlu0 17
        %3574 = vperm.xlu0 %3573, %v377
        %v3575 = vpop.permute.xlu0 %3574
        %3577 = vset.pattern.permute.xlu0 17
        %3578 = vperm.xlu0 %3577, %v378
        %v3579 = vpop.permute.xlu0 %3578
        %3581 = vset.pattern.permute.xlu0 17
        %3582 = vperm.xlu0 %3581, %v379
        %v3583 = vpop.permute.xlu0 %3582
        %3585 = vset.pattern.permute.xlu0 17
        %3586 = vperm.xlu0 %3585, %v380
        %v3587 = vpop.permute.xlu0 %3586
        %v3589 = vmul.f32 %v3559, %v3549
        %v3590 = vmul.f32 %v3563, %v3550
        %v3591 = vmul.f32 %v3567, %v3551
        %v3592 = vmul.f32 %v3571, %v3552
        %v3593 = vmul.f32 %v3575, %v3553
        %v3594 = vmul.f32 %v3579, %v3554
        %v3595 = vmul.f32 %v3583, %v3555
        %v3596 = vmul.f32 %v3587, %v3556
        %v3597 = vmul.f32 %v3541, %v3541
        %v3598 = vmul.f32 %v3542, %v3542
        %v3599 = vmul.f32 %v3543, %v3543
        %v3600 = vmul.f32 %v3544, %v3544
        %v3601 = vmul.f32 %v3545, %v3545
        %v3602 = vmul.f32 %v3546, %v3546
        %v3603 = vmul.f32 %v3547, %v3547
        %v3604 = vmul.f32 %v3548, %v3548
        %v3605 = vmul.f32 %v3597, -0.5
        %v3606 = vmul.f32 %v3598, -0.5
        %v3607 = vmul.f32 %v3599, -0.5
        %v3608 = vmul.f32 %v3600, -0.5
        %v3609 = vmul.f32 %v3601, -0.5
        %v3610 = vmul.f32 %v3602, -0.5
        %v3611 = vmul.f32 %v3603, -0.5
        %v3612 = vmul.f32 %v3604, -0.5
        %v3613 = vmul.f32 %v3605, 1.442695
        %v3614 = vpow.pop %v3613
        %v3615 = vmul.f32 %v3606, 1.442695
        %v3616 = vpow.pop %v3615
        %v3617 = vmul.f32 %v3607, 1.442695
        %v3618 = vpow.pop %v3617
        %v3619 = vmul.f32 %v3608, 1.442695
        %v3620 = vpow.pop %v3619
        %v3621 = vmul.f32 %v3609, 1.442695
        %v3622 = vpow.pop %v3621
        %v3623 = vmul.f32 %v3610, 1.442695
        %v3624 = vpow.pop %v3623
        %v3625 = vmul.f32 %v3611, 1.442695
        %v3626 = vpow.pop %v3625
        %v3627 = vmul.f32 %v3612, 1.442695
        %v3628 = vpow.pop %v3627
        %v3629 = vmul.f32 %v3589, %v3614
        %v3630 = vmul.f32 %v3590, %v3616
        %v3631 = vmul.f32 %v3591, %v3618
        %v3632 = vmul.f32 %v3592, %v3620
        %v3633 = vmul.f32 %v3593, %v3622
        %v3634 = vmul.f32 %v3594, %v3624
        %v3635 = vmul.f32 %v3595, %v3626
        %v3636 = vmul.f32 %v3596, %v3628
        %v3637 = vadd.f32 %v3457, %v3629
        %v3638 = vadd.f32 %v3458, %v3630
        %v3639 = vadd.f32 %v3459, %v3631
        %v3640 = vadd.f32 %v3460, %v3632
        %v3641 = vadd.f32 %v3461, %v3633
        %v3642 = vadd.f32 %v3462, %v3634
        %v3643 = vadd.f32 %v3463, %v3635
        %v3644 = vadd.f32 %v3464, %v3636
        %v3645 = vlaneseq
        %v3646 = vshrl.u32 %v3645, 7
        %v3647 = vsub.s32 2, %v3646
        %v3648 = vrot.slane %v355, %v3647
        %3649 = vset.pattern.permute.xlu0 18
        %3650 = vperm.xlu0 %3649, %v365
        %v3651 = vpop.permute.xlu0 %3650
        %3653 = vset.pattern.permute.xlu0 18
        %3654 = vperm.xlu0 %3653, %v366
        %v3655 = vpop.permute.xlu0 %3654
        %3657 = vset.pattern.permute.xlu0 18
        %3658 = vperm.xlu0 %3657, %v367
        %v3659 = vpop.permute.xlu0 %3658
        %3661 = vset.pattern.permute.xlu0 18
        %3662 = vperm.xlu0 %3661, %v368
        %v3663 = vpop.permute.xlu0 %3662
        %3665 = vset.pattern.permute.xlu0 18
        %3666 = vperm.xlu0 %3665, %v369
        %v3667 = vpop.permute.xlu0 %3666
        %3669 = vset.pattern.permute.xlu0 18
        %3670 = vperm.xlu0 %3669, %v370
        %v3671 = vpop.permute.xlu0 %3670
        %3673 = vset.pattern.permute.xlu0 18
        %3674 = vperm.xlu0 %3673, %v371
        %v3675 = vpop.permute.xlu0 %3674
        %3677 = vset.pattern.permute.xlu0 18
        %3678 = vperm.xlu0 %3677, %v372
        %v3679 = vpop.permute.xlu0 %3678
        %v3681 = vsub.f32 %v3648, %v3651
        %v3682 = vsub.f32 %v3648, %v3655
        %v3683 = vsub.f32 %v3648, %v3659
        %v3684 = vsub.f32 %v3648, %v3663
        %v3685 = vsub.f32 %v3648, %v3667
        %v3686 = vsub.f32 %v3648, %v3671
        %v3687 = vsub.f32 %v3648, %v3675
        %v3688 = vsub.f32 %v3648, %v3679
        %3689 = vset.pattern.permute.xlu0 18
        %3690 = vperm.xlu0 %3689, %v357
        %v3691 = vpop.permute.xlu0 %3690
        %3693 = vset.pattern.permute.xlu0 18
        %3694 = vperm.xlu0 %3693, %v358
        %v3695 = vpop.permute.xlu0 %3694
        %3697 = vset.pattern.permute.xlu0 18
        %3698 = vperm.xlu0 %3697, %v359
        %v3699 = vpop.permute.xlu0 %3698
        %3701 = vset.pattern.permute.xlu0 18
        %3702 = vperm.xlu0 %3701, %v360
        %v3703 = vpop.permute.xlu0 %3702
        %3705 = vset.pattern.permute.xlu0 18
        %3706 = vperm.xlu0 %3705, %v361
        %v3707 = vpop.permute.xlu0 %3706
        %3709 = vset.pattern.permute.xlu0 18
        %3710 = vperm.xlu0 %3709, %v362
        %v3711 = vpop.permute.xlu0 %3710
        %3713 = vset.pattern.permute.xlu0 18
        %3714 = vperm.xlu0 %3713, %v363
        %v3715 = vpop.permute.xlu0 %3714
        %3717 = vset.pattern.permute.xlu0 18
        %3718 = vperm.xlu0 %3717, %v364
        %v3719 = vpop.permute.xlu0 %3718
        %v3721 = vmul.f32 %v3681, %v3691
        %v3722 = vmul.f32 %v3682, %v3695
        %v3723 = vmul.f32 %v3683, %v3699
        %v3724 = vmul.f32 %v3684, %v3703
        %v3725 = vmul.f32 %v3685, %v3707
        %v3726 = vmul.f32 %v3686, %v3711
        %v3727 = vmul.f32 %v3687, %v3715
        %v3728 = vmul.f32 %v3688, %v3719
        %v3729 = vsub.f32 0.0, %v3721
        %v3730 = vsub.f32 0.0, %v3722
        %v3731 = vsub.f32 0.0, %v3723
        %v3732 = vsub.f32 0.0, %v3724
        %v3733 = vsub.f32 0.0, %v3725
        %v3734 = vsub.f32 0.0, %v3726
        %v3735 = vsub.f32 0.0, %v3727
        %v3736 = vsub.f32 0.0, %v3728
        %3737 = vset.pattern.permute.xlu0 18
        %3738 = vperm.xlu0 %3737, %v373
        %v3739 = vpop.permute.xlu0 %3738
        %3741 = vset.pattern.permute.xlu0 18
        %3742 = vperm.xlu0 %3741, %v374
        %v3743 = vpop.permute.xlu0 %3742
        %3745 = vset.pattern.permute.xlu0 18
        %3746 = vperm.xlu0 %3745, %v375
        %v3747 = vpop.permute.xlu0 %3746
        %3749 = vset.pattern.permute.xlu0 18
        %3750 = vperm.xlu0 %3749, %v376
        %v3751 = vpop.permute.xlu0 %3750
        %3753 = vset.pattern.permute.xlu0 18
        %3754 = vperm.xlu0 %3753, %v377
        %v3755 = vpop.permute.xlu0 %3754
        %3757 = vset.pattern.permute.xlu0 18
        %3758 = vperm.xlu0 %3757, %v378
        %v3759 = vpop.permute.xlu0 %3758
        %3761 = vset.pattern.permute.xlu0 18
        %3762 = vperm.xlu0 %3761, %v379
        %v3763 = vpop.permute.xlu0 %3762
        %3765 = vset.pattern.permute.xlu0 18
        %3766 = vperm.xlu0 %3765, %v380
        %v3767 = vpop.permute.xlu0 %3766
        %v3769 = vmul.f32 %v3739, %v3729
        %v3770 = vmul.f32 %v3743, %v3730
        %v3771 = vmul.f32 %v3747, %v3731
        %v3772 = vmul.f32 %v3751, %v3732
        %v3773 = vmul.f32 %v3755, %v3733
        %v3774 = vmul.f32 %v3759, %v3734
        %v3775 = vmul.f32 %v3763, %v3735
        %v3776 = vmul.f32 %v3767, %v3736
        %v3777 = vmul.f32 %v3721, %v3721
        %v3778 = vmul.f32 %v3722, %v3722
        %v3779 = vmul.f32 %v3723, %v3723
        %v3780 = vmul.f32 %v3724, %v3724
        %v3781 = vmul.f32 %v3725, %v3725
        %v3782 = vmul.f32 %v3726, %v3726
        %v3783 = vmul.f32 %v3727, %v3727
        %v3784 = vmul.f32 %v3728, %v3728
        %v3785 = vmul.f32 %v3777, -0.5
        %v3786 = vmul.f32 %v3778, -0.5
        %v3787 = vmul.f32 %v3779, -0.5
        %v3788 = vmul.f32 %v3780, -0.5
        %v3789 = vmul.f32 %v3781, -0.5
        %v3790 = vmul.f32 %v3782, -0.5
        %v3791 = vmul.f32 %v3783, -0.5
        %v3792 = vmul.f32 %v3784, -0.5
        %v3793 = vmul.f32 %v3785, 1.442695
        %v3794 = vpow.pop %v3793
        %v3795 = vmul.f32 %v3786, 1.442695
        %v3796 = vpow.pop %v3795
        %v3797 = vmul.f32 %v3787, 1.442695
        %v3798 = vpow.pop %v3797
        %v3799 = vmul.f32 %v3788, 1.442695
        %v3800 = vpow.pop %v3799
        %v3801 = vmul.f32 %v3789, 1.442695
        %v3802 = vpow.pop %v3801
        %v3803 = vmul.f32 %v3790, 1.442695
        %v3804 = vpow.pop %v3803
        %v3805 = vmul.f32 %v3791, 1.442695
        %v3806 = vpow.pop %v3805
        %v3807 = vmul.f32 %v3792, 1.442695
        %v3808 = vpow.pop %v3807
        %v3809 = vmul.f32 %v3769, %v3794
        %v3810 = vmul.f32 %v3770, %v3796
        %v3811 = vmul.f32 %v3771, %v3798
        %v3812 = vmul.f32 %v3772, %v3800
        %v3813 = vmul.f32 %v3773, %v3802
        %v3814 = vmul.f32 %v3774, %v3804
        %v3815 = vmul.f32 %v3775, %v3806
        %v3816 = vmul.f32 %v3776, %v3808
        %v3817 = vadd.f32 %v3637, %v3809
        %v3818 = vadd.f32 %v3638, %v3810
        %v3819 = vadd.f32 %v3639, %v3811
        %v3820 = vadd.f32 %v3640, %v3812
        %v3821 = vadd.f32 %v3641, %v3813
        %v3822 = vadd.f32 %v3642, %v3814
        %v3823 = vadd.f32 %v3643, %v3815
        %v3824 = vadd.f32 %v3644, %v3816
        %v3825 = vlaneseq
        %v3826 = vshrl.u32 %v3825, 7
        %v3827 = vsub.s32 3, %v3826
        %v3828 = vrot.slane %v355, %v3827
        %3829 = vset.pattern.permute.xlu0 19
        %3830 = vperm.xlu0 %3829, %v365
        %v3831 = vpop.permute.xlu0 %3830
        %3833 = vset.pattern.permute.xlu0 19
        %3834 = vperm.xlu0 %3833, %v366
        %v3835 = vpop.permute.xlu0 %3834
        %3837 = vset.pattern.permute.xlu0 19
        %3838 = vperm.xlu0 %3837, %v367
        %v3839 = vpop.permute.xlu0 %3838
        %3841 = vset.pattern.permute.xlu0 19
        %3842 = vperm.xlu0 %3841, %v368
        %v3843 = vpop.permute.xlu0 %3842
        %3845 = vset.pattern.permute.xlu0 19
        %3846 = vperm.xlu0 %3845, %v369
        %v3847 = vpop.permute.xlu0 %3846
        %3849 = vset.pattern.permute.xlu0 19
        %3850 = vperm.xlu0 %3849, %v370
        %v3851 = vpop.permute.xlu0 %3850
        %3853 = vset.pattern.permute.xlu0 19
        %3854 = vperm.xlu0 %3853, %v371
        %v3855 = vpop.permute.xlu0 %3854
        %3857 = vset.pattern.permute.xlu0 19
        %3858 = vperm.xlu0 %3857, %v372
        %v3859 = vpop.permute.xlu0 %3858
        %v3861 = vsub.f32 %v3828, %v3831
        %v3862 = vsub.f32 %v3828, %v3835
        %v3863 = vsub.f32 %v3828, %v3839
        %v3864 = vsub.f32 %v3828, %v3843
        %v3865 = vsub.f32 %v3828, %v3847
        %v3866 = vsub.f32 %v3828, %v3851
        %v3867 = vsub.f32 %v3828, %v3855
        %v3868 = vsub.f32 %v3828, %v3859
        %3869 = vset.pattern.permute.xlu0 19
        %3870 = vperm.xlu0 %3869, %v357
        %v3871 = vpop.permute.xlu0 %3870
        %3873 = vset.pattern.permute.xlu0 19
        %3874 = vperm.xlu0 %3873, %v358
        %v3875 = vpop.permute.xlu0 %3874
        %3877 = vset.pattern.permute.xlu0 19
        %3878 = vperm.xlu0 %3877, %v359
        %v3879 = vpop.permute.xlu0 %3878
        %3881 = vset.pattern.permute.xlu0 19
        %3882 = vperm.xlu0 %3881, %v360
        %v3883 = vpop.permute.xlu0 %3882
        %3885 = vset.pattern.permute.xlu0 19
        %3886 = vperm.xlu0 %3885, %v361
        %v3887 = vpop.permute.xlu0 %3886
        %3889 = vset.pattern.permute.xlu0 19
        %3890 = vperm.xlu0 %3889, %v362
        %v3891 = vpop.permute.xlu0 %3890
        %3893 = vset.pattern.permute.xlu0 19
        %3894 = vperm.xlu0 %3893, %v363
        %v3895 = vpop.permute.xlu0 %3894
        %3897 = vset.pattern.permute.xlu0 19
        %3898 = vperm.xlu0 %3897, %v364
        %v3899 = vpop.permute.xlu0 %3898
        %v3901 = vmul.f32 %v3861, %v3871
        %v3902 = vmul.f32 %v3862, %v3875
        %v3903 = vmul.f32 %v3863, %v3879
        %v3904 = vmul.f32 %v3864, %v3883
        %v3905 = vmul.f32 %v3865, %v3887
        %v3906 = vmul.f32 %v3866, %v3891
        %v3907 = vmul.f32 %v3867, %v3895
        %v3908 = vmul.f32 %v3868, %v3899
        %v3909 = vsub.f32 0.0, %v3901
        %v3910 = vsub.f32 0.0, %v3902
        %v3911 = vsub.f32 0.0, %v3903
        %v3912 = vsub.f32 0.0, %v3904
        %v3913 = vsub.f32 0.0, %v3905
        %v3914 = vsub.f32 0.0, %v3906
        %v3915 = vsub.f32 0.0, %v3907
        %v3916 = vsub.f32 0.0, %v3908
        %3917 = vset.pattern.permute.xlu0 19
        %3918 = vperm.xlu0 %3917, %v373
        %v3919 = vpop.permute.xlu0 %3918
        %3921 = vset.pattern.permute.xlu0 19
        %3922 = vperm.xlu0 %3921, %v374
        %v3923 = vpop.permute.xlu0 %3922
        %3925 = vset.pattern.permute.xlu0 19
        %3926 = vperm.xlu0 %3925, %v375
        %v3927 = vpop.permute.xlu0 %3926
        %3929 = vset.pattern.permute.xlu0 19
        %3930 = vperm.xlu0 %3929, %v376
        %v3931 = vpop.permute.xlu0 %3930
        %3933 = vset.pattern.permute.xlu0 19
        %3934 = vperm.xlu0 %3933, %v377
        %v3935 = vpop.permute.xlu0 %3934
        %3937 = vset.pattern.permute.xlu0 19
        %3938 = vperm.xlu0 %3937, %v378
        %v3939 = vpop.permute.xlu0 %3938
        %3941 = vset.pattern.permute.xlu0 19
        %3942 = vperm.xlu0 %3941, %v379
        %v3943 = vpop.permute.xlu0 %3942
        %3945 = vset.pattern.permute.xlu0 19
        %3946 = vperm.xlu0 %3945, %v380
        %v3947 = vpop.permute.xlu0 %3946
        %v3949 = vmul.f32 %v3919, %v3909
        %v3950 = vmul.f32 %v3923, %v3910
        %v3951 = vmul.f32 %v3927, %v3911
        %v3952 = vmul.f32 %v3931, %v3912
        %v3953 = vmul.f32 %v3935, %v3913
        %v3954 = vmul.f32 %v3939, %v3914
        %v3955 = vmul.f32 %v3943, %v3915
        %v3956 = vmul.f32 %v3947, %v3916
        %v3957 = vmul.f32 %v3901, %v3901
        %v3958 = vmul.f32 %v3902, %v3902
        %v3959 = vmul.f32 %v3903, %v3903
        %v3960 = vmul.f32 %v3904, %v3904
        %v3961 = vmul.f32 %v3905, %v3905
        %v3962 = vmul.f32 %v3906, %v3906
        %v3963 = vmul.f32 %v3907, %v3907
        %v3964 = vmul.f32 %v3908, %v3908
        %v3965 = vmul.f32 %v3957, -0.5
        %v3966 = vmul.f32 %v3958, -0.5
        %v3967 = vmul.f32 %v3959, -0.5
        %v3968 = vmul.f32 %v3960, -0.5
        %v3969 = vmul.f32 %v3961, -0.5
        %v3970 = vmul.f32 %v3962, -0.5
        %v3971 = vmul.f32 %v3963, -0.5
        %v3972 = vmul.f32 %v3964, -0.5
        %v3973 = vmul.f32 %v3965, 1.442695
        %v3974 = vpow.pop %v3973
        %v3975 = vmul.f32 %v3966, 1.442695
        %v3976 = vpow.pop %v3975
        %v3977 = vmul.f32 %v3967, 1.442695
        %v3978 = vpow.pop %v3977
        %v3979 = vmul.f32 %v3968, 1.442695
        %v3980 = vpow.pop %v3979
        %v3981 = vmul.f32 %v3969, 1.442695
        %v3982 = vpow.pop %v3981
        %v3983 = vmul.f32 %v3970, 1.442695
        %v3984 = vpow.pop %v3983
        %v3985 = vmul.f32 %v3971, 1.442695
        %v3986 = vpow.pop %v3985
        %v3987 = vmul.f32 %v3972, 1.442695
        %v3988 = vpow.pop %v3987
        %v3989 = vmul.f32 %v3949, %v3974
        %v3990 = vmul.f32 %v3950, %v3976
        %v3991 = vmul.f32 %v3951, %v3978
        %v3992 = vmul.f32 %v3952, %v3980
        %v3993 = vmul.f32 %v3953, %v3982
        %v3994 = vmul.f32 %v3954, %v3984
        %v3995 = vmul.f32 %v3955, %v3986
        %v3996 = vmul.f32 %v3956, %v3988
        %v3997 = vadd.f32 %v3817, %v3989
        %v3998 = vadd.f32 %v3818, %v3990
        %v3999 = vadd.f32 %v3819, %v3991
        %v4000 = vadd.f32 %v3820, %v3992
        %v4001 = vadd.f32 %v3821, %v3993
        %v4002 = vadd.f32 %v3822, %v3994
        %v4003 = vadd.f32 %v3823, %v3995
        %v4004 = vadd.f32 %v3824, %v3996
        %v4005 = vlaneseq
        %v4006 = vshrl.u32 %v4005, 7
        %v4007 = vsub.s32 4, %v4006
        %v4008 = vrot.slane %v355, %v4007
        %4009 = vset.pattern.permute.xlu0 20
        %4010 = vperm.xlu0 %4009, %v365
        %v4011 = vpop.permute.xlu0 %4010
        %4013 = vset.pattern.permute.xlu0 20
        %4014 = vperm.xlu0 %4013, %v366
        %v4015 = vpop.permute.xlu0 %4014
        %4017 = vset.pattern.permute.xlu0 20
        %4018 = vperm.xlu0 %4017, %v367
        %v4019 = vpop.permute.xlu0 %4018
        %4021 = vset.pattern.permute.xlu0 20
        %4022 = vperm.xlu0 %4021, %v368
        %v4023 = vpop.permute.xlu0 %4022
        %4025 = vset.pattern.permute.xlu0 20
        %4026 = vperm.xlu0 %4025, %v369
        %v4027 = vpop.permute.xlu0 %4026
        %4029 = vset.pattern.permute.xlu0 20
        %4030 = vperm.xlu0 %4029, %v370
        %v4031 = vpop.permute.xlu0 %4030
        %4033 = vset.pattern.permute.xlu0 20
        %4034 = vperm.xlu0 %4033, %v371
        %v4035 = vpop.permute.xlu0 %4034
        %4037 = vset.pattern.permute.xlu0 20
        %4038 = vperm.xlu0 %4037, %v372
        %v4039 = vpop.permute.xlu0 %4038
        %v4041 = vsub.f32 %v4008, %v4011
        %v4042 = vsub.f32 %v4008, %v4015
        %v4043 = vsub.f32 %v4008, %v4019
        %v4044 = vsub.f32 %v4008, %v4023
        %v4045 = vsub.f32 %v4008, %v4027
        %v4046 = vsub.f32 %v4008, %v4031
        %v4047 = vsub.f32 %v4008, %v4035
        %v4048 = vsub.f32 %v4008, %v4039
        %4049 = vset.pattern.permute.xlu0 20
        %4050 = vperm.xlu0 %4049, %v357
        %v4051 = vpop.permute.xlu0 %4050
        %4053 = vset.pattern.permute.xlu0 20
        %4054 = vperm.xlu0 %4053, %v358
        %v4055 = vpop.permute.xlu0 %4054
        %4057 = vset.pattern.permute.xlu0 20
        %4058 = vperm.xlu0 %4057, %v359
        %v4059 = vpop.permute.xlu0 %4058
        %4061 = vset.pattern.permute.xlu0 20
        %4062 = vperm.xlu0 %4061, %v360
        %v4063 = vpop.permute.xlu0 %4062
        %4065 = vset.pattern.permute.xlu0 20
        %4066 = vperm.xlu0 %4065, %v361
        %v4067 = vpop.permute.xlu0 %4066
        %4069 = vset.pattern.permute.xlu0 20
        %4070 = vperm.xlu0 %4069, %v362
        %v4071 = vpop.permute.xlu0 %4070
        %4073 = vset.pattern.permute.xlu0 20
        %4074 = vperm.xlu0 %4073, %v363
        %v4075 = vpop.permute.xlu0 %4074
        %4077 = vset.pattern.permute.xlu0 20
        %4078 = vperm.xlu0 %4077, %v364
        %v4079 = vpop.permute.xlu0 %4078
        %v4081 = vmul.f32 %v4041, %v4051
        %v4082 = vmul.f32 %v4042, %v4055
        %v4083 = vmul.f32 %v4043, %v4059
        %v4084 = vmul.f32 %v4044, %v4063
        %v4085 = vmul.f32 %v4045, %v4067
        %v4086 = vmul.f32 %v4046, %v4071
        %v4087 = vmul.f32 %v4047, %v4075
        %v4088 = vmul.f32 %v4048, %v4079
        %v4089 = vsub.f32 0.0, %v4081
        %v4090 = vsub.f32 0.0, %v4082
        %v4091 = vsub.f32 0.0, %v4083
        %v4092 = vsub.f32 0.0, %v4084
        %v4093 = vsub.f32 0.0, %v4085
        %v4094 = vsub.f32 0.0, %v4086
        %v4095 = vsub.f32 0.0, %v4087
        %v4096 = vsub.f32 0.0, %v4088
        %4097 = vset.pattern.permute.xlu0 20
        %4098 = vperm.xlu0 %4097, %v373
        %v4099 = vpop.permute.xlu0 %4098
        %4101 = vset.pattern.permute.xlu0 20
        %4102 = vperm.xlu0 %4101, %v374
        %v4103 = vpop.permute.xlu0 %4102
        %4105 = vset.pattern.permute.xlu0 20
        %4106 = vperm.xlu0 %4105, %v375
        %v4107 = vpop.permute.xlu0 %4106
        %4109 = vset.pattern.permute.xlu0 20
        %4110 = vperm.xlu0 %4109, %v376
        %v4111 = vpop.permute.xlu0 %4110
        %4113 = vset.pattern.permute.xlu0 20
        %4114 = vperm.xlu0 %4113, %v377
        %v4115 = vpop.permute.xlu0 %4114
        %4117 = vset.pattern.permute.xlu0 20
        %4118 = vperm.xlu0 %4117, %v378
        %v4119 = vpop.permute.xlu0 %4118
        %4121 = vset.pattern.permute.xlu0 20
        %4122 = vperm.xlu0 %4121, %v379
        %v4123 = vpop.permute.xlu0 %4122
        %4125 = vset.pattern.permute.xlu0 20
        %4126 = vperm.xlu0 %4125, %v380
        %v4127 = vpop.permute.xlu0 %4126
        %v4129 = vmul.f32 %v4099, %v4089
        %v4130 = vmul.f32 %v4103, %v4090
        %v4131 = vmul.f32 %v4107, %v4091
        %v4132 = vmul.f32 %v4111, %v4092
        %v4133 = vmul.f32 %v4115, %v4093
        %v4134 = vmul.f32 %v4119, %v4094
        %v4135 = vmul.f32 %v4123, %v4095
        %v4136 = vmul.f32 %v4127, %v4096
        %v4137 = vmul.f32 %v4081, %v4081
        %v4138 = vmul.f32 %v4082, %v4082
        %v4139 = vmul.f32 %v4083, %v4083
        %v4140 = vmul.f32 %v4084, %v4084
        %v4141 = vmul.f32 %v4085, %v4085
        %v4142 = vmul.f32 %v4086, %v4086
        %v4143 = vmul.f32 %v4087, %v4087
        %v4144 = vmul.f32 %v4088, %v4088
        %v4145 = vmul.f32 %v4137, -0.5
        %v4146 = vmul.f32 %v4138, -0.5
        %v4147 = vmul.f32 %v4139, -0.5
        %v4148 = vmul.f32 %v4140, -0.5
        %v4149 = vmul.f32 %v4141, -0.5
        %v4150 = vmul.f32 %v4142, -0.5
        %v4151 = vmul.f32 %v4143, -0.5
        %v4152 = vmul.f32 %v4144, -0.5
        %v4153 = vmul.f32 %v4145, 1.442695
        %v4154 = vpow.pop %v4153
        %v4155 = vmul.f32 %v4146, 1.442695
        %v4156 = vpow.pop %v4155
        %v4157 = vmul.f32 %v4147, 1.442695
        %v4158 = vpow.pop %v4157
        %v4159 = vmul.f32 %v4148, 1.442695
        %v4160 = vpow.pop %v4159
        %v4161 = vmul.f32 %v4149, 1.442695
        %v4162 = vpow.pop %v4161
        %v4163 = vmul.f32 %v4150, 1.442695
        %v4164 = vpow.pop %v4163
        %v4165 = vmul.f32 %v4151, 1.442695
        %v4166 = vpow.pop %v4165
        %v4167 = vmul.f32 %v4152, 1.442695
        %v4168 = vpow.pop %v4167
        %v4169 = vmul.f32 %v4129, %v4154
        %v4170 = vmul.f32 %v4130, %v4156
        %v4171 = vmul.f32 %v4131, %v4158
        %v4172 = vmul.f32 %v4132, %v4160
        %v4173 = vmul.f32 %v4133, %v4162
        %v4174 = vmul.f32 %v4134, %v4164
        %v4175 = vmul.f32 %v4135, %v4166
        %v4176 = vmul.f32 %v4136, %v4168
        %v4177 = vadd.f32 %v3997, %v4169
        %v4178 = vadd.f32 %v3998, %v4170
        %v4179 = vadd.f32 %v3999, %v4171
        %v4180 = vadd.f32 %v4000, %v4172
        %v4181 = vadd.f32 %v4001, %v4173
        %v4182 = vadd.f32 %v4002, %v4174
        %v4183 = vadd.f32 %v4003, %v4175
        %v4184 = vadd.f32 %v4004, %v4176
        %v4185 = vlaneseq
        %v4186 = vshrl.u32 %v4185, 7
        %v4187 = vsub.s32 5, %v4186
        %v4188 = vrot.slane %v355, %v4187
        %4189 = vset.pattern.permute.xlu0 21
        %4190 = vperm.xlu0 %4189, %v365
        %v4191 = vpop.permute.xlu0 %4190
        %4193 = vset.pattern.permute.xlu0 21
        %4194 = vperm.xlu0 %4193, %v366
        %v4195 = vpop.permute.xlu0 %4194
        %4197 = vset.pattern.permute.xlu0 21
        %4198 = vperm.xlu0 %4197, %v367
        %v4199 = vpop.permute.xlu0 %4198
        %4201 = vset.pattern.permute.xlu0 21
        %4202 = vperm.xlu0 %4201, %v368
        %v4203 = vpop.permute.xlu0 %4202
        %4205 = vset.pattern.permute.xlu0 21
        %4206 = vperm.xlu0 %4205, %v369
        %v4207 = vpop.permute.xlu0 %4206
        %4209 = vset.pattern.permute.xlu0 21
        %4210 = vperm.xlu0 %4209, %v370
        %v4211 = vpop.permute.xlu0 %4210
        %4213 = vset.pattern.permute.xlu0 21
        %4214 = vperm.xlu0 %4213, %v371
        %v4215 = vpop.permute.xlu0 %4214
        %4217 = vset.pattern.permute.xlu0 21
        %4218 = vperm.xlu0 %4217, %v372
        %v4219 = vpop.permute.xlu0 %4218
        %v4221 = vsub.f32 %v4188, %v4191
        %v4222 = vsub.f32 %v4188, %v4195
        %v4223 = vsub.f32 %v4188, %v4199
        %v4224 = vsub.f32 %v4188, %v4203
        %v4225 = vsub.f32 %v4188, %v4207
        %v4226 = vsub.f32 %v4188, %v4211
        %v4227 = vsub.f32 %v4188, %v4215
        %v4228 = vsub.f32 %v4188, %v4219
        %4229 = vset.pattern.permute.xlu0 21
        %4230 = vperm.xlu0 %4229, %v357
        %v4231 = vpop.permute.xlu0 %4230
        %4233 = vset.pattern.permute.xlu0 21
        %4234 = vperm.xlu0 %4233, %v358
        %v4235 = vpop.permute.xlu0 %4234
        %4237 = vset.pattern.permute.xlu0 21
        %4238 = vperm.xlu0 %4237, %v359
        %v4239 = vpop.permute.xlu0 %4238
        %4241 = vset.pattern.permute.xlu0 21
        %4242 = vperm.xlu0 %4241, %v360
        %v4243 = vpop.permute.xlu0 %4242
        %4245 = vset.pattern.permute.xlu0 21
        %4246 = vperm.xlu0 %4245, %v361
        %v4247 = vpop.permute.xlu0 %4246
        %4249 = vset.pattern.permute.xlu0 21
        %4250 = vperm.xlu0 %4249, %v362
        %v4251 = vpop.permute.xlu0 %4250
        %4253 = vset.pattern.permute.xlu0 21
        %4254 = vperm.xlu0 %4253, %v363
        %v4255 = vpop.permute.xlu0 %4254
        %4257 = vset.pattern.permute.xlu0 21
        %4258 = vperm.xlu0 %4257, %v364
        %v4259 = vpop.permute.xlu0 %4258
        %v4261 = vmul.f32 %v4221, %v4231
        %v4262 = vmul.f32 %v4222, %v4235
        %v4263 = vmul.f32 %v4223, %v4239
        %v4264 = vmul.f32 %v4224, %v4243
        %v4265 = vmul.f32 %v4225, %v4247
        %v4266 = vmul.f32 %v4226, %v4251
        %v4267 = vmul.f32 %v4227, %v4255
        %v4268 = vmul.f32 %v4228, %v4259
        %v4269 = vsub.f32 0.0, %v4261
        %v4270 = vsub.f32 0.0, %v4262
        %v4271 = vsub.f32 0.0, %v4263
        %v4272 = vsub.f32 0.0, %v4264
        %v4273 = vsub.f32 0.0, %v4265
        %v4274 = vsub.f32 0.0, %v4266
        %v4275 = vsub.f32 0.0, %v4267
        %v4276 = vsub.f32 0.0, %v4268
        %4277 = vset.pattern.permute.xlu0 21
        %4278 = vperm.xlu0 %4277, %v373
        %v4279 = vpop.permute.xlu0 %4278
        %4281 = vset.pattern.permute.xlu0 21
        %4282 = vperm.xlu0 %4281, %v374
        %v4283 = vpop.permute.xlu0 %4282
        %4285 = vset.pattern.permute.xlu0 21
        %4286 = vperm.xlu0 %4285, %v375
        %v4287 = vpop.permute.xlu0 %4286
        %4289 = vset.pattern.permute.xlu0 21
        %4290 = vperm.xlu0 %4289, %v376
        %v4291 = vpop.permute.xlu0 %4290
        %4293 = vset.pattern.permute.xlu0 21
        %4294 = vperm.xlu0 %4293, %v377
        %v4295 = vpop.permute.xlu0 %4294
        %4297 = vset.pattern.permute.xlu0 21
        %4298 = vperm.xlu0 %4297, %v378
        %v4299 = vpop.permute.xlu0 %4298
        %4301 = vset.pattern.permute.xlu0 21
        %4302 = vperm.xlu0 %4301, %v379
        %v4303 = vpop.permute.xlu0 %4302
        %4305 = vset.pattern.permute.xlu0 21
        %4306 = vperm.xlu0 %4305, %v380
        %v4307 = vpop.permute.xlu0 %4306
        %v4309 = vmul.f32 %v4279, %v4269
        %v4310 = vmul.f32 %v4283, %v4270
        %v4311 = vmul.f32 %v4287, %v4271
        %v4312 = vmul.f32 %v4291, %v4272
        %v4313 = vmul.f32 %v4295, %v4273
        %v4314 = vmul.f32 %v4299, %v4274
        %v4315 = vmul.f32 %v4303, %v4275
        %v4316 = vmul.f32 %v4307, %v4276
        %v4317 = vmul.f32 %v4261, %v4261
        %v4318 = vmul.f32 %v4262, %v4262
        %v4319 = vmul.f32 %v4263, %v4263
        %v4320 = vmul.f32 %v4264, %v4264
        %v4321 = vmul.f32 %v4265, %v4265
        %v4322 = vmul.f32 %v4266, %v4266
        %v4323 = vmul.f32 %v4267, %v4267
        %v4324 = vmul.f32 %v4268, %v4268
        %v4325 = vmul.f32 %v4317, -0.5
        %v4326 = vmul.f32 %v4318, -0.5
        %v4327 = vmul.f32 %v4319, -0.5
        %v4328 = vmul.f32 %v4320, -0.5
        %v4329 = vmul.f32 %v4321, -0.5
        %v4330 = vmul.f32 %v4322, -0.5
        %v4331 = vmul.f32 %v4323, -0.5
        %v4332 = vmul.f32 %v4324, -0.5
        %v4333 = vmul.f32 %v4325, 1.442695
        %v4334 = vpow.pop %v4333
        %v4335 = vmul.f32 %v4326, 1.442695
        %v4336 = vpow.pop %v4335
        %v4337 = vmul.f32 %v4327, 1.442695
        %v4338 = vpow.pop %v4337
        %v4339 = vmul.f32 %v4328, 1.442695
        %v4340 = vpow.pop %v4339
        %v4341 = vmul.f32 %v4329, 1.442695
        %v4342 = vpow.pop %v4341
        %v4343 = vmul.f32 %v4330, 1.442695
        %v4344 = vpow.pop %v4343
        %v4345 = vmul.f32 %v4331, 1.442695
        %v4346 = vpow.pop %v4345
        %v4347 = vmul.f32 %v4332, 1.442695
        %v4348 = vpow.pop %v4347
        %v4349 = vmul.f32 %v4309, %v4334
        %v4350 = vmul.f32 %v4310, %v4336
        %v4351 = vmul.f32 %v4311, %v4338
        %v4352 = vmul.f32 %v4312, %v4340
        %v4353 = vmul.f32 %v4313, %v4342
        %v4354 = vmul.f32 %v4314, %v4344
        %v4355 = vmul.f32 %v4315, %v4346
        %v4356 = vmul.f32 %v4316, %v4348
        %v4357 = vadd.f32 %v4177, %v4349
        %v4358 = vadd.f32 %v4178, %v4350
        %v4359 = vadd.f32 %v4179, %v4351
        %v4360 = vadd.f32 %v4180, %v4352
        %v4361 = vadd.f32 %v4181, %v4353
        %v4362 = vadd.f32 %v4182, %v4354
        %v4363 = vadd.f32 %v4183, %v4355
        %v4364 = vadd.f32 %v4184, %v4356
        %v4365 = vlaneseq
        %v4366 = vshrl.u32 %v4365, 7
        %v4367 = vsub.s32 6, %v4366
        %v4368 = vrot.slane %v355, %v4367
        %4369 = vset.pattern.permute.xlu0 22
        %4370 = vperm.xlu0 %4369, %v365
        %v4371 = vpop.permute.xlu0 %4370
        %4373 = vset.pattern.permute.xlu0 22
        %4374 = vperm.xlu0 %4373, %v366
        %v4375 = vpop.permute.xlu0 %4374
        %4377 = vset.pattern.permute.xlu0 22
        %4378 = vperm.xlu0 %4377, %v367
        %v4379 = vpop.permute.xlu0 %4378
        %4381 = vset.pattern.permute.xlu0 22
        %4382 = vperm.xlu0 %4381, %v368
        %v4383 = vpop.permute.xlu0 %4382
        %4385 = vset.pattern.permute.xlu0 22
        %4386 = vperm.xlu0 %4385, %v369
        %v4387 = vpop.permute.xlu0 %4386
        %4389 = vset.pattern.permute.xlu0 22
        %4390 = vperm.xlu0 %4389, %v370
        %v4391 = vpop.permute.xlu0 %4390
        %4393 = vset.pattern.permute.xlu0 22
        %4394 = vperm.xlu0 %4393, %v371
        %v4395 = vpop.permute.xlu0 %4394
        %4397 = vset.pattern.permute.xlu0 22
        %4398 = vperm.xlu0 %4397, %v372
        %v4399 = vpop.permute.xlu0 %4398
        %v4401 = vsub.f32 %v4368, %v4371
        %v4402 = vsub.f32 %v4368, %v4375
        %v4403 = vsub.f32 %v4368, %v4379
        %v4404 = vsub.f32 %v4368, %v4383
        %v4405 = vsub.f32 %v4368, %v4387
        %v4406 = vsub.f32 %v4368, %v4391
        %v4407 = vsub.f32 %v4368, %v4395
        %v4408 = vsub.f32 %v4368, %v4399
        %4409 = vset.pattern.permute.xlu0 22
        %4410 = vperm.xlu0 %4409, %v357
        %v4411 = vpop.permute.xlu0 %4410
        %4413 = vset.pattern.permute.xlu0 22
        %4414 = vperm.xlu0 %4413, %v358
        %v4415 = vpop.permute.xlu0 %4414
        %4417 = vset.pattern.permute.xlu0 22
        %4418 = vperm.xlu0 %4417, %v359
        %v4419 = vpop.permute.xlu0 %4418
        %4421 = vset.pattern.permute.xlu0 22
        %4422 = vperm.xlu0 %4421, %v360
        %v4423 = vpop.permute.xlu0 %4422
        %4425 = vset.pattern.permute.xlu0 22
        %4426 = vperm.xlu0 %4425, %v361
        %v4427 = vpop.permute.xlu0 %4426
        %4429 = vset.pattern.permute.xlu0 22
        %4430 = vperm.xlu0 %4429, %v362
        %v4431 = vpop.permute.xlu0 %4430
        %4433 = vset.pattern.permute.xlu0 22
        %4434 = vperm.xlu0 %4433, %v363
        %v4435 = vpop.permute.xlu0 %4434
        %4437 = vset.pattern.permute.xlu0 22
        %4438 = vperm.xlu0 %4437, %v364
        %v4439 = vpop.permute.xlu0 %4438
        %v4441 = vmul.f32 %v4401, %v4411
        %v4442 = vmul.f32 %v4402, %v4415
        %v4443 = vmul.f32 %v4403, %v4419
        %v4444 = vmul.f32 %v4404, %v4423
        %v4445 = vmul.f32 %v4405, %v4427
        %v4446 = vmul.f32 %v4406, %v4431
        %v4447 = vmul.f32 %v4407, %v4435
        %v4448 = vmul.f32 %v4408, %v4439
        %v4449 = vsub.f32 0.0, %v4441
        %v4450 = vsub.f32 0.0, %v4442
        %v4451 = vsub.f32 0.0, %v4443
        %v4452 = vsub.f32 0.0, %v4444
        %v4453 = vsub.f32 0.0, %v4445
        %v4454 = vsub.f32 0.0, %v4446
        %v4455 = vsub.f32 0.0, %v4447
        %v4456 = vsub.f32 0.0, %v4448
        %4457 = vset.pattern.permute.xlu0 22
        %4458 = vperm.xlu0 %4457, %v373
        %v4459 = vpop.permute.xlu0 %4458
        %4461 = vset.pattern.permute.xlu0 22
        %4462 = vperm.xlu0 %4461, %v374
        %v4463 = vpop.permute.xlu0 %4462
        %4465 = vset.pattern.permute.xlu0 22
        %4466 = vperm.xlu0 %4465, %v375
        %v4467 = vpop.permute.xlu0 %4466
        %4469 = vset.pattern.permute.xlu0 22
        %4470 = vperm.xlu0 %4469, %v376
        %v4471 = vpop.permute.xlu0 %4470
        %4473 = vset.pattern.permute.xlu0 22
        %4474 = vperm.xlu0 %4473, %v377
        %v4475 = vpop.permute.xlu0 %4474
        %4477 = vset.pattern.permute.xlu0 22
        %4478 = vperm.xlu0 %4477, %v378
        %v4479 = vpop.permute.xlu0 %4478
        %4481 = vset.pattern.permute.xlu0 22
        %4482 = vperm.xlu0 %4481, %v379
        %v4483 = vpop.permute.xlu0 %4482
        %4485 = vset.pattern.permute.xlu0 22
        %4486 = vperm.xlu0 %4485, %v380
        %v4487 = vpop.permute.xlu0 %4486
        %v4489 = vmul.f32 %v4459, %v4449
        %v4490 = vmul.f32 %v4463, %v4450
        %v4491 = vmul.f32 %v4467, %v4451
        %v4492 = vmul.f32 %v4471, %v4452
        %v4493 = vmul.f32 %v4475, %v4453
        %v4494 = vmul.f32 %v4479, %v4454
        %v4495 = vmul.f32 %v4483, %v4455
        %v4496 = vmul.f32 %v4487, %v4456
        %v4497 = vmul.f32 %v4441, %v4441
        %v4498 = vmul.f32 %v4442, %v4442
        %v4499 = vmul.f32 %v4443, %v4443
        %v4500 = vmul.f32 %v4444, %v4444
        %v4501 = vmul.f32 %v4445, %v4445
        %v4502 = vmul.f32 %v4446, %v4446
        %v4503 = vmul.f32 %v4447, %v4447
        %v4504 = vmul.f32 %v4448, %v4448
        %v4505 = vmul.f32 %v4497, -0.5
        %v4506 = vmul.f32 %v4498, -0.5
        %v4507 = vmul.f32 %v4499, -0.5
        %v4508 = vmul.f32 %v4500, -0.5
        %v4509 = vmul.f32 %v4501, -0.5
        %v4510 = vmul.f32 %v4502, -0.5
        %v4511 = vmul.f32 %v4503, -0.5
        %v4512 = vmul.f32 %v4504, -0.5
        %v4513 = vmul.f32 %v4505, 1.442695
        %v4514 = vpow.pop %v4513
        %v4515 = vmul.f32 %v4506, 1.442695
        %v4516 = vpow.pop %v4515
        %v4517 = vmul.f32 %v4507, 1.442695
        %v4518 = vpow.pop %v4517
        %v4519 = vmul.f32 %v4508, 1.442695
        %v4520 = vpow.pop %v4519
        %v4521 = vmul.f32 %v4509, 1.442695
        %v4522 = vpow.pop %v4521
        %v4523 = vmul.f32 %v4510, 1.442695
        %v4524 = vpow.pop %v4523
        %v4525 = vmul.f32 %v4511, 1.442695
        %v4526 = vpow.pop %v4525
        %v4527 = vmul.f32 %v4512, 1.442695
        %v4528 = vpow.pop %v4527
        %v4529 = vmul.f32 %v4489, %v4514
        %v4530 = vmul.f32 %v4490, %v4516
        %v4531 = vmul.f32 %v4491, %v4518
        %v4532 = vmul.f32 %v4492, %v4520
        %v4533 = vmul.f32 %v4493, %v4522
        %v4534 = vmul.f32 %v4494, %v4524
        %v4535 = vmul.f32 %v4495, %v4526
        %v4536 = vmul.f32 %v4496, %v4528
        %v4537 = vadd.f32 %v4357, %v4529
        %v4538 = vadd.f32 %v4358, %v4530
        %v4539 = vadd.f32 %v4359, %v4531
        %v4540 = vadd.f32 %v4360, %v4532
        %v4541 = vadd.f32 %v4361, %v4533
        %v4542 = vadd.f32 %v4362, %v4534
        %v4543 = vadd.f32 %v4363, %v4535
        %v4544 = vadd.f32 %v4364, %v4536
        %v4545 = vlaneseq
        %v4546 = vshrl.u32 %v4545, 7
        %v4547 = vsub.s32 7, %v4546
        %v4548 = vrot.slane %v355, %v4547
        %4549 = vset.pattern.permute.xlu0 23
        %4550 = vperm.xlu0 %4549, %v365
        %v4551 = vpop.permute.xlu0 %4550
        %4553 = vset.pattern.permute.xlu0 23
        %4554 = vperm.xlu0 %4553, %v366
        %v4555 = vpop.permute.xlu0 %4554
        %4557 = vset.pattern.permute.xlu0 23
        %4558 = vperm.xlu0 %4557, %v367
        %v4559 = vpop.permute.xlu0 %4558
        %4561 = vset.pattern.permute.xlu0 23
        %4562 = vperm.xlu0 %4561, %v368
        %v4563 = vpop.permute.xlu0 %4562
        %4565 = vset.pattern.permute.xlu0 23
        %4566 = vperm.xlu0 %4565, %v369
        %v4567 = vpop.permute.xlu0 %4566
        %4569 = vset.pattern.permute.xlu0 23
        %4570 = vperm.xlu0 %4569, %v370
        %v4571 = vpop.permute.xlu0 %4570
        %4573 = vset.pattern.permute.xlu0 23
        %4574 = vperm.xlu0 %4573, %v371
        %v4575 = vpop.permute.xlu0 %4574
        %4577 = vset.pattern.permute.xlu0 23
        %4578 = vperm.xlu0 %4577, %v372
        %v4579 = vpop.permute.xlu0 %4578
        %v4581 = vsub.f32 %v4548, %v4551
        %v4582 = vsub.f32 %v4548, %v4555
        %v4583 = vsub.f32 %v4548, %v4559
        %v4584 = vsub.f32 %v4548, %v4563
        %v4585 = vsub.f32 %v4548, %v4567
        %v4586 = vsub.f32 %v4548, %v4571
        %v4587 = vsub.f32 %v4548, %v4575
        %v4588 = vsub.f32 %v4548, %v4579
        %4589 = vset.pattern.permute.xlu0 23
        %4590 = vperm.xlu0 %4589, %v357
        %v4591 = vpop.permute.xlu0 %4590
        %4593 = vset.pattern.permute.xlu0 23
        %4594 = vperm.xlu0 %4593, %v358
        %v4595 = vpop.permute.xlu0 %4594
        %4597 = vset.pattern.permute.xlu0 23
        %4598 = vperm.xlu0 %4597, %v359
        %v4599 = vpop.permute.xlu0 %4598
        %4601 = vset.pattern.permute.xlu0 23
        %4602 = vperm.xlu0 %4601, %v360
        %v4603 = vpop.permute.xlu0 %4602
        %4605 = vset.pattern.permute.xlu0 23
        %4606 = vperm.xlu0 %4605, %v361
        %v4607 = vpop.permute.xlu0 %4606
        %4609 = vset.pattern.permute.xlu0 23
        %4610 = vperm.xlu0 %4609, %v362
        %v4611 = vpop.permute.xlu0 %4610
        %4613 = vset.pattern.permute.xlu0 23
        %4614 = vperm.xlu0 %4613, %v363
        %v4615 = vpop.permute.xlu0 %4614
        %4617 = vset.pattern.permute.xlu0 23
        %4618 = vperm.xlu0 %4617, %v364
        %v4619 = vpop.permute.xlu0 %4618
        %v4621 = vmul.f32 %v4581, %v4591
        %v4622 = vmul.f32 %v4582, %v4595
        %v4623 = vmul.f32 %v4583, %v4599
        %v4624 = vmul.f32 %v4584, %v4603
        %v4625 = vmul.f32 %v4585, %v4607
        %v4626 = vmul.f32 %v4586, %v4611
        %v4627 = vmul.f32 %v4587, %v4615
        %v4628 = vmul.f32 %v4588, %v4619
        %v4629 = vsub.f32 0.0, %v4621
        %v4630 = vsub.f32 0.0, %v4622
        %v4631 = vsub.f32 0.0, %v4623
        %v4632 = vsub.f32 0.0, %v4624
        %v4633 = vsub.f32 0.0, %v4625
        %v4634 = vsub.f32 0.0, %v4626
        %v4635 = vsub.f32 0.0, %v4627
        %v4636 = vsub.f32 0.0, %v4628
        %4637 = vset.pattern.permute.xlu0 23
        %4638 = vperm.xlu0 %4637, %v373
        %v4639 = vpop.permute.xlu0 %4638
        %4641 = vset.pattern.permute.xlu0 23
        %4642 = vperm.xlu0 %4641, %v374
        %v4643 = vpop.permute.xlu0 %4642
        %4645 = vset.pattern.permute.xlu0 23
        %4646 = vperm.xlu0 %4645, %v375
        %v4647 = vpop.permute.xlu0 %4646
        %4649 = vset.pattern.permute.xlu0 23
        %4650 = vperm.xlu0 %4649, %v376
        %v4651 = vpop.permute.xlu0 %4650
        %4653 = vset.pattern.permute.xlu0 23
        %4654 = vperm.xlu0 %4653, %v377
        %v4655 = vpop.permute.xlu0 %4654
        %4657 = vset.pattern.permute.xlu0 23
        %4658 = vperm.xlu0 %4657, %v378
        %v4659 = vpop.permute.xlu0 %4658
        %4661 = vset.pattern.permute.xlu0 23
        %4662 = vperm.xlu0 %4661, %v379
        %v4663 = vpop.permute.xlu0 %4662
        %4665 = vset.pattern.permute.xlu0 23
        %4666 = vperm.xlu0 %4665, %v380
        %v4667 = vpop.permute.xlu0 %4666
        %v4669 = vmul.f32 %v4639, %v4629
        %v4670 = vmul.f32 %v4643, %v4630
        %v4671 = vmul.f32 %v4647, %v4631
        %v4672 = vmul.f32 %v4651, %v4632
        %v4673 = vmul.f32 %v4655, %v4633
        %v4674 = vmul.f32 %v4659, %v4634
        %v4675 = vmul.f32 %v4663, %v4635
        %v4676 = vmul.f32 %v4667, %v4636
        %v4677 = vmul.f32 %v4621, %v4621
        %v4678 = vmul.f32 %v4622, %v4622
        %v4679 = vmul.f32 %v4623, %v4623
        %v4680 = vmul.f32 %v4624, %v4624
        %v4681 = vmul.f32 %v4625, %v4625
        %v4682 = vmul.f32 %v4626, %v4626
        %v4683 = vmul.f32 %v4627, %v4627
        %v4684 = vmul.f32 %v4628, %v4628
        %v4685 = vmul.f32 %v4677, -0.5
        %v4686 = vmul.f32 %v4678, -0.5
        %v4687 = vmul.f32 %v4679, -0.5
        %v4688 = vmul.f32 %v4680, -0.5
        %v4689 = vmul.f32 %v4681, -0.5
        %v4690 = vmul.f32 %v4682, -0.5
        %v4691 = vmul.f32 %v4683, -0.5
        %v4692 = vmul.f32 %v4684, -0.5
        %v4693 = vmul.f32 %v4685, 1.442695
        %v4694 = vpow.pop %v4693
        %v4695 = vmul.f32 %v4686, 1.442695
        %v4696 = vpow.pop %v4695
        %v4697 = vmul.f32 %v4687, 1.442695
        %v4698 = vpow.pop %v4697
        %v4699 = vmul.f32 %v4688, 1.442695
        %v4700 = vpow.pop %v4699
        %v4701 = vmul.f32 %v4689, 1.442695
        %v4702 = vpow.pop %v4701
        %v4703 = vmul.f32 %v4690, 1.442695
        %v4704 = vpow.pop %v4703
        %v4705 = vmul.f32 %v4691, 1.442695
        %v4706 = vpow.pop %v4705
        %v4707 = vmul.f32 %v4692, 1.442695
        %v4708 = vpow.pop %v4707
        %v4709 = vmul.f32 %v4669, %v4694
        %v4710 = vmul.f32 %v4670, %v4696
        %v4711 = vmul.f32 %v4671, %v4698
        %v4712 = vmul.f32 %v4672, %v4700
        %v4713 = vmul.f32 %v4673, %v4702
        %v4714 = vmul.f32 %v4674, %v4704
        %v4715 = vmul.f32 %v4675, %v4706
        %v4716 = vmul.f32 %v4676, %v4708
        %v4717 = vadd.f32 %v4537, %v4709
        %v4718 = vadd.f32 %v4538, %v4710
        %v4719 = vadd.f32 %v4539, %v4711
        %v4720 = vadd.f32 %v4540, %v4712
        %v4721 = vadd.f32 %v4541, %v4713
        %v4722 = vadd.f32 %v4542, %v4714
        %v4723 = vadd.f32 %v4543, %v4715
        %v4724 = vadd.f32 %v4544, %v4716
        %v4725 = vlaneseq
        %v4726 = vshrl.u32 %v4725, 7
        %v4727 = vsub.s32 0, %v4726
        %v4728 = vrot.slane %v356, %v4727
        %4729 = vset.pattern.permute.xlu0 24
        %4730 = vperm.xlu0 %4729, %v365
        %v4731 = vpop.permute.xlu0 %4730
        %4733 = vset.pattern.permute.xlu0 24
        %4734 = vperm.xlu0 %4733, %v366
        %v4735 = vpop.permute.xlu0 %4734
        %4737 = vset.pattern.permute.xlu0 24
        %4738 = vperm.xlu0 %4737, %v367
        %v4739 = vpop.permute.xlu0 %4738
        %4741 = vset.pattern.permute.xlu0 24
        %4742 = vperm.xlu0 %4741, %v368
        %v4743 = vpop.permute.xlu0 %4742
        %4745 = vset.pattern.permute.xlu0 24
        %4746 = vperm.xlu0 %4745, %v369
        %v4747 = vpop.permute.xlu0 %4746
        %4749 = vset.pattern.permute.xlu0 24
        %4750 = vperm.xlu0 %4749, %v370
        %v4751 = vpop.permute.xlu0 %4750
        %4753 = vset.pattern.permute.xlu0 24
        %4754 = vperm.xlu0 %4753, %v371
        %v4755 = vpop.permute.xlu0 %4754
        %4757 = vset.pattern.permute.xlu0 24
        %4758 = vperm.xlu0 %4757, %v372
        %v4759 = vpop.permute.xlu0 %4758
        %v4761 = vsub.f32 %v4728, %v4731
        %v4762 = vsub.f32 %v4728, %v4735
        %v4763 = vsub.f32 %v4728, %v4739
        %v4764 = vsub.f32 %v4728, %v4743
        %v4765 = vsub.f32 %v4728, %v4747
        %v4766 = vsub.f32 %v4728, %v4751
        %v4767 = vsub.f32 %v4728, %v4755
        %v4768 = vsub.f32 %v4728, %v4759
        %4769 = vset.pattern.permute.xlu0 24
        %4770 = vperm.xlu0 %4769, %v357
        %v4771 = vpop.permute.xlu0 %4770
        %4773 = vset.pattern.permute.xlu0 24
        %4774 = vperm.xlu0 %4773, %v358
        %v4775 = vpop.permute.xlu0 %4774
        %4777 = vset.pattern.permute.xlu0 24
        %4778 = vperm.xlu0 %4777, %v359
        %v4779 = vpop.permute.xlu0 %4778
        %4781 = vset.pattern.permute.xlu0 24
        %4782 = vperm.xlu0 %4781, %v360
        %v4783 = vpop.permute.xlu0 %4782
        %4785 = vset.pattern.permute.xlu0 24
        %4786 = vperm.xlu0 %4785, %v361
        %v4787 = vpop.permute.xlu0 %4786
        %4789 = vset.pattern.permute.xlu0 24
        %4790 = vperm.xlu0 %4789, %v362
        %v4791 = vpop.permute.xlu0 %4790
        %4793 = vset.pattern.permute.xlu0 24
        %4794 = vperm.xlu0 %4793, %v363
        %v4795 = vpop.permute.xlu0 %4794
        %4797 = vset.pattern.permute.xlu0 24
        %4798 = vperm.xlu0 %4797, %v364
        %v4799 = vpop.permute.xlu0 %4798
        %v4801 = vmul.f32 %v4761, %v4771
        %v4802 = vmul.f32 %v4762, %v4775
        %v4803 = vmul.f32 %v4763, %v4779
        %v4804 = vmul.f32 %v4764, %v4783
        %v4805 = vmul.f32 %v4765, %v4787
        %v4806 = vmul.f32 %v4766, %v4791
        %v4807 = vmul.f32 %v4767, %v4795
        %v4808 = vmul.f32 %v4768, %v4799
        %v4809 = vsub.f32 0.0, %v4801
        %v4810 = vsub.f32 0.0, %v4802
        %v4811 = vsub.f32 0.0, %v4803
        %v4812 = vsub.f32 0.0, %v4804
        %v4813 = vsub.f32 0.0, %v4805
        %v4814 = vsub.f32 0.0, %v4806
        %v4815 = vsub.f32 0.0, %v4807
        %v4816 = vsub.f32 0.0, %v4808
        %4817 = vset.pattern.permute.xlu0 24
        %4818 = vperm.xlu0 %4817, %v373
        %v4819 = vpop.permute.xlu0 %4818
        %4821 = vset.pattern.permute.xlu0 24
        %4822 = vperm.xlu0 %4821, %v374
        %v4823 = vpop.permute.xlu0 %4822
        %4825 = vset.pattern.permute.xlu0 24
        %4826 = vperm.xlu0 %4825, %v375
        %v4827 = vpop.permute.xlu0 %4826
        %4829 = vset.pattern.permute.xlu0 24
        %4830 = vperm.xlu0 %4829, %v376
        %v4831 = vpop.permute.xlu0 %4830
        %4833 = vset.pattern.permute.xlu0 24
        %4834 = vperm.xlu0 %4833, %v377
        %v4835 = vpop.permute.xlu0 %4834
        %4837 = vset.pattern.permute.xlu0 24
        %4838 = vperm.xlu0 %4837, %v378
        %v4839 = vpop.permute.xlu0 %4838
        %4841 = vset.pattern.permute.xlu0 24
        %4842 = vperm.xlu0 %4841, %v379
        %v4843 = vpop.permute.xlu0 %4842
        %4845 = vset.pattern.permute.xlu0 24
        %4846 = vperm.xlu0 %4845, %v380
        %v4847 = vpop.permute.xlu0 %4846
        %v4849 = vmul.f32 %v4819, %v4809
        %v4850 = vmul.f32 %v4823, %v4810
        %v4851 = vmul.f32 %v4827, %v4811
        %v4852 = vmul.f32 %v4831, %v4812
        %v4853 = vmul.f32 %v4835, %v4813
        %v4854 = vmul.f32 %v4839, %v4814
        %v4855 = vmul.f32 %v4843, %v4815
        %v4856 = vmul.f32 %v4847, %v4816
        %v4857 = vmul.f32 %v4801, %v4801
        %v4858 = vmul.f32 %v4802, %v4802
        %v4859 = vmul.f32 %v4803, %v4803
        %v4860 = vmul.f32 %v4804, %v4804
        %v4861 = vmul.f32 %v4805, %v4805
        %v4862 = vmul.f32 %v4806, %v4806
        %v4863 = vmul.f32 %v4807, %v4807
        %v4864 = vmul.f32 %v4808, %v4808
        %v4865 = vmul.f32 %v4857, -0.5
        %v4866 = vmul.f32 %v4858, -0.5
        %v4867 = vmul.f32 %v4859, -0.5
        %v4868 = vmul.f32 %v4860, -0.5
        %v4869 = vmul.f32 %v4861, -0.5
        %v4870 = vmul.f32 %v4862, -0.5
        %v4871 = vmul.f32 %v4863, -0.5
        %v4872 = vmul.f32 %v4864, -0.5
        %v4873 = vmul.f32 %v4865, 1.442695
        %v4874 = vpow.pop %v4873
        %v4875 = vmul.f32 %v4866, 1.442695
        %v4876 = vpow.pop %v4875
        %v4877 = vmul.f32 %v4867, 1.442695
        %v4878 = vpow.pop %v4877
        %v4879 = vmul.f32 %v4868, 1.442695
        %v4880 = vpow.pop %v4879
        %v4881 = vmul.f32 %v4869, 1.442695
        %v4882 = vpow.pop %v4881
        %v4883 = vmul.f32 %v4870, 1.442695
        %v4884 = vpow.pop %v4883
        %v4885 = vmul.f32 %v4871, 1.442695
        %v4886 = vpow.pop %v4885
        %v4887 = vmul.f32 %v4872, 1.442695
        %v4888 = vpow.pop %v4887
        %v4889 = vmul.f32 %v4849, %v4874
        %v4890 = vmul.f32 %v4850, %v4876
        %v4891 = vmul.f32 %v4851, %v4878
        %v4892 = vmul.f32 %v4852, %v4880
        %v4893 = vmul.f32 %v4853, %v4882
        %v4894 = vmul.f32 %v4854, %v4884
        %v4895 = vmul.f32 %v4855, %v4886
        %v4896 = vmul.f32 %v4856, %v4888
        %v4897 = vadd.f32 %v4717, %v4889
        %v4898 = vadd.f32 %v4718, %v4890
        %v4899 = vadd.f32 %v4719, %v4891
        %v4900 = vadd.f32 %v4720, %v4892
        %v4901 = vadd.f32 %v4721, %v4893
        %v4902 = vadd.f32 %v4722, %v4894
        %v4903 = vadd.f32 %v4723, %v4895
        %v4904 = vadd.f32 %v4724, %v4896
        %v4905 = vlaneseq
        %v4906 = vshrl.u32 %v4905, 7
        %v4907 = vsub.s32 1, %v4906
        %v4908 = vrot.slane %v356, %v4907
        %4909 = vset.pattern.permute.xlu0 25
        %4910 = vperm.xlu0 %4909, %v365
        %v4911 = vpop.permute.xlu0 %4910
        %4913 = vset.pattern.permute.xlu0 25
        %4914 = vperm.xlu0 %4913, %v366
        %v4915 = vpop.permute.xlu0 %4914
        %4917 = vset.pattern.permute.xlu0 25
        %4918 = vperm.xlu0 %4917, %v367
        %v4919 = vpop.permute.xlu0 %4918
        %4921 = vset.pattern.permute.xlu0 25
        %4922 = vperm.xlu0 %4921, %v368
        %v4923 = vpop.permute.xlu0 %4922
        %4925 = vset.pattern.permute.xlu0 25
        %4926 = vperm.xlu0 %4925, %v369
        %v4927 = vpop.permute.xlu0 %4926
        %4929 = vset.pattern.permute.xlu0 25
        %4930 = vperm.xlu0 %4929, %v370
        %v4931 = vpop.permute.xlu0 %4930
        %4933 = vset.pattern.permute.xlu0 25
        %4934 = vperm.xlu0 %4933, %v371
        %v4935 = vpop.permute.xlu0 %4934
        %4937 = vset.pattern.permute.xlu0 25
        %4938 = vperm.xlu0 %4937, %v372
        %v4939 = vpop.permute.xlu0 %4938
        %v4941 = vsub.f32 %v4908, %v4911
        %v4942 = vsub.f32 %v4908, %v4915
        %v4943 = vsub.f32 %v4908, %v4919
        %v4944 = vsub.f32 %v4908, %v4923
        %v4945 = vsub.f32 %v4908, %v4927
        %v4946 = vsub.f32 %v4908, %v4931
        %v4947 = vsub.f32 %v4908, %v4935
        %v4948 = vsub.f32 %v4908, %v4939
        %4949 = vset.pattern.permute.xlu0 25
        %4950 = vperm.xlu0 %4949, %v357
        %v4951 = vpop.permute.xlu0 %4950
        %4953 = vset.pattern.permute.xlu0 25
        %4954 = vperm.xlu0 %4953, %v358
        %v4955 = vpop.permute.xlu0 %4954
        %4957 = vset.pattern.permute.xlu0 25
        %4958 = vperm.xlu0 %4957, %v359
        %v4959 = vpop.permute.xlu0 %4958
        %4961 = vset.pattern.permute.xlu0 25
        %4962 = vperm.xlu0 %4961, %v360
        %v4963 = vpop.permute.xlu0 %4962
        %4965 = vset.pattern.permute.xlu0 25
        %4966 = vperm.xlu0 %4965, %v361
        %v4967 = vpop.permute.xlu0 %4966
        %4969 = vset.pattern.permute.xlu0 25
        %4970 = vperm.xlu0 %4969, %v362
        %v4971 = vpop.permute.xlu0 %4970
        %4973 = vset.pattern.permute.xlu0 25
        %4974 = vperm.xlu0 %4973, %v363
        %v4975 = vpop.permute.xlu0 %4974
        %4977 = vset.pattern.permute.xlu0 25
        %4978 = vperm.xlu0 %4977, %v364
        %v4979 = vpop.permute.xlu0 %4978
        %v4981 = vmul.f32 %v4941, %v4951
        %v4982 = vmul.f32 %v4942, %v4955
        %v4983 = vmul.f32 %v4943, %v4959
        %v4984 = vmul.f32 %v4944, %v4963
        %v4985 = vmul.f32 %v4945, %v4967
        %v4986 = vmul.f32 %v4946, %v4971
        %v4987 = vmul.f32 %v4947, %v4975
        %v4988 = vmul.f32 %v4948, %v4979
        %v4989 = vsub.f32 0.0, %v4981
        %v4990 = vsub.f32 0.0, %v4982
        %v4991 = vsub.f32 0.0, %v4983
        %v4992 = vsub.f32 0.0, %v4984
        %v4993 = vsub.f32 0.0, %v4985
        %v4994 = vsub.f32 0.0, %v4986
        %v4995 = vsub.f32 0.0, %v4987
        %v4996 = vsub.f32 0.0, %v4988
        %4997 = vset.pattern.permute.xlu0 25
        %4998 = vperm.xlu0 %4997, %v373
        %v4999 = vpop.permute.xlu0 %4998
        %5001 = vset.pattern.permute.xlu0 25
        %5002 = vperm.xlu0 %5001, %v374
        %v5003 = vpop.permute.xlu0 %5002
        %5005 = vset.pattern.permute.xlu0 25
        %5006 = vperm.xlu0 %5005, %v375
        %v5007 = vpop.permute.xlu0 %5006
        %5009 = vset.pattern.permute.xlu0 25
        %5010 = vperm.xlu0 %5009, %v376
        %v5011 = vpop.permute.xlu0 %5010
        %5013 = vset.pattern.permute.xlu0 25
        %5014 = vperm.xlu0 %5013, %v377
        %v5015 = vpop.permute.xlu0 %5014
        %5017 = vset.pattern.permute.xlu0 25
        %5018 = vperm.xlu0 %5017, %v378
        %v5019 = vpop.permute.xlu0 %5018
        %5021 = vset.pattern.permute.xlu0 25
        %5022 = vperm.xlu0 %5021, %v379
        %v5023 = vpop.permute.xlu0 %5022
        %5025 = vset.pattern.permute.xlu0 25
        %5026 = vperm.xlu0 %5025, %v380
        %v5027 = vpop.permute.xlu0 %5026
        %v5029 = vmul.f32 %v4999, %v4989
        %v5030 = vmul.f32 %v5003, %v4990
        %v5031 = vmul.f32 %v5007, %v4991
        %v5032 = vmul.f32 %v5011, %v4992
        %v5033 = vmul.f32 %v5015, %v4993
        %v5034 = vmul.f32 %v5019, %v4994
        %v5035 = vmul.f32 %v5023, %v4995
        %v5036 = vmul.f32 %v5027, %v4996
        %v5037 = vmul.f32 %v4981, %v4981
        %v5038 = vmul.f32 %v4982, %v4982
        %v5039 = vmul.f32 %v4983, %v4983
        %v5040 = vmul.f32 %v4984, %v4984
        %v5041 = vmul.f32 %v4985, %v4985
        %v5042 = vmul.f32 %v4986, %v4986
        %v5043 = vmul.f32 %v4987, %v4987
        %v5044 = vmul.f32 %v4988, %v4988
        %v5045 = vmul.f32 %v5037, -0.5
        %v5046 = vmul.f32 %v5038, -0.5
        %v5047 = vmul.f32 %v5039, -0.5
        %v5048 = vmul.f32 %v5040, -0.5
        %v5049 = vmul.f32 %v5041, -0.5
        %v5050 = vmul.f32 %v5042, -0.5
        %v5051 = vmul.f32 %v5043, -0.5
        %v5052 = vmul.f32 %v5044, -0.5
        %v5053 = vmul.f32 %v5045, 1.442695
        %v5054 = vpow.pop %v5053
        %v5055 = vmul.f32 %v5046, 1.442695
        %v5056 = vpow.pop %v5055
        %v5057 = vmul.f32 %v5047, 1.442695
        %v5058 = vpow.pop %v5057
        %v5059 = vmul.f32 %v5048, 1.442695
        %v5060 = vpow.pop %v5059
        %v5061 = vmul.f32 %v5049, 1.442695
        %v5062 = vpow.pop %v5061
        %v5063 = vmul.f32 %v5050, 1.442695
        %v5064 = vpow.pop %v5063
        %v5065 = vmul.f32 %v5051, 1.442695
        %v5066 = vpow.pop %v5065
        %v5067 = vmul.f32 %v5052, 1.442695
        %v5068 = vpow.pop %v5067
        %v5069 = vmul.f32 %v5029, %v5054
        %v5070 = vmul.f32 %v5030, %v5056
        %v5071 = vmul.f32 %v5031, %v5058
        %v5072 = vmul.f32 %v5032, %v5060
        %v5073 = vmul.f32 %v5033, %v5062
        %v5074 = vmul.f32 %v5034, %v5064
        %v5075 = vmul.f32 %v5035, %v5066
        %v5076 = vmul.f32 %v5036, %v5068
        %v5077 = vadd.f32 %v4897, %v5069
        %v5078 = vadd.f32 %v4898, %v5070
        %v5079 = vadd.f32 %v4899, %v5071
        %v5080 = vadd.f32 %v4900, %v5072
        %v5081 = vadd.f32 %v4901, %v5073
        %v5082 = vadd.f32 %v4902, %v5074
        %v5083 = vadd.f32 %v4903, %v5075
        %v5084 = vadd.f32 %v4904, %v5076
        %v5085 = vlaneseq
        %v5086 = vshrl.u32 %v5085, 7
        %v5087 = vsub.s32 2, %v5086
        %v5088 = vrot.slane %v356, %v5087
        %5089 = vset.pattern.permute.xlu0 26
        %5090 = vperm.xlu0 %5089, %v365
        %v5091 = vpop.permute.xlu0 %5090
        %5093 = vset.pattern.permute.xlu0 26
        %5094 = vperm.xlu0 %5093, %v366
        %v5095 = vpop.permute.xlu0 %5094
        %5097 = vset.pattern.permute.xlu0 26
        %5098 = vperm.xlu0 %5097, %v367
        %v5099 = vpop.permute.xlu0 %5098
        %5101 = vset.pattern.permute.xlu0 26
        %5102 = vperm.xlu0 %5101, %v368
        %v5103 = vpop.permute.xlu0 %5102
        %5105 = vset.pattern.permute.xlu0 26
        %5106 = vperm.xlu0 %5105, %v369
        %v5107 = vpop.permute.xlu0 %5106
        %5109 = vset.pattern.permute.xlu0 26
        %5110 = vperm.xlu0 %5109, %v370
        %v5111 = vpop.permute.xlu0 %5110
        %5113 = vset.pattern.permute.xlu0 26
        %5114 = vperm.xlu0 %5113, %v371
        %v5115 = vpop.permute.xlu0 %5114
        %5117 = vset.pattern.permute.xlu0 26
        %5118 = vperm.xlu0 %5117, %v372
        %v5119 = vpop.permute.xlu0 %5118
        %v5121 = vsub.f32 %v5088, %v5091
        %v5122 = vsub.f32 %v5088, %v5095
        %v5123 = vsub.f32 %v5088, %v5099
        %v5124 = vsub.f32 %v5088, %v5103
        %v5125 = vsub.f32 %v5088, %v5107
        %v5126 = vsub.f32 %v5088, %v5111
        %v5127 = vsub.f32 %v5088, %v5115
        %v5128 = vsub.f32 %v5088, %v5119
        %5129 = vset.pattern.permute.xlu0 26
        %5130 = vperm.xlu0 %5129, %v357
        %v5131 = vpop.permute.xlu0 %5130
        %5133 = vset.pattern.permute.xlu0 26
        %5134 = vperm.xlu0 %5133, %v358
        %v5135 = vpop.permute.xlu0 %5134
        %5137 = vset.pattern.permute.xlu0 26
        %5138 = vperm.xlu0 %5137, %v359
        %v5139 = vpop.permute.xlu0 %5138
        %5141 = vset.pattern.permute.xlu0 26
        %5142 = vperm.xlu0 %5141, %v360
        %v5143 = vpop.permute.xlu0 %5142
        %5145 = vset.pattern.permute.xlu0 26
        %5146 = vperm.xlu0 %5145, %v361
        %v5147 = vpop.permute.xlu0 %5146
        %5149 = vset.pattern.permute.xlu0 26
        %5150 = vperm.xlu0 %5149, %v362
        %v5151 = vpop.permute.xlu0 %5150
        %5153 = vset.pattern.permute.xlu0 26
        %5154 = vperm.xlu0 %5153, %v363
        %v5155 = vpop.permute.xlu0 %5154
        %5157 = vset.pattern.permute.xlu0 26
        %5158 = vperm.xlu0 %5157, %v364
        %v5159 = vpop.permute.xlu0 %5158
        %v5161 = vmul.f32 %v5121, %v5131
        %v5162 = vmul.f32 %v5122, %v5135
        %v5163 = vmul.f32 %v5123, %v5139
        %v5164 = vmul.f32 %v5124, %v5143
        %v5165 = vmul.f32 %v5125, %v5147
        %v5166 = vmul.f32 %v5126, %v5151
        %v5167 = vmul.f32 %v5127, %v5155
        %v5168 = vmul.f32 %v5128, %v5159
        %v5169 = vsub.f32 0.0, %v5161
        %v5170 = vsub.f32 0.0, %v5162
        %v5171 = vsub.f32 0.0, %v5163
        %v5172 = vsub.f32 0.0, %v5164
        %v5173 = vsub.f32 0.0, %v5165
        %v5174 = vsub.f32 0.0, %v5166
        %v5175 = vsub.f32 0.0, %v5167
        %v5176 = vsub.f32 0.0, %v5168
        %5177 = vset.pattern.permute.xlu0 26
        %5178 = vperm.xlu0 %5177, %v373
        %v5179 = vpop.permute.xlu0 %5178
        %5181 = vset.pattern.permute.xlu0 26
        %5182 = vperm.xlu0 %5181, %v374
        %v5183 = vpop.permute.xlu0 %5182
        %5185 = vset.pattern.permute.xlu0 26
        %5186 = vperm.xlu0 %5185, %v375
        %v5187 = vpop.permute.xlu0 %5186
        %5189 = vset.pattern.permute.xlu0 26
        %5190 = vperm.xlu0 %5189, %v376
        %v5191 = vpop.permute.xlu0 %5190
        %5193 = vset.pattern.permute.xlu0 26
        %5194 = vperm.xlu0 %5193, %v377
        %v5195 = vpop.permute.xlu0 %5194
        %5197 = vset.pattern.permute.xlu0 26
        %5198 = vperm.xlu0 %5197, %v378
        %v5199 = vpop.permute.xlu0 %5198
        %5201 = vset.pattern.permute.xlu0 26
        %5202 = vperm.xlu0 %5201, %v379
        %v5203 = vpop.permute.xlu0 %5202
        %5205 = vset.pattern.permute.xlu0 26
        %5206 = vperm.xlu0 %5205, %v380
        %v5207 = vpop.permute.xlu0 %5206
        %v5209 = vmul.f32 %v5179, %v5169
        %v5210 = vmul.f32 %v5183, %v5170
        %v5211 = vmul.f32 %v5187, %v5171
        %v5212 = vmul.f32 %v5191, %v5172
        %v5213 = vmul.f32 %v5195, %v5173
        %v5214 = vmul.f32 %v5199, %v5174
        %v5215 = vmul.f32 %v5203, %v5175
        %v5216 = vmul.f32 %v5207, %v5176
        %v5217 = vmul.f32 %v5161, %v5161
        %v5218 = vmul.f32 %v5162, %v5162
        %v5219 = vmul.f32 %v5163, %v5163
        %v5220 = vmul.f32 %v5164, %v5164
        %v5221 = vmul.f32 %v5165, %v5165
        %v5222 = vmul.f32 %v5166, %v5166
        %v5223 = vmul.f32 %v5167, %v5167
        %v5224 = vmul.f32 %v5168, %v5168
        %v5225 = vmul.f32 %v5217, -0.5
        %v5226 = vmul.f32 %v5218, -0.5
        %v5227 = vmul.f32 %v5219, -0.5
        %v5228 = vmul.f32 %v5220, -0.5
        %v5229 = vmul.f32 %v5221, -0.5
        %v5230 = vmul.f32 %v5222, -0.5
        %v5231 = vmul.f32 %v5223, -0.5
        %v5232 = vmul.f32 %v5224, -0.5
        %v5233 = vmul.f32 %v5225, 1.442695
        %v5234 = vpow.pop %v5233
        %v5235 = vmul.f32 %v5226, 1.442695
        %v5236 = vpow.pop %v5235
        %v5237 = vmul.f32 %v5227, 1.442695
        %v5238 = vpow.pop %v5237
        %v5239 = vmul.f32 %v5228, 1.442695
        %v5240 = vpow.pop %v5239
        %v5241 = vmul.f32 %v5229, 1.442695
        %v5242 = vpow.pop %v5241
        %v5243 = vmul.f32 %v5230, 1.442695
        %v5244 = vpow.pop %v5243
        %v5245 = vmul.f32 %v5231, 1.442695
        %v5246 = vpow.pop %v5245
        %v5247 = vmul.f32 %v5232, 1.442695
        %v5248 = vpow.pop %v5247
        %v5249 = vmul.f32 %v5209, %v5234
        %v5250 = vmul.f32 %v5210, %v5236
        %v5251 = vmul.f32 %v5211, %v5238
        %v5252 = vmul.f32 %v5212, %v5240
        %v5253 = vmul.f32 %v5213, %v5242
        %v5254 = vmul.f32 %v5214, %v5244
        %v5255 = vmul.f32 %v5215, %v5246
        %v5256 = vmul.f32 %v5216, %v5248
        %v5257 = vadd.f32 %v5077, %v5249
        %v5258 = vadd.f32 %v5078, %v5250
        %v5259 = vadd.f32 %v5079, %v5251
        %v5260 = vadd.f32 %v5080, %v5252
        %v5261 = vadd.f32 %v5081, %v5253
        %v5262 = vadd.f32 %v5082, %v5254
        %v5263 = vadd.f32 %v5083, %v5255
        %v5264 = vadd.f32 %v5084, %v5256
        %v5265 = vlaneseq
        %v5266 = vshrl.u32 %v5265, 7
        %v5267 = vsub.s32 3, %v5266
        %v5268 = vrot.slane %v356, %v5267
        %5269 = vset.pattern.permute.xlu0 27
        %5270 = vperm.xlu0 %5269, %v365
        %v5271 = vpop.permute.xlu0 %5270
        %5273 = vset.pattern.permute.xlu0 27
        %5274 = vperm.xlu0 %5273, %v366
        %v5275 = vpop.permute.xlu0 %5274
        %5277 = vset.pattern.permute.xlu0 27
        %5278 = vperm.xlu0 %5277, %v367
        %v5279 = vpop.permute.xlu0 %5278
        %5281 = vset.pattern.permute.xlu0 27
        %5282 = vperm.xlu0 %5281, %v368
        %v5283 = vpop.permute.xlu0 %5282
        %5285 = vset.pattern.permute.xlu0 27
        %5286 = vperm.xlu0 %5285, %v369
        %v5287 = vpop.permute.xlu0 %5286
        %5289 = vset.pattern.permute.xlu0 27
        %5290 = vperm.xlu0 %5289, %v370
        %v5291 = vpop.permute.xlu0 %5290
        %5293 = vset.pattern.permute.xlu0 27
        %5294 = vperm.xlu0 %5293, %v371
        %v5295 = vpop.permute.xlu0 %5294
        %5297 = vset.pattern.permute.xlu0 27
        %5298 = vperm.xlu0 %5297, %v372
        %v5299 = vpop.permute.xlu0 %5298
        %v5301 = vsub.f32 %v5268, %v5271
        %v5302 = vsub.f32 %v5268, %v5275
        %v5303 = vsub.f32 %v5268, %v5279
        %v5304 = vsub.f32 %v5268, %v5283
        %v5305 = vsub.f32 %v5268, %v5287
        %v5306 = vsub.f32 %v5268, %v5291
        %v5307 = vsub.f32 %v5268, %v5295
        %v5308 = vsub.f32 %v5268, %v5299
        %5309 = vset.pattern.permute.xlu0 27
        %5310 = vperm.xlu0 %5309, %v357
        %v5311 = vpop.permute.xlu0 %5310
        %5313 = vset.pattern.permute.xlu0 27
        %5314 = vperm.xlu0 %5313, %v358
        %v5315 = vpop.permute.xlu0 %5314
        %5317 = vset.pattern.permute.xlu0 27
        %5318 = vperm.xlu0 %5317, %v359
        %v5319 = vpop.permute.xlu0 %5318
        %5321 = vset.pattern.permute.xlu0 27
        %5322 = vperm.xlu0 %5321, %v360
        %v5323 = vpop.permute.xlu0 %5322
        %5325 = vset.pattern.permute.xlu0 27
        %5326 = vperm.xlu0 %5325, %v361
        %v5327 = vpop.permute.xlu0 %5326
        %5329 = vset.pattern.permute.xlu0 27
        %5330 = vperm.xlu0 %5329, %v362
        %v5331 = vpop.permute.xlu0 %5330
        %5333 = vset.pattern.permute.xlu0 27
        %5334 = vperm.xlu0 %5333, %v363
        %v5335 = vpop.permute.xlu0 %5334
        %5337 = vset.pattern.permute.xlu0 27
        %5338 = vperm.xlu0 %5337, %v364
        %v5339 = vpop.permute.xlu0 %5338
        %v5341 = vmul.f32 %v5301, %v5311
        %v5342 = vmul.f32 %v5302, %v5315
        %v5343 = vmul.f32 %v5303, %v5319
        %v5344 = vmul.f32 %v5304, %v5323
        %v5345 = vmul.f32 %v5305, %v5327
        %v5346 = vmul.f32 %v5306, %v5331
        %v5347 = vmul.f32 %v5307, %v5335
        %v5348 = vmul.f32 %v5308, %v5339
        %v5349 = vsub.f32 0.0, %v5341
        %v5350 = vsub.f32 0.0, %v5342
        %v5351 = vsub.f32 0.0, %v5343
        %v5352 = vsub.f32 0.0, %v5344
        %v5353 = vsub.f32 0.0, %v5345
        %v5354 = vsub.f32 0.0, %v5346
        %v5355 = vsub.f32 0.0, %v5347
        %v5356 = vsub.f32 0.0, %v5348
        %5357 = vset.pattern.permute.xlu0 27
        %5358 = vperm.xlu0 %5357, %v373
        %v5359 = vpop.permute.xlu0 %5358
        %5361 = vset.pattern.permute.xlu0 27
        %5362 = vperm.xlu0 %5361, %v374
        %v5363 = vpop.permute.xlu0 %5362
        %5365 = vset.pattern.permute.xlu0 27
        %5366 = vperm.xlu0 %5365, %v375
        %v5367 = vpop.permute.xlu0 %5366
        %5369 = vset.pattern.permute.xlu0 27
        %5370 = vperm.xlu0 %5369, %v376
        %v5371 = vpop.permute.xlu0 %5370
        %5373 = vset.pattern.permute.xlu0 27
        %5374 = vperm.xlu0 %5373, %v377
        %v5375 = vpop.permute.xlu0 %5374
        %5377 = vset.pattern.permute.xlu0 27
        %5378 = vperm.xlu0 %5377, %v378
        %v5379 = vpop.permute.xlu0 %5378
        %5381 = vset.pattern.permute.xlu0 27
        %5382 = vperm.xlu0 %5381, %v379
        %v5383 = vpop.permute.xlu0 %5382
        %5385 = vset.pattern.permute.xlu0 27
        %5386 = vperm.xlu0 %5385, %v380
        %v5387 = vpop.permute.xlu0 %5386
        %v5389 = vmul.f32 %v5359, %v5349
        %v5390 = vmul.f32 %v5363, %v5350
        %v5391 = vmul.f32 %v5367, %v5351
        %v5392 = vmul.f32 %v5371, %v5352
        %v5393 = vmul.f32 %v5375, %v5353
        %v5394 = vmul.f32 %v5379, %v5354
        %v5395 = vmul.f32 %v5383, %v5355
        %v5396 = vmul.f32 %v5387, %v5356
        %v5397 = vmul.f32 %v5341, %v5341
        %v5398 = vmul.f32 %v5342, %v5342
        %v5399 = vmul.f32 %v5343, %v5343
        %v5400 = vmul.f32 %v5344, %v5344
        %v5401 = vmul.f32 %v5345, %v5345
        %v5402 = vmul.f32 %v5346, %v5346
        %v5403 = vmul.f32 %v5347, %v5347
        %v5404 = vmul.f32 %v5348, %v5348
        %v5405 = vmul.f32 %v5397, -0.5
        %v5406 = vmul.f32 %v5398, -0.5
        %v5407 = vmul.f32 %v5399, -0.5
        %v5408 = vmul.f32 %v5400, -0.5
        %v5409 = vmul.f32 %v5401, -0.5
        %v5410 = vmul.f32 %v5402, -0.5
        %v5411 = vmul.f32 %v5403, -0.5
        %v5412 = vmul.f32 %v5404, -0.5
        %v5413 = vmul.f32 %v5405, 1.442695
        %v5414 = vpow.pop %v5413
        %v5415 = vmul.f32 %v5406, 1.442695
        %v5416 = vpow.pop %v5415
        %v5417 = vmul.f32 %v5407, 1.442695
        %v5418 = vpow.pop %v5417
        %v5419 = vmul.f32 %v5408, 1.442695
        %v5420 = vpow.pop %v5419
        %v5421 = vmul.f32 %v5409, 1.442695
        %v5422 = vpow.pop %v5421
        %v5423 = vmul.f32 %v5410, 1.442695
        %v5424 = vpow.pop %v5423
        %v5425 = vmul.f32 %v5411, 1.442695
        %v5426 = vpow.pop %v5425
        %v5427 = vmul.f32 %v5412, 1.442695
        %v5428 = vpow.pop %v5427
        %v5429 = vmul.f32 %v5389, %v5414
        %v5430 = vmul.f32 %v5390, %v5416
        %v5431 = vmul.f32 %v5391, %v5418
        %v5432 = vmul.f32 %v5392, %v5420
        %v5433 = vmul.f32 %v5393, %v5422
        %v5434 = vmul.f32 %v5394, %v5424
        %v5435 = vmul.f32 %v5395, %v5426
        %v5436 = vmul.f32 %v5396, %v5428
        %v5437 = vadd.f32 %v5257, %v5429
        %v5438 = vadd.f32 %v5258, %v5430
        %v5439 = vadd.f32 %v5259, %v5431
        %v5440 = vadd.f32 %v5260, %v5432
        %v5441 = vadd.f32 %v5261, %v5433
        %v5442 = vadd.f32 %v5262, %v5434
        %v5443 = vadd.f32 %v5263, %v5435
        %v5444 = vadd.f32 %v5264, %v5436
        %v5445 = vlaneseq
        %v5446 = vshrl.u32 %v5445, 7
        %v5447 = vsub.s32 4, %v5446
        %v5448 = vrot.slane %v356, %v5447
        %5449 = vset.pattern.permute.xlu0 28
        %5450 = vperm.xlu0 %5449, %v365
        %v5451 = vpop.permute.xlu0 %5450
        %5453 = vset.pattern.permute.xlu0 28
        %5454 = vperm.xlu0 %5453, %v366
        %v5455 = vpop.permute.xlu0 %5454
        %5457 = vset.pattern.permute.xlu0 28
        %5458 = vperm.xlu0 %5457, %v367
        %v5459 = vpop.permute.xlu0 %5458
        %5461 = vset.pattern.permute.xlu0 28
        %5462 = vperm.xlu0 %5461, %v368
        %v5463 = vpop.permute.xlu0 %5462
        %5465 = vset.pattern.permute.xlu0 28
        %5466 = vperm.xlu0 %5465, %v369
        %v5467 = vpop.permute.xlu0 %5466
        %5469 = vset.pattern.permute.xlu0 28
        %5470 = vperm.xlu0 %5469, %v370
        %v5471 = vpop.permute.xlu0 %5470
        %5473 = vset.pattern.permute.xlu0 28
        %5474 = vperm.xlu0 %5473, %v371
        %v5475 = vpop.permute.xlu0 %5474
        %5477 = vset.pattern.permute.xlu0 28
        %5478 = vperm.xlu0 %5477, %v372
        %v5479 = vpop.permute.xlu0 %5478
        %v5481 = vsub.f32 %v5448, %v5451
        %v5482 = vsub.f32 %v5448, %v5455
        %v5483 = vsub.f32 %v5448, %v5459
        %v5484 = vsub.f32 %v5448, %v5463
        %v5485 = vsub.f32 %v5448, %v5467
        %v5486 = vsub.f32 %v5448, %v5471
        %v5487 = vsub.f32 %v5448, %v5475
        %v5488 = vsub.f32 %v5448, %v5479
        %5489 = vset.pattern.permute.xlu0 28
        %5490 = vperm.xlu0 %5489, %v357
        %v5491 = vpop.permute.xlu0 %5490
        %5493 = vset.pattern.permute.xlu0 28
        %5494 = vperm.xlu0 %5493, %v358
        %v5495 = vpop.permute.xlu0 %5494
        %5497 = vset.pattern.permute.xlu0 28
        %5498 = vperm.xlu0 %5497, %v359
        %v5499 = vpop.permute.xlu0 %5498
        %5501 = vset.pattern.permute.xlu0 28
        %5502 = vperm.xlu0 %5501, %v360
        %v5503 = vpop.permute.xlu0 %5502
        %5505 = vset.pattern.permute.xlu0 28
        %5506 = vperm.xlu0 %5505, %v361
        %v5507 = vpop.permute.xlu0 %5506
        %5509 = vset.pattern.permute.xlu0 28
        %5510 = vperm.xlu0 %5509, %v362
        %v5511 = vpop.permute.xlu0 %5510
        %5513 = vset.pattern.permute.xlu0 28
        %5514 = vperm.xlu0 %5513, %v363
        %v5515 = vpop.permute.xlu0 %5514
        %5517 = vset.pattern.permute.xlu0 28
        %5518 = vperm.xlu0 %5517, %v364
        %v5519 = vpop.permute.xlu0 %5518
        %v5521 = vmul.f32 %v5481, %v5491
        %v5522 = vmul.f32 %v5482, %v5495
        %v5523 = vmul.f32 %v5483, %v5499
        %v5524 = vmul.f32 %v5484, %v5503
        %v5525 = vmul.f32 %v5485, %v5507
        %v5526 = vmul.f32 %v5486, %v5511
        %v5527 = vmul.f32 %v5487, %v5515
        %v5528 = vmul.f32 %v5488, %v5519
        %v5529 = vsub.f32 0.0, %v5521
        %v5530 = vsub.f32 0.0, %v5522
        %v5531 = vsub.f32 0.0, %v5523
        %v5532 = vsub.f32 0.0, %v5524
        %v5533 = vsub.f32 0.0, %v5525
        %v5534 = vsub.f32 0.0, %v5526
        %v5535 = vsub.f32 0.0, %v5527
        %v5536 = vsub.f32 0.0, %v5528
        %5537 = vset.pattern.permute.xlu0 28
        %5538 = vperm.xlu0 %5537, %v373
        %v5539 = vpop.permute.xlu0 %5538
        %5541 = vset.pattern.permute.xlu0 28
        %5542 = vperm.xlu0 %5541, %v374
        %v5543 = vpop.permute.xlu0 %5542
        %5545 = vset.pattern.permute.xlu0 28
        %5546 = vperm.xlu0 %5545, %v375
        %v5547 = vpop.permute.xlu0 %5546
        %5549 = vset.pattern.permute.xlu0 28
        %5550 = vperm.xlu0 %5549, %v376
        %v5551 = vpop.permute.xlu0 %5550
        %5553 = vset.pattern.permute.xlu0 28
        %5554 = vperm.xlu0 %5553, %v377
        %v5555 = vpop.permute.xlu0 %5554
        %5557 = vset.pattern.permute.xlu0 28
        %5558 = vperm.xlu0 %5557, %v378
        %v5559 = vpop.permute.xlu0 %5558
        %5561 = vset.pattern.permute.xlu0 28
        %5562 = vperm.xlu0 %5561, %v379
        %v5563 = vpop.permute.xlu0 %5562
        %5565 = vset.pattern.permute.xlu0 28
        %5566 = vperm.xlu0 %5565, %v380
        %v5567 = vpop.permute.xlu0 %5566
        %v5569 = vmul.f32 %v5539, %v5529
        %v5570 = vmul.f32 %v5543, %v5530
        %v5571 = vmul.f32 %v5547, %v5531
        %v5572 = vmul.f32 %v5551, %v5532
        %v5573 = vmul.f32 %v5555, %v5533
        %v5574 = vmul.f32 %v5559, %v5534
        %v5575 = vmul.f32 %v5563, %v5535
        %v5576 = vmul.f32 %v5567, %v5536
        %v5577 = vmul.f32 %v5521, %v5521
        %v5578 = vmul.f32 %v5522, %v5522
        %v5579 = vmul.f32 %v5523, %v5523
        %v5580 = vmul.f32 %v5524, %v5524
        %v5581 = vmul.f32 %v5525, %v5525
        %v5582 = vmul.f32 %v5526, %v5526
        %v5583 = vmul.f32 %v5527, %v5527
        %v5584 = vmul.f32 %v5528, %v5528
        %v5585 = vmul.f32 %v5577, -0.5
        %v5586 = vmul.f32 %v5578, -0.5
        %v5587 = vmul.f32 %v5579, -0.5
        %v5588 = vmul.f32 %v5580, -0.5
        %v5589 = vmul.f32 %v5581, -0.5
        %v5590 = vmul.f32 %v5582, -0.5
        %v5591 = vmul.f32 %v5583, -0.5
        %v5592 = vmul.f32 %v5584, -0.5
        %v5593 = vmul.f32 %v5585, 1.442695
        %v5594 = vpow.pop %v5593
        %v5595 = vmul.f32 %v5586, 1.442695
        %v5596 = vpow.pop %v5595
        %v5597 = vmul.f32 %v5587, 1.442695
        %v5598 = vpow.pop %v5597
        %v5599 = vmul.f32 %v5588, 1.442695
        %v5600 = vpow.pop %v5599
        %v5601 = vmul.f32 %v5589, 1.442695
        %v5602 = vpow.pop %v5601
        %v5603 = vmul.f32 %v5590, 1.442695
        %v5604 = vpow.pop %v5603
        %v5605 = vmul.f32 %v5591, 1.442695
        %v5606 = vpow.pop %v5605
        %v5607 = vmul.f32 %v5592, 1.442695
        %v5608 = vpow.pop %v5607
        %v5609 = vmul.f32 %v5569, %v5594
        %v5610 = vmul.f32 %v5570, %v5596
        %v5611 = vmul.f32 %v5571, %v5598
        %v5612 = vmul.f32 %v5572, %v5600
        %v5613 = vmul.f32 %v5573, %v5602
        %v5614 = vmul.f32 %v5574, %v5604
        %v5615 = vmul.f32 %v5575, %v5606
        %v5616 = vmul.f32 %v5576, %v5608
        %v5617 = vadd.f32 %v5437, %v5609
        %v5618 = vadd.f32 %v5438, %v5610
        %v5619 = vadd.f32 %v5439, %v5611
        %v5620 = vadd.f32 %v5440, %v5612
        %v5621 = vadd.f32 %v5441, %v5613
        %v5622 = vadd.f32 %v5442, %v5614
        %v5623 = vadd.f32 %v5443, %v5615
        %v5624 = vadd.f32 %v5444, %v5616
        %v5625 = vlaneseq
        %v5626 = vshrl.u32 %v5625, 7
        %v5627 = vsub.s32 5, %v5626
        %v5628 = vrot.slane %v356, %v5627
        %5629 = vset.pattern.permute.xlu0 29
        %5630 = vperm.xlu0 %5629, %v365
        %v5631 = vpop.permute.xlu0 %5630
        %5633 = vset.pattern.permute.xlu0 29
        %5634 = vperm.xlu0 %5633, %v366
        %v5635 = vpop.permute.xlu0 %5634
        %5637 = vset.pattern.permute.xlu0 29
        %5638 = vperm.xlu0 %5637, %v367
        %v5639 = vpop.permute.xlu0 %5638
        %5641 = vset.pattern.permute.xlu0 29
        %5642 = vperm.xlu0 %5641, %v368
        %v5643 = vpop.permute.xlu0 %5642
        %5645 = vset.pattern.permute.xlu0 29
        %5646 = vperm.xlu0 %5645, %v369
        %v5647 = vpop.permute.xlu0 %5646
        %5649 = vset.pattern.permute.xlu0 29
        %5650 = vperm.xlu0 %5649, %v370
        %v5651 = vpop.permute.xlu0 %5650
        %5653 = vset.pattern.permute.xlu0 29
        %5654 = vperm.xlu0 %5653, %v371
        %v5655 = vpop.permute.xlu0 %5654
        %5657 = vset.pattern.permute.xlu0 29
        %5658 = vperm.xlu0 %5657, %v372
        %v5659 = vpop.permute.xlu0 %5658
        %v5661 = vsub.f32 %v5628, %v5631
        %v5662 = vsub.f32 %v5628, %v5635
        %v5663 = vsub.f32 %v5628, %v5639
        %v5664 = vsub.f32 %v5628, %v5643
        %v5665 = vsub.f32 %v5628, %v5647
        %v5666 = vsub.f32 %v5628, %v5651
        %v5667 = vsub.f32 %v5628, %v5655
        %v5668 = vsub.f32 %v5628, %v5659
        %5669 = vset.pattern.permute.xlu0 29
        %5670 = vperm.xlu0 %5669, %v357
        %v5671 = vpop.permute.xlu0 %5670
        %5673 = vset.pattern.permute.xlu0 29
        %5674 = vperm.xlu0 %5673, %v358
        %v5675 = vpop.permute.xlu0 %5674
        %5677 = vset.pattern.permute.xlu0 29
        %5678 = vperm.xlu0 %5677, %v359
        %v5679 = vpop.permute.xlu0 %5678
        %5681 = vset.pattern.permute.xlu0 29
        %5682 = vperm.xlu0 %5681, %v360
        %v5683 = vpop.permute.xlu0 %5682
        %5685 = vset.pattern.permute.xlu0 29
        %5686 = vperm.xlu0 %5685, %v361
        %v5687 = vpop.permute.xlu0 %5686
        %5689 = vset.pattern.permute.xlu0 29
        %5690 = vperm.xlu0 %5689, %v362
        %v5691 = vpop.permute.xlu0 %5690
        %5693 = vset.pattern.permute.xlu0 29
        %5694 = vperm.xlu0 %5693, %v363
        %v5695 = vpop.permute.xlu0 %5694
        %5697 = vset.pattern.permute.xlu0 29
        %5698 = vperm.xlu0 %5697, %v364
        %v5699 = vpop.permute.xlu0 %5698
        %v5701 = vmul.f32 %v5661, %v5671
        %v5702 = vmul.f32 %v5662, %v5675
        %v5703 = vmul.f32 %v5663, %v5679
        %v5704 = vmul.f32 %v5664, %v5683
        %v5705 = vmul.f32 %v5665, %v5687
        %v5706 = vmul.f32 %v5666, %v5691
        %v5707 = vmul.f32 %v5667, %v5695
        %v5708 = vmul.f32 %v5668, %v5699
        %v5709 = vsub.f32 0.0, %v5701
        %v5710 = vsub.f32 0.0, %v5702
        %v5711 = vsub.f32 0.0, %v5703
        %v5712 = vsub.f32 0.0, %v5704
        %v5713 = vsub.f32 0.0, %v5705
        %v5714 = vsub.f32 0.0, %v5706
        %v5715 = vsub.f32 0.0, %v5707
        %v5716 = vsub.f32 0.0, %v5708
        %5717 = vset.pattern.permute.xlu0 29
        %5718 = vperm.xlu0 %5717, %v373
        %v5719 = vpop.permute.xlu0 %5718
        %5721 = vset.pattern.permute.xlu0 29
        %5722 = vperm.xlu0 %5721, %v374
        %v5723 = vpop.permute.xlu0 %5722
        %5725 = vset.pattern.permute.xlu0 29
        %5726 = vperm.xlu0 %5725, %v375
        %v5727 = vpop.permute.xlu0 %5726
        %5729 = vset.pattern.permute.xlu0 29
        %5730 = vperm.xlu0 %5729, %v376
        %v5731 = vpop.permute.xlu0 %5730
        %5733 = vset.pattern.permute.xlu0 29
        %5734 = vperm.xlu0 %5733, %v377
        %v5735 = vpop.permute.xlu0 %5734
        %5737 = vset.pattern.permute.xlu0 29
        %5738 = vperm.xlu0 %5737, %v378
        %v5739 = vpop.permute.xlu0 %5738
        %5741 = vset.pattern.permute.xlu0 29
        %5742 = vperm.xlu0 %5741, %v379
        %v5743 = vpop.permute.xlu0 %5742
        %5745 = vset.pattern.permute.xlu0 29
        %5746 = vperm.xlu0 %5745, %v380
        %v5747 = vpop.permute.xlu0 %5746
        %v5749 = vmul.f32 %v5719, %v5709
        %v5750 = vmul.f32 %v5723, %v5710
        %v5751 = vmul.f32 %v5727, %v5711
        %v5752 = vmul.f32 %v5731, %v5712
        %v5753 = vmul.f32 %v5735, %v5713
        %v5754 = vmul.f32 %v5739, %v5714
        %v5755 = vmul.f32 %v5743, %v5715
        %v5756 = vmul.f32 %v5747, %v5716
        %v5757 = vmul.f32 %v5701, %v5701
        %v5758 = vmul.f32 %v5702, %v5702
        %v5759 = vmul.f32 %v5703, %v5703
        %v5760 = vmul.f32 %v5704, %v5704
        %v5761 = vmul.f32 %v5705, %v5705
        %v5762 = vmul.f32 %v5706, %v5706
        %v5763 = vmul.f32 %v5707, %v5707
        %v5764 = vmul.f32 %v5708, %v5708
        %v5765 = vmul.f32 %v5757, -0.5
        %v5766 = vmul.f32 %v5758, -0.5
        %v5767 = vmul.f32 %v5759, -0.5
        %v5768 = vmul.f32 %v5760, -0.5
        %v5769 = vmul.f32 %v5761, -0.5
        %v5770 = vmul.f32 %v5762, -0.5
        %v5771 = vmul.f32 %v5763, -0.5
        %v5772 = vmul.f32 %v5764, -0.5
        %v5773 = vmul.f32 %v5765, 1.442695
        %v5774 = vpow.pop %v5773
        %v5775 = vmul.f32 %v5766, 1.442695
        %v5776 = vpow.pop %v5775
        %v5777 = vmul.f32 %v5767, 1.442695
        %v5778 = vpow.pop %v5777
        %v5779 = vmul.f32 %v5768, 1.442695
        %v5780 = vpow.pop %v5779
        %v5781 = vmul.f32 %v5769, 1.442695
        %v5782 = vpow.pop %v5781
        %v5783 = vmul.f32 %v5770, 1.442695
        %v5784 = vpow.pop %v5783
        %v5785 = vmul.f32 %v5771, 1.442695
        %v5786 = vpow.pop %v5785
        %v5787 = vmul.f32 %v5772, 1.442695
        %v5788 = vpow.pop %v5787
        %v5789 = vmul.f32 %v5749, %v5774
        %v5790 = vmul.f32 %v5750, %v5776
        %v5791 = vmul.f32 %v5751, %v5778
        %v5792 = vmul.f32 %v5752, %v5780
        %v5793 = vmul.f32 %v5753, %v5782
        %v5794 = vmul.f32 %v5754, %v5784
        %v5795 = vmul.f32 %v5755, %v5786
        %v5796 = vmul.f32 %v5756, %v5788
        %v5797 = vadd.f32 %v5617, %v5789
        %v5798 = vadd.f32 %v5618, %v5790
        %v5799 = vadd.f32 %v5619, %v5791
        %v5800 = vadd.f32 %v5620, %v5792
        %v5801 = vadd.f32 %v5621, %v5793
        %v5802 = vadd.f32 %v5622, %v5794
        %v5803 = vadd.f32 %v5623, %v5795
        %v5804 = vadd.f32 %v5624, %v5796
        %v5805 = vlaneseq
        %v5806 = vshrl.u32 %v5805, 7
        %v5807 = vsub.s32 6, %v5806
        %v5808 = vrot.slane %v356, %v5807
        %5809 = vset.pattern.permute.xlu0 30
        %5810 = vperm.xlu0 %5809, %v365
        %v5811 = vpop.permute.xlu0 %5810
        %5813 = vset.pattern.permute.xlu0 30
        %5814 = vperm.xlu0 %5813, %v366
        %v5815 = vpop.permute.xlu0 %5814
        %5817 = vset.pattern.permute.xlu0 30
        %5818 = vperm.xlu0 %5817, %v367
        %v5819 = vpop.permute.xlu0 %5818
        %5821 = vset.pattern.permute.xlu0 30
        %5822 = vperm.xlu0 %5821, %v368
        %v5823 = vpop.permute.xlu0 %5822
        %5825 = vset.pattern.permute.xlu0 30
        %5826 = vperm.xlu0 %5825, %v369
        %v5827 = vpop.permute.xlu0 %5826
        %5829 = vset.pattern.permute.xlu0 30
        %5830 = vperm.xlu0 %5829, %v370
        %v5831 = vpop.permute.xlu0 %5830
        %5833 = vset.pattern.permute.xlu0 30
        %5834 = vperm.xlu0 %5833, %v371
        %v5835 = vpop.permute.xlu0 %5834
        %5837 = vset.pattern.permute.xlu0 30
        %5838 = vperm.xlu0 %5837, %v372
        %v5839 = vpop.permute.xlu0 %5838
        %v5841 = vsub.f32 %v5808, %v5811
        %v5842 = vsub.f32 %v5808, %v5815
        %v5843 = vsub.f32 %v5808, %v5819
        %v5844 = vsub.f32 %v5808, %v5823
        %v5845 = vsub.f32 %v5808, %v5827
        %v5846 = vsub.f32 %v5808, %v5831
        %v5847 = vsub.f32 %v5808, %v5835
        %v5848 = vsub.f32 %v5808, %v5839
        %5849 = vset.pattern.permute.xlu0 30
        %5850 = vperm.xlu0 %5849, %v357
        %v5851 = vpop.permute.xlu0 %5850
        %5853 = vset.pattern.permute.xlu0 30
        %5854 = vperm.xlu0 %5853, %v358
        %v5855 = vpop.permute.xlu0 %5854
        %5857 = vset.pattern.permute.xlu0 30
        %5858 = vperm.xlu0 %5857, %v359
        %v5859 = vpop.permute.xlu0 %5858
        %5861 = vset.pattern.permute.xlu0 30
        %5862 = vperm.xlu0 %5861, %v360
        %v5863 = vpop.permute.xlu0 %5862
        %5865 = vset.pattern.permute.xlu0 30
        %5866 = vperm.xlu0 %5865, %v361
        %v5867 = vpop.permute.xlu0 %5866
        %5869 = vset.pattern.permute.xlu0 30
        %5870 = vperm.xlu0 %5869, %v362
        %v5871 = vpop.permute.xlu0 %5870
        %5873 = vset.pattern.permute.xlu0 30
        %5874 = vperm.xlu0 %5873, %v363
        %v5875 = vpop.permute.xlu0 %5874
        %5877 = vset.pattern.permute.xlu0 30
        %5878 = vperm.xlu0 %5877, %v364
        %v5879 = vpop.permute.xlu0 %5878
        %v5881 = vmul.f32 %v5841, %v5851
        %v5882 = vmul.f32 %v5842, %v5855
        %v5883 = vmul.f32 %v5843, %v5859
        %v5884 = vmul.f32 %v5844, %v5863
        %v5885 = vmul.f32 %v5845, %v5867
        %v5886 = vmul.f32 %v5846, %v5871
        %v5887 = vmul.f32 %v5847, %v5875
        %v5888 = vmul.f32 %v5848, %v5879
        %v5889 = vsub.f32 0.0, %v5881
        %v5890 = vsub.f32 0.0, %v5882
        %v5891 = vsub.f32 0.0, %v5883
        %v5892 = vsub.f32 0.0, %v5884
        %v5893 = vsub.f32 0.0, %v5885
        %v5894 = vsub.f32 0.0, %v5886
        %v5895 = vsub.f32 0.0, %v5887
        %v5896 = vsub.f32 0.0, %v5888
        %5897 = vset.pattern.permute.xlu0 30
        %5898 = vperm.xlu0 %5897, %v373
        %v5899 = vpop.permute.xlu0 %5898
        %5901 = vset.pattern.permute.xlu0 30
        %5902 = vperm.xlu0 %5901, %v374
        %v5903 = vpop.permute.xlu0 %5902
        %5905 = vset.pattern.permute.xlu0 30
        %5906 = vperm.xlu0 %5905, %v375
        %v5907 = vpop.permute.xlu0 %5906
        %5909 = vset.pattern.permute.xlu0 30
        %5910 = vperm.xlu0 %5909, %v376
        %v5911 = vpop.permute.xlu0 %5910
        %5913 = vset.pattern.permute.xlu0 30
        %5914 = vperm.xlu0 %5913, %v377
        %v5915 = vpop.permute.xlu0 %5914
        %5917 = vset.pattern.permute.xlu0 30
        %5918 = vperm.xlu0 %5917, %v378
        %v5919 = vpop.permute.xlu0 %5918
        %5921 = vset.pattern.permute.xlu0 30
        %5922 = vperm.xlu0 %5921, %v379
        %v5923 = vpop.permute.xlu0 %5922
        %5925 = vset.pattern.permute.xlu0 30
        %5926 = vperm.xlu0 %5925, %v380
        %v5927 = vpop.permute.xlu0 %5926
        %v5929 = vmul.f32 %v5899, %v5889
        %v5930 = vmul.f32 %v5903, %v5890
        %v5931 = vmul.f32 %v5907, %v5891
        %v5932 = vmul.f32 %v5911, %v5892
        %v5933 = vmul.f32 %v5915, %v5893
        %v5934 = vmul.f32 %v5919, %v5894
        %v5935 = vmul.f32 %v5923, %v5895
        %v5936 = vmul.f32 %v5927, %v5896
        %v5937 = vmul.f32 %v5881, %v5881
        %v5938 = vmul.f32 %v5882, %v5882
        %v5939 = vmul.f32 %v5883, %v5883
        %v5940 = vmul.f32 %v5884, %v5884
        %v5941 = vmul.f32 %v5885, %v5885
        %v5942 = vmul.f32 %v5886, %v5886
        %v5943 = vmul.f32 %v5887, %v5887
        %v5944 = vmul.f32 %v5888, %v5888
        %v5945 = vmul.f32 %v5937, -0.5
        %v5946 = vmul.f32 %v5938, -0.5
        %v5947 = vmul.f32 %v5939, -0.5
        %v5948 = vmul.f32 %v5940, -0.5
        %v5949 = vmul.f32 %v5941, -0.5
        %v5950 = vmul.f32 %v5942, -0.5
        %v5951 = vmul.f32 %v5943, -0.5
        %v5952 = vmul.f32 %v5944, -0.5
        %v5953 = vmul.f32 %v5945, 1.442695
        %v5954 = vpow.pop %v5953
        %v5955 = vmul.f32 %v5946, 1.442695
        %v5956 = vpow.pop %v5955
        %v5957 = vmul.f32 %v5947, 1.442695
        %v5958 = vpow.pop %v5957
        %v5959 = vmul.f32 %v5948, 1.442695
        %v5960 = vpow.pop %v5959
        %v5961 = vmul.f32 %v5949, 1.442695
        %v5962 = vpow.pop %v5961
        %v5963 = vmul.f32 %v5950, 1.442695
        %v5964 = vpow.pop %v5963
        %v5965 = vmul.f32 %v5951, 1.442695
        %v5966 = vpow.pop %v5965
        %v5967 = vmul.f32 %v5952, 1.442695
        %v5968 = vpow.pop %v5967
        %v5969 = vmul.f32 %v5929, %v5954
        %v5970 = vmul.f32 %v5930, %v5956
        %v5971 = vmul.f32 %v5931, %v5958
        %v5972 = vmul.f32 %v5932, %v5960
        %v5973 = vmul.f32 %v5933, %v5962
        %v5974 = vmul.f32 %v5934, %v5964
        %v5975 = vmul.f32 %v5935, %v5966
        %v5976 = vmul.f32 %v5936, %v5968
        %v5977 = vadd.f32 %v5797, %v5969
        %v5978 = vadd.f32 %v5798, %v5970
        %v5979 = vadd.f32 %v5799, %v5971
        %v5980 = vadd.f32 %v5800, %v5972
        %v5981 = vadd.f32 %v5801, %v5973
        %v5982 = vadd.f32 %v5802, %v5974
        %v5983 = vadd.f32 %v5803, %v5975
        %v5984 = vadd.f32 %v5804, %v5976
        %v5985 = vlaneseq
        %v5986 = vshrl.u32 %v5985, 7
        %v5987 = vsub.s32 7, %v5986
        %v5988 = vrot.slane %v356, %v5987
        %5989 = vset.pattern.permute.xlu0 31
        %5990 = vperm.xlu0 %5989, %v365
        %v5991 = vpop.permute.xlu0 %5990
        %5993 = vset.pattern.permute.xlu0 31
        %5994 = vperm.xlu0 %5993, %v366
        %v5995 = vpop.permute.xlu0 %5994
        %5997 = vset.pattern.permute.xlu0 31
        %5998 = vperm.xlu0 %5997, %v367
        %v5999 = vpop.permute.xlu0 %5998
        %6001 = vset.pattern.permute.xlu0 31
        %6002 = vperm.xlu0 %6001, %v368
        %v6003 = vpop.permute.xlu0 %6002
        %6005 = vset.pattern.permute.xlu0 31
        %6006 = vperm.xlu0 %6005, %v369
        %v6007 = vpop.permute.xlu0 %6006
        %6009 = vset.pattern.permute.xlu0 31
        %6010 = vperm.xlu0 %6009, %v370
        %v6011 = vpop.permute.xlu0 %6010
        %6013 = vset.pattern.permute.xlu0 31
        %6014 = vperm.xlu0 %6013, %v371
        %v6015 = vpop.permute.xlu0 %6014
        %6017 = vset.pattern.permute.xlu0 31
        %6018 = vperm.xlu0 %6017, %v372
        %v6019 = vpop.permute.xlu0 %6018
        %v6021 = vsub.f32 %v5988, %v5991
        %v6022 = vsub.f32 %v5988, %v5995
        %v6023 = vsub.f32 %v5988, %v5999
        %v6024 = vsub.f32 %v5988, %v6003
        %v6025 = vsub.f32 %v5988, %v6007
        %v6026 = vsub.f32 %v5988, %v6011
        %v6027 = vsub.f32 %v5988, %v6015
        %v6028 = vsub.f32 %v5988, %v6019
        %6029 = vset.pattern.permute.xlu0 31
        %6030 = vperm.xlu0 %6029, %v357
        %v6031 = vpop.permute.xlu0 %6030
        %6033 = vset.pattern.permute.xlu0 31
        %6034 = vperm.xlu0 %6033, %v358
        %v6035 = vpop.permute.xlu0 %6034
        %6037 = vset.pattern.permute.xlu0 31
        %6038 = vperm.xlu0 %6037, %v359
        %v6039 = vpop.permute.xlu0 %6038
        %6041 = vset.pattern.permute.xlu0 31
        %6042 = vperm.xlu0 %6041, %v360
        %v6043 = vpop.permute.xlu0 %6042
        %6045 = vset.pattern.permute.xlu0 31
        %6046 = vperm.xlu0 %6045, %v361
        %v6047 = vpop.permute.xlu0 %6046
        %6049 = vset.pattern.permute.xlu0 31
        %6050 = vperm.xlu0 %6049, %v362
        %v6051 = vpop.permute.xlu0 %6050
        %6053 = vset.pattern.permute.xlu0 31
        %6054 = vperm.xlu0 %6053, %v363
        %v6055 = vpop.permute.xlu0 %6054
        %6057 = vset.pattern.permute.xlu0 31
        %6058 = vperm.xlu0 %6057, %v364
        %v6059 = vpop.permute.xlu0 %6058
        %v6061 = vmul.f32 %v6021, %v6031
        %v6062 = vmul.f32 %v6022, %v6035
        %v6063 = vmul.f32 %v6023, %v6039
        %v6064 = vmul.f32 %v6024, %v6043
        %v6065 = vmul.f32 %v6025, %v6047
        %v6066 = vmul.f32 %v6026, %v6051
        %v6067 = vmul.f32 %v6027, %v6055
        %v6068 = vmul.f32 %v6028, %v6059
        %v6069 = vsub.f32 0.0, %v6061
        %v6070 = vsub.f32 0.0, %v6062
        %v6071 = vsub.f32 0.0, %v6063
        %v6072 = vsub.f32 0.0, %v6064
        %v6073 = vsub.f32 0.0, %v6065
        %v6074 = vsub.f32 0.0, %v6066
        %v6075 = vsub.f32 0.0, %v6067
        %v6076 = vsub.f32 0.0, %v6068
        %6077 = vset.pattern.permute.xlu0 31
        %6078 = vperm.xlu0 %6077, %v373
        %v6079 = vpop.permute.xlu0 %6078
        %6081 = vset.pattern.permute.xlu0 31
        %6082 = vperm.xlu0 %6081, %v374
        %v6083 = vpop.permute.xlu0 %6082
        %6085 = vset.pattern.permute.xlu0 31
        %6086 = vperm.xlu0 %6085, %v375
        %v6087 = vpop.permute.xlu0 %6086
        %6089 = vset.pattern.permute.xlu0 31
        %6090 = vperm.xlu0 %6089, %v376
        %v6091 = vpop.permute.xlu0 %6090
        %6093 = vset.pattern.permute.xlu0 31
        %6094 = vperm.xlu0 %6093, %v377
        %v6095 = vpop.permute.xlu0 %6094
        %6097 = vset.pattern.permute.xlu0 31
        %6098 = vperm.xlu0 %6097, %v378
        %v6099 = vpop.permute.xlu0 %6098
        %6101 = vset.pattern.permute.xlu0 31
        %6102 = vperm.xlu0 %6101, %v379
        %v6103 = vpop.permute.xlu0 %6102
        %6105 = vset.pattern.permute.xlu0 31
        %6106 = vperm.xlu0 %6105, %v380
        %v6107 = vpop.permute.xlu0 %6106
        %v6109 = vmul.f32 %v6079, %v6069
        %v6110 = vmul.f32 %v6083, %v6070
        %v6111 = vmul.f32 %v6087, %v6071
        %v6112 = vmul.f32 %v6091, %v6072
        %v6113 = vmul.f32 %v6095, %v6073
        %v6114 = vmul.f32 %v6099, %v6074
        %v6115 = vmul.f32 %v6103, %v6075
        %v6116 = vmul.f32 %v6107, %v6076
        %v6117 = vmul.f32 %v6061, %v6061
        %v6118 = vmul.f32 %v6062, %v6062
        %v6119 = vmul.f32 %v6063, %v6063
        %v6120 = vmul.f32 %v6064, %v6064
        %v6121 = vmul.f32 %v6065, %v6065
        %v6122 = vmul.f32 %v6066, %v6066
        %v6123 = vmul.f32 %v6067, %v6067
        %v6124 = vmul.f32 %v6068, %v6068
        %v6125 = vmul.f32 %v6117, -0.5
        %v6126 = vmul.f32 %v6118, -0.5
        %v6127 = vmul.f32 %v6119, -0.5
        %v6128 = vmul.f32 %v6120, -0.5
        %v6129 = vmul.f32 %v6121, -0.5
        %v6130 = vmul.f32 %v6122, -0.5
        %v6131 = vmul.f32 %v6123, -0.5
        %v6132 = vmul.f32 %v6124, -0.5
        %v6133 = vmul.f32 %v6125, 1.442695
        %v6134 = vpow.pop %v6133
        %v6135 = vmul.f32 %v6126, 1.442695
        %v6136 = vpow.pop %v6135
        %v6137 = vmul.f32 %v6127, 1.442695
        %v6138 = vpow.pop %v6137
        %v6139 = vmul.f32 %v6128, 1.442695
        %v6140 = vpow.pop %v6139
        %v6141 = vmul.f32 %v6129, 1.442695
        %v6142 = vpow.pop %v6141
        %v6143 = vmul.f32 %v6130, 1.442695
        %v6144 = vpow.pop %v6143
        %v6145 = vmul.f32 %v6131, 1.442695
        %v6146 = vpow.pop %v6145
        %v6147 = vmul.f32 %v6132, 1.442695
        %v6148 = vpow.pop %v6147
        %v6149 = vmul.f32 %v6109, %v6134
        %v6150 = vmul.f32 %v6110, %v6136
        %v6151 = vmul.f32 %v6111, %v6138
        %v6152 = vmul.f32 %v6112, %v6140
        %v6153 = vmul.f32 %v6113, %v6142
        %v6154 = vmul.f32 %v6114, %v6144
        %v6155 = vmul.f32 %v6115, %v6146
        %v6156 = vmul.f32 %v6116, %v6148
        %v6157 = vadd.f32 %v5977, %v6149
        %v6158 = vadd.f32 %v5978, %v6150
        %v6159 = vadd.f32 %v5979, %v6151
        %v6160 = vadd.f32 %v5980, %v6152
        %v6161 = vadd.f32 %v5981, %v6153
        %v6162 = vadd.f32 %v5982, %v6154
        %v6163 = vadd.f32 %v5983, %v6155
        %v6164 = vadd.f32 %v5984, %v6156
        %6165 = vst [vmem:[%s296] sm:$0xff] %v6157
        %6166 = vst [vmem:[%s296 + $0x8] sm:$0xff] %v6158
        %6167 = vst [vmem:[%s296 + $0x10] sm:$0xff] %v6159
        %6168 = vst [vmem:[%s296 + $0x18] sm:$0xff] %v6160
        %6169 = vst [vmem:[%s296 + $0x20] sm:$0xff] %v6161
        %6170 = vst [vmem:[%s296 + $0x28] sm:$0xff] %v6162
        %6171 = vst [vmem:[%s296 + $0x30] sm:$0xff] %v6163
        %6172 = vst [vmem:[%s296 + $0x38] sm:$0xff] %v6164
        %s6173 = sand.u32 %s159, 1
        %s6174 = scalar_lea.sflag [#allocation4], %s6173
        %s6175 = sand.u32 %s159, 1
        %s6176 = smul.addr %s6175, 64
        %s6177 = scalar_lea.vmem [#allocation3], %s6176
        // Predicated region
        $region83: #{tpu_custom_call.1} parent=77 // pred_check
          %p6178 = pneg %p169
        $region84: #{tpu_custom_call.1} parent=77 // pred_check_branch
          %6180 = sbr.rel (%p6178) target = $region86
        $region85: #{tpu_custom_call.1} parent=77 // pred_region
          %s6182 = ssub.s32 1024, 1024
          %6183 = vsyncadd %s6174, %s6182
          %s6184 = smul.addr %s20, 128
          %s6185 = scalar_lea.hbm %s6, %s6184
          %s6186 = sshll.u32 %s6177, 4
          %s6187 = int_to_ptr.vmem [resolvable:$true] %s6186
          %6192 = dma.vmem_to_hbm [thread:$0]  %s6187, 1024, %s6185, %s6174, 128, 256, 8
        $region86: #{tpu_custom_call.1} parent=77 // pred_fallthru
          _
      $region78: #{tpu_custom_call.1} parent=5 // pred_fallthru
        _
      %p6193 = scmp.le.s32.totalorder 2, %s15
      // Predicated region
      $region87: #{tpu_custom_call.1} parent=5 // pred_check
        %p6194 = pneg %p6193
      $region88: #{tpu_custom_call.1} parent=5 // pred_check_branch
        %6196 = sbr.rel (%p6194) target = $region90
      $region89: #{tpu_custom_call.1} parent=5 // pred_region
        %s6197 = ssub.s32 %s15, 2
        // Predicated region
        $region91: #{tpu_custom_call.1} parent=89 // pred_check
          %p6198 = pneg %p175
        $region92: #{tpu_custom_call.1} parent=89 // pred_check_branch
          %6200 = sbr.rel (%p6198) target = $region94
        $region93: #{tpu_custom_call.1} parent=89 // pred_region
          %s6201 = sand.u32 %s160, 1
          %s6202 = scalar_lea.sflag [#allocation4], %s6201
          %s6203 = sand.u32 %s160, 1
          %s6204 = smul.addr %s6203, 64
          %s6205 = scalar_lea.vmem [#allocation3], %s6204
          %6206 = dma.done %s6202, 1024
        $region94: #{tpu_custom_call.1} parent=89 // pred_fallthru
          _
      $region90: #{tpu_custom_call.1} parent=5 // pred_fallthru
        _
    $region6: #{tpu_custom_call.1} parent=1 // loop_footer
      %s19 = sadd.s32 1, %s15
    $region7: #{tpu_custom_call.1} parent=1 // loop_footer_branch
      %14 = sbr.rel target = $region3
    $region8: #{tpu_custom_call.1} parent=1 // loop_exit
      _
    %6207 = vsyncpa [#allocation4], 1
    %s6208 = scalar_lea.sflag [#allocation4], 1
    %6209 = vsyncpa %s6208, 1

</llo_original>
